<compile_context>
chip_gen: v6e
topology: v6e:2x2x1
jax: 0.10.0
libtpu: 0.0.40
codegen_flags: <defaults>
</compile_context>

<pallas_src>
import functools

import numpy as np
import jax
import jax.numpy as jnp
from jax import lax
from jax.experimental import pallas as pl
from jax.experimental.pallas import tpu as pltpu


def _round_up(x, m):
    return (x + m - 1) // m * m


# ----------------------------------------------------------------------------
# Static selection tensors used to build the "banded" conv(+h-pool) matrices.
# S[kw, w, pw, s] = 1  iff  w == 2*pw + s + kw  (output column ow = 2*pw + s).
# ----------------------------------------------------------------------------
def _pool_select(k, w_in, pw_out):
    s = np.zeros((k, w_in, pw_out, 2), np.float32)
    for kw in range(k):
        for pw in range(pw_out):
            for par in range(2):
                s[kw, 2 * pw + par + kw, pw, par] = 1.0
    return s


_S1 = _pool_select(5, 32, 14)   # conv1: W=32 -> OW=28 -> pooled PW=14
_S2 = _pool_select(5, 14, 5)    # conv2: W=14 -> OW=10 -> pooled PW=5


# ----------------------------------------------------------------------------
# Fused conv + bias + relu + 2x2 maxpool kernel (one image per grid step).
# ----------------------------------------------------------------------------
def _conv_relu_pool_kernel(xe_ref, xo_ref, m_ref, b_ref, o_ref, *, k, rows):
    # xe_ref / xo_ref : (1, He, WC)   even / odd input rows, cols = flattened (w, c)
    # m_ref           : (k, 2, WC, NC) banded conv weights, s-axis = h-pool phase
    # b_ref           : (1, NC)        bias broadcast over pooled width
    # o_ref           : (1, rows, NC)  pooled output (rows = pooled height)
    #
    # Distinct shifted row slabs: t = r + kh in [0, k];  input row 2*ph + t maps to
    # (even/odd)-row array index t//2 + ph, so every slab is a contiguous slice.
    lhs = []
    for t in range(k + 1):
        src = xe_ref if t % 2 == 0 else xo_ref
        m0 = t // 2
        lhs.append(src[0, m0:m0 + rows, :])

    best = None
    for r in range(2):            # vertical 2x2-pool phase
        for s in range(2):        # horizontal 2x2-pool phase (baked into m_ref[:, s])
            acc = jnp.dot(lhs[r], m_ref[0, s], preferred_element_type=jnp.float32)
            for kh in range(1, k):
                acc = acc + jnp.dot(lhs[r + kh], m_ref[kh, s],
                                    preferred_element_type=jnp.float32)
            best = acc if best is None else jnp.maximum(best, acc)

    # maxpool(relu(y + b)) == relu(max(y) + b)  (relu monotone, bias shared)
    o_ref[0] = jnp.maximum(best + b_ref[...], 0.0)


def _conv_relu_pool(x_even, x_odd, m, b_row):
    B, he, wc = x_even.shape
    k = m.shape[0]
    nc = m.shape[-1]
    rows = (2 * he - k + 1) // 2          # pooled output rows

    kern = functools.partial(_conv_relu_pool_kernel, k=k, rows=rows)
    flops = int(2 * B * 4 * k * rows * wc * nc)
    bytes_acc = int(4 * (2 * B * he * wc + k * 2 * wc * nc + nc + B * rows * nc))

    return pl.pallas_call(
        kern,
        out_shape=jax.ShapeDtypeStruct((B, rows, nc), jnp.float32),
        grid=(B,),
        in_specs=[
            pl.BlockSpec((1, he, wc), lambda i: (i, 0, 0)),
            pl.BlockSpec((1, he, wc), lambda i: (i, 0, 0)),
            pl.BlockSpec((k, 2, wc, nc), lambda i: (0, 0, 0, 0)),   # resident weights
            pl.BlockSpec((1, nc), lambda i: (0, 0)),                # resident bias
        ],
        out_specs=pl.BlockSpec((1, rows, nc), lambda i: (i, 0, 0)),
        compiler_params=pltpu.CompilerParams(dimension_semantics=("parallel",)),
        cost_estimate=pl.CostEstimate(flops=flops, transcendentals=0,
                                      bytes_accessed=bytes_acc),
    )(x_even, x_odd, m, b_row)


# ----------------------------------------------------------------------------
# Fused fc1 -> relu -> fc2 -> relu -> fc3 kernel, batch tiled, weights resident.
# ----------------------------------------------------------------------------
def _mlp_kernel(x_ref, w1_ref, b1_ref, w2_ref, b2_ref, w3_ref, b3_ref, o_ref):
    h = jnp.dot(x_ref[...], w1_ref[...], preferred_element_type=jnp.float32) + b1_ref[...]
    h = jnp.maximum(h, 0.0)
    h = jnp.dot(h, w2_ref[...], preferred_element_type=jnp.float32) + b2_ref[...]
    h = jnp.maximum(h, 0.0)
    o_ref[...] = jnp.dot(h, w3_ref[...], preferred_element_type=jnp.float32) + b3_ref[...]


def _mlp(x, w1, b1, w2, b2, w3, b3):
    B, K = x.shape
    tb = min(128, _round_up(B, 8))        # batch tile (sublane-aligned)
    bp = _round_up(B, tb)
    if bp != B:
        x = jnp.pad(x, ((0, bp - B), (0, 0)))
    n1, n2, n3 = w1.shape[1], w2.shape[1], w3.shape[1]

    flops = int(2 * bp * (K * n1 + n1 * n2 + n2 * n3))
    bytes_acc = int(4 * (bp * K + K * n1 + n1 * n2 + n2 * n3 + n1 + n2 + n3 + bp * n3))

    out = pl.pallas_call(
        _mlp_kernel,
        out_shape=jax.ShapeDtypeStruct((bp, n3), jnp.float32),
        grid=(bp // tb,),
        in_specs=[
            pl.BlockSpec((tb, K), lambda i: (i, 0)),
            pl.BlockSpec((K, n1), lambda i: (0, 0)),
            pl.BlockSpec((1, n1), lambda i: (0, 0)),
            pl.BlockSpec((n1, n2), lambda i: (0, 0)),
            pl.BlockSpec((1, n2), lambda i: (0, 0)),
            pl.BlockSpec((n2, n3), lambda i: (0, 0)),
            pl.BlockSpec((1, n3), lambda i: (0, 0)),
        ],
        out_specs=pl.BlockSpec((tb, n3), lambda i: (i, 0)),
        compiler_params=pltpu.CompilerParams(dimension_semantics=("parallel",)),
        cost_estimate=pl.CostEstimate(flops=flops, transcendentals=0,
                                      bytes_accessed=bytes_acc),
    )(x, w1, b1, w2, b2, w3, b3)
    return out[:B]


# ----------------------------------------------------------------------------
# One-time parameter prep (banded conv matrices, bias rows, fc1 column permute).
# ----------------------------------------------------------------------------
def _prepare(p):
    # M1[kh, s, w*3+ci, co*14+pw] = W1[co, ci, kh, w - 2*pw - s]  (0 if out of band)
    m1 = jnp.einsum("oihk,kwps->hswiop", p["conv1_w"], _S1).reshape(5, 2, 96, 84)
    # M2[kh, s, ci*14+w, co*5+pw]  = W2[co, ci, kh, w - 2*pw - s]
    m2 = jnp.einsum("oihk,kwps->hsiwop", p["conv2_w"], _S2).reshape(5, 2, 84, 80)
    cb1 = jnp.repeat(p["conv1_b"], 14)[None, :]    # (1, 84)  cols = (c, pw)
    cb2 = jnp.repeat(p["conv2_b"], 5)[None, :]     # (1, 80)  cols = (c, pw)
    # fc1 columns: torch flatten order (c, h, w) -> our flatten order (h, c, w)
    w1 = p["fc1_w"].reshape(120, 16, 5, 5).transpose(0, 2, 1, 3).reshape(120, 400).T
    return dict(m1=m1, m2=m2, cb1=cb1, cb2=cb2,
                w1=w1, b1=p["fc1_b"][None, :],
                w2=p["fc2_w"].T, b2=p["fc2_b"][None, :],
                w3=p["fc3_w"].T, b3=p["fc3_b"][None, :])


# ----------------------------------------------------------------------------
# Full forward pass (PyTorch Net semantics)
# ----------------------------------------------------------------------------
def net_forward(x, p):
    B = x.shape[0]
    q = _prepare(p)   # cheap (weights only); in a serving loop hoist this out of jit

    # NHWC, rows = image row, cols = (w, cin); split even/odd rows for the fused
    # vertical pool (tiny input rearrangement replaces the old 25x im2col blowup).
    xr = jnp.transpose(x, (0, 2, 3, 1)).reshape(B, 32, 96)
    h1 = _conv_relu_pool(xr[:, 0::2, :], xr[:, 1::2, :], q["m1"], q["cb1"])  # [B,14,84]
    h2 = _conv_relu_pool(h1[:, 0::2, :], h1[:, 1::2, :], q["m2"], q["cb2"])  # [B,5,80]

    flat = h2.reshape(B, 400)   # cols = (h, c, w); fc1 weights already permuted
    return _mlp(flat, q["w1"], q["b1"], q["w2"], q["b2"], q["w3"], q["b3"])


# ----------------------------------------------------------------------------
# Pure-JAX reference (for a correctness check)
# ----------------------------------------------------------------------------
def reference_forward(x, p):
    def conv(x, w, b):
        y = lax.conv_general_dilated(
            x, w, window_strides=(1, 1), padding="VALID",
            dimension_numbers=("NCHW", "OIHW", "NCHW"))
        return y + b[None, :, None, None]

    def pool(x):
        return lax.reduce_window(x, -jnp.inf, lax.max,
                                 (1, 1, 2, 2), (1, 1, 2, 2), "VALID")

    y = pool(jnp.maximum(conv(x, p["conv1_w"], p["conv1_b"]), 0.0))
    y = pool(jnp.maximum(conv(y, p["conv2_w"], p["conv2_b"]), 0.0))
    y = y.reshape(y.shape[0], -1)                          # NCHW flatten == torch view
    y = jnp.maximum(y @ p["fc1_w"].T + p["fc1_b"], 0.0)
    y = jnp.maximum(y @ p["fc2_w"].T + p["fc2_b"], 0.0)
    return y @ p["fc3_w"].T + p["fc3_b"]


# ----------------------------------------------------------------------------
# Deterministic parameter init (PyTorch-shaped tensors)
# ----------------------------------------------------------------------------
def init_params(key):
    ks = jax.random.split(key, 10)

    def w(k, shape, fan_in):
        return (jax.random.normal(k, shape, jnp.float32) / jnp.sqrt(fan_in)).astype(jnp.float32)

    return {
        "conv1_w": w(ks[0], (6, 3, 5, 5), 3 * 5 * 5),
        "conv1_b": w(ks[1], (6,), 3 * 5 * 5),
        "conv2_w": w(ks[2], (16, 6, 5, 5), 6 * 5 * 5),
        "conv2_b": w(ks[3], (16,), 6 * 5 * 5),
        "fc1_w": w(ks[4], (120, 400), 400),
        "fc1_b": w(ks[5], (120,), 400),
        "fc2_w": w(ks[6], (84, 120), 120),
        "fc2_b": w(ks[7], (84,), 120),
        "fc3_w": w(ks[8], (10, 84), 84),
        "fc3_b": w(ks[9], (10,), 84),
    }


if __name__ == "__main__":
    B = 2
    x = jax.random.normal(jax.random.PRNGKey(0), (B, 3, 32, 32), jnp.float32)
    params = init_params(jax.random.PRNGKey(1))

    out = jax.block_until_ready(jax.jit(net_forward)(x, params))
    assert out.shape == (B, 10), out.shape

    ref = jax.block_until_ready(jax.jit(reference_forward)(x, params))
    if not jnp.allclose(out, ref, atol=1e-2, rtol=1e-2):
        raise AssertionError(f"mismatch vs reference: max abs err "
                             f"{float(jnp.max(jnp.abs(out - ref)))}")

    print("KERNEL_OK")
</pallas_src>

<mosaic_0001>
module attributes {stable_mosaic.version = 11 : i64} {
  func.func @_conv_relu_pool_kernel(%arg0: i32, %arg1: memref<1x16x96xf32, #tpu.memory_space<vmem>>, %arg2: memref<1x16x96xf32, #tpu.memory_space<vmem>>, %arg3: memref<5x2x96x84xf32, #tpu.memory_space<vmem>>, %arg4: memref<1x84xf32, #tpu.memory_space<vmem>>, %arg5: memref<1x14x84xf32, #tpu.memory_space<vmem>>) attributes {dimension_semantics = [#tpu.dimension_semantics<parallel>], iteration_bounds = array<i64: 2>, scalar_prefetch = 0 : i64, scratch_operands = 0 : i64, tpu.core_type = #tpu.core_type<tc>, window_params = [{transform_indices = @transform_0, window_bounds = array<i64: 1, 16, 96>}, {transform_indices = @transform_1, window_bounds = array<i64: 1, 16, 96>}, {pipeline_mode = #tpu.pipeline_mode<synchronous>, transform_indices = @transform_2, window_bounds = array<i64: 5, 2, 96, 84>}, {pipeline_mode = #tpu.pipeline_mode<synchronous>, transform_indices = @transform_3, window_bounds = array<i64: 1, 84>}, {transform_indices = @transform_4, window_bounds = array<i64: 1, 14, 84>}]} {
    %c0 = arith.constant 0 : index
    %c0_0 = arith.constant 0 : index
    %c0_1 = arith.constant 0 : index
    %0 = vector.load %arg1[%c0, %c0_0, %c0_1] : memref<1x16x96xf32, #tpu.memory_space<vmem>>, vector<1x14x96xf32>
    %1 = vector.shape_cast %0 : vector<1x14x96xf32> to vector<14x96xf32>
    %c0_2 = arith.constant 0 : index
    %c0_3 = arith.constant 0 : index
    %c0_4 = arith.constant 0 : index
    %2 = vector.load %arg2[%c0_2, %c0_3, %c0_4] : memref<1x16x96xf32, #tpu.memory_space<vmem>>, vector<1x14x96xf32>
    %3 = vector.shape_cast %2 : vector<1x14x96xf32> to vector<14x96xf32>
    %c0_5 = arith.constant 0 : index
    %c1 = arith.constant 1 : index
    %c0_6 = arith.constant 0 : index
    %4 = vector.load %arg1[%c0_5, %c1, %c0_6] : memref<1x16x96xf32, #tpu.memory_space<vmem>>, vector<1x14x96xf32>
    %5 = vector.shape_cast %4 : vector<1x14x96xf32> to vector<14x96xf32>
    %c0_7 = arith.constant 0 : index
    %c1_8 = arith.constant 1 : index
    %c0_9 = arith.constant 0 : index
    %6 = vector.load %arg2[%c0_7, %c1_8, %c0_9] : memref<1x16x96xf32, #tpu.memory_space<vmem>>, vector<1x14x96xf32>
    %7 = vector.shape_cast %6 : vector<1x14x96xf32> to vector<14x96xf32>
    %c0_10 = arith.constant 0 : index
    %c2 = arith.constant 2 : index
    %c0_11 = arith.constant 0 : index
    %8 = vector.load %arg1[%c0_10, %c2, %c0_11] : memref<1x16x96xf32, #tpu.memory_space<vmem>>, vector<1x14x96xf32>
    %9 = vector.shape_cast %8 : vector<1x14x96xf32> to vector<14x96xf32>
    %c0_12 = arith.constant 0 : index
    %c2_13 = arith.constant 2 : index
    %c0_14 = arith.constant 0 : index
    %10 = vector.load %arg2[%c0_12, %c2_13, %c0_14] : memref<1x16x96xf32, #tpu.memory_space<vmem>>, vector<1x14x96xf32>
    %11 = vector.shape_cast %10 : vector<1x14x96xf32> to vector<14x96xf32>
    %c0_15 = arith.constant 0 : index
    %c0_16 = arith.constant 0 : index
    %c0_17 = arith.constant 0 : index
    %c0_18 = arith.constant 0 : index
    %12 = vector.load %arg3[%c0_15, %c0_16, %c0_17, %c0_18] : memref<5x2x96x84xf32, #tpu.memory_space<vmem>>, vector<1x1x96x84xf32>
    %13 = vector.shape_cast %12 : vector<1x1x96x84xf32> to vector<96x84xf32>
    %cst = arith.constant dense<0.000000e+00> : vector<14x84xf32>
    %14 = tpu.matmul %1, %13, %cst {dimension_numbers = #tpu.dot_dimension_numbers<[1], [0], [0], [1], [0, 0, 1, 1], [], []>} : vector<14x96xf32>, vector<96x84xf32>, vector<14x84xf32> -> vector<14x84xf32>
    %c1_19 = arith.constant 1 : index
    %c0_20 = arith.constant 0 : index
    %c0_21 = arith.constant 0 : index
    %c0_22 = arith.constant 0 : index
    %15 = vector.load %arg3[%c1_19, %c0_20, %c0_21, %c0_22] : memref<5x2x96x84xf32, #tpu.memory_space<vmem>>, vector<1x1x96x84xf32>
    %16 = vector.shape_cast %15 : vector<1x1x96x84xf32> to vector<96x84xf32>
    %cst_23 = arith.constant dense<0.000000e+00> : vector<14x84xf32>
    %17 = tpu.matmul %3, %16, %cst_23 {dimension_numbers = #tpu.dot_dimension_numbers<[1], [0], [0], [1], [0, 0, 1, 1], [], []>} : vector<14x96xf32>, vector<96x84xf32>, vector<14x84xf32> -> vector<14x84xf32>
    %18 = arith.addf %14, %17 : vector<14x84xf32>
    %c2_24 = arith.constant 2 : index
    %c0_25 = arith.constant 0 : index
    %c0_26 = arith.constant 0 : index
    %c0_27 = arith.constant 0 : index
    %19 = vector.load %arg3[%c2_24, %c0_25, %c0_26, %c0_27] : memref<5x2x96x84xf32, #tpu.memory_space<vmem>>, vector<1x1x96x84xf32>
    %20 = vector.shape_cast %19 : vector<1x1x96x84xf32> to vector<96x84xf32>
    %cst_28 = arith.constant dense<0.000000e+00> : vector<14x84xf32>
    %21 = tpu.matmul %5, %20, %cst_28 {dimension_numbers = #tpu.dot_dimension_numbers<[1], [0], [0], [1], [0, 0, 1, 1], [], []>} : vector<14x96xf32>, vector<96x84xf32>, vector<14x84xf32> -> vector<14x84xf32>
    %22 = arith.addf %18, %21 : vector<14x84xf32>
    %c3 = arith.constant 3 : index
    %c0_29 = arith.constant 0 : index
    %c0_30 = arith.constant 0 : index
    %c0_31 = arith.constant 0 : index
    %23 = vector.load %arg3[%c3, %c0_29, %c0_30, %c0_31] : memref<5x2x96x84xf32, #tpu.memory_space<vmem>>, vector<1x1x96x84xf32>
    %24 = vector.shape_cast %23 : vector<1x1x96x84xf32> to vector<96x84xf32>
    %cst_32 = arith.constant dense<0.000000e+00> : vector<14x84xf32>
    %25 = tpu.matmul %7, %24, %cst_32 {dimension_numbers = #tpu.dot_dimension_numbers<[1], [0], [0], [1], [0, 0, 1, 1], [], []>} : vector<14x96xf32>, vector<96x84xf32>, vector<14x84xf32> -> vector<14x84xf32>
    %26 = arith.addf %22, %25 : vector<14x84xf32>
    %c4 = arith.constant 4 : index
    %c0_33 = arith.constant 0 : index
    %c0_34 = arith.constant 0 : index
    %c0_35 = arith.constant 0 : index
    %27 = vector.load %arg3[%c4, %c0_33, %c0_34, %c0_35] : memref<5x2x96x84xf32, #tpu.memory_space<vmem>>, vector<1x1x96x84xf32>
    %28 = vector.shape_cast %27 : vector<1x1x96x84xf32> to vector<96x84xf32>
    %cst_36 = arith.constant dense<0.000000e+00> : vector<14x84xf32>
    %29 = tpu.matmul %9, %28, %cst_36 {dimension_numbers = #tpu.dot_dimension_numbers<[1], [0], [0], [1], [0, 0, 1, 1], [], []>} : vector<14x96xf32>, vector<96x84xf32>, vector<14x84xf32> -> vector<14x84xf32>
    %30 = arith.addf %26, %29 : vector<14x84xf32>
    %c0_37 = arith.constant 0 : index
    %c1_38 = arith.constant 1 : index
    %c0_39 = arith.constant 0 : index
    %c0_40 = arith.constant 0 : index
    %31 = vector.load %arg3[%c0_37, %c1_38, %c0_39, %c0_40] : memref<5x2x96x84xf32, #tpu.memory_space<vmem>>, vector<1x1x96x84xf32>
    %32 = vector.shape_cast %31 : vector<1x1x96x84xf32> to vector<96x84xf32>
    %cst_41 = arith.constant dense<0.000000e+00> : vector<14x84xf32>
    %33 = tpu.matmul %1, %32, %cst_41 {dimension_numbers = #tpu.dot_dimension_numbers<[1], [0], [0], [1], [0, 0, 1, 1], [], []>} : vector<14x96xf32>, vector<96x84xf32>, vector<14x84xf32> -> vector<14x84xf32>
    %c1_42 = arith.constant 1 : index
    %c1_43 = arith.constant 1 : index
    %c0_44 = arith.constant 0 : index
    %c0_45 = arith.constant 0 : index
    %34 = vector.load %arg3[%c1_42, %c1_43, %c0_44, %c0_45] : memref<5x2x96x84xf32, #tpu.memory_space<vmem>>, vector<1x1x96x84xf32>
    %35 = vector.shape_cast %34 : vector<1x1x96x84xf32> to vector<96x84xf32>
    %cst_46 = arith.constant dense<0.000000e+00> : vector<14x84xf32>
    %36 = tpu.matmul %3, %35, %cst_46 {dimension_numbers = #tpu.dot_dimension_numbers<[1], [0], [0], [1], [0, 0, 1, 1], [], []>} : vector<14x96xf32>, vector<96x84xf32>, vector<14x84xf32> -> vector<14x84xf32>
    %37 = arith.addf %33, %36 : vector<14x84xf32>
    %c2_47 = arith.constant 2 : index
    %c1_48 = arith.constant 1 : index
    %c0_49 = arith.constant 0 : index
    %c0_50 = arith.constant 0 : index
    %38 = vector.load %arg3[%c2_47, %c1_48, %c0_49, %c0_50] : memref<5x2x96x84xf32, #tpu.memory_space<vmem>>, vector<1x1x96x84xf32>
    %39 = vector.shape_cast %38 : vector<1x1x96x84xf32> to vector<96x84xf32>
    %cst_51 = arith.constant dense<0.000000e+00> : vector<14x84xf32>
    %40 = tpu.matmul %5, %39, %cst_51 {dimension_numbers = #tpu.dot_dimension_numbers<[1], [0], [0], [1], [0, 0, 1, 1], [], []>} : vector<14x96xf32>, vector<96x84xf32>, vector<14x84xf32> -> vector<14x84xf32>
    %41 = arith.addf %37, %40 : vector<14x84xf32>
    %c3_52 = arith.constant 3 : index
    %c1_53 = arith.constant 1 : index
    %c0_54 = arith.constant 0 : index
    %c0_55 = arith.constant 0 : index
    %42 = vector.load %arg3[%c3_52, %c1_53, %c0_54, %c0_55] : memref<5x2x96x84xf32, #tpu.memory_space<vmem>>, vector<1x1x96x84xf32>
    %43 = vector.shape_cast %42 : vector<1x1x96x84xf32> to vector<96x84xf32>
    %cst_56 = arith.constant dense<0.000000e+00> : vector<14x84xf32>
    %44 = tpu.matmul %7, %43, %cst_56 {dimension_numbers = #tpu.dot_dimension_numbers<[1], [0], [0], [1], [0, 0, 1, 1], [], []>} : vector<14x96xf32>, vector<96x84xf32>, vector<14x84xf32> -> vector<14x84xf32>
    %45 = arith.addf %41, %44 : vector<14x84xf32>
    %c4_57 = arith.constant 4 : index
    %c1_58 = arith.constant 1 : index
    %c0_59 = arith.constant 0 : index
    %c0_60 = arith.constant 0 : index
    %46 = vector.load %arg3[%c4_57, %c1_58, %c0_59, %c0_60] : memref<5x2x96x84xf32, #tpu.memory_space<vmem>>, vector<1x1x96x84xf32>
    %47 = vector.shape_cast %46 : vector<1x1x96x84xf32> to vector<96x84xf32>
    %cst_61 = arith.constant dense<0.000000e+00> : vector<14x84xf32>
    %48 = tpu.matmul %9, %47, %cst_61 {dimension_numbers = #tpu.dot_dimension_numbers<[1], [0], [0], [1], [0, 0, 1, 1], [], []>} : vector<14x96xf32>, vector<96x84xf32>, vector<14x84xf32> -> vector<14x84xf32>
    %49 = arith.addf %45, %48 : vector<14x84xf32>
    %50 = arith.maximumf %30, %49 : vector<14x84xf32>
    %c0_62 = arith.constant 0 : index
    %c0_63 = arith.constant 0 : index
    %c0_64 = arith.constant 0 : index
    %c0_65 = arith.constant 0 : index
    %51 = vector.load %arg3[%c0_62, %c0_63, %c0_64, %c0_65] : memref<5x2x96x84xf32, #tpu.memory_space<vmem>>, vector<1x1x96x84xf32>
    %52 = vector.shape_cast %51 : vector<1x1x96x84xf32> to vector<96x84xf32>
    %cst_66 = arith.constant dense<0.000000e+00> : vector<14x84xf32>
    %53 = tpu.matmul %3, %52, %cst_66 {dimension_numbers = #tpu.dot_dimension_numbers<[1], [0], [0], [1], [0, 0, 1, 1], [], []>} : vector<14x96xf32>, vector<96x84xf32>, vector<14x84xf32> -> vector<14x84xf32>
    %c1_67 = arith.constant 1 : index
    %c0_68 = arith.constant 0 : index
    %c0_69 = arith.constant 0 : index
    %c0_70 = arith.constant 0 : index
    %54 = vector.load %arg3[%c1_67, %c0_68, %c0_69, %c0_70] : memref<5x2x96x84xf32, #tpu.memory_space<vmem>>, vector<1x1x96x84xf32>
    %55 = vector.shape_cast %54 : vector<1x1x96x84xf32> to vector<96x84xf32>
    %cst_71 = arith.constant dense<0.000000e+00> : vector<14x84xf32>
    %56 = tpu.matmul %5, %55, %cst_71 {dimension_numbers = #tpu.dot_dimension_numbers<[1], [0], [0], [1], [0, 0, 1, 1], [], []>} : vector<14x96xf32>, vector<96x84xf32>, vector<14x84xf32> -> vector<14x84xf32>
    %57 = arith.addf %53, %56 : vector<14x84xf32>
    %c2_72 = arith.constant 2 : index
    %c0_73 = arith.constant 0 : index
    %c0_74 = arith.constant 0 : index
    %c0_75 = arith.constant 0 : index
    %58 = vector.load %arg3[%c2_72, %c0_73, %c0_74, %c0_75] : memref<5x2x96x84xf32, #tpu.memory_space<vmem>>, vector<1x1x96x84xf32>
    %59 = vector.shape_cast %58 : vector<1x1x96x84xf32> to vector<96x84xf32>
    %cst_76 = arith.constant dense<0.000000e+00> : vector<14x84xf32>
    %60 = tpu.matmul %7, %59, %cst_76 {dimension_numbers = #tpu.dot_dimension_numbers<[1], [0], [0], [1], [0, 0, 1, 1], [], []>} : vector<14x96xf32>, vector<96x84xf32>, vector<14x84xf32> -> vector<14x84xf32>
    %61 = arith.addf %57, %60 : vector<14x84xf32>
    %c3_77 = arith.constant 3 : index
    %c0_78 = arith.constant 0 : index
    %c0_79 = arith.constant 0 : index
    %c0_80 = arith.constant 0 : index
    %62 = vector.load %arg3[%c3_77, %c0_78, %c0_79, %c0_80] : memref<5x2x96x84xf32, #tpu.memory_space<vmem>>, vector<1x1x96x84xf32>
    %63 = vector.shape_cast %62 : vector<1x1x96x84xf32> to vector<96x84xf32>
    %cst_81 = arith.constant dense<0.000000e+00> : vector<14x84xf32>
    %64 = tpu.matmul %9, %63, %cst_81 {dimension_numbers = #tpu.dot_dimension_numbers<[1], [0], [0], [1], [0, 0, 1, 1], [], []>} : vector<14x96xf32>, vector<96x84xf32>, vector<14x84xf32> -> vector<14x84xf32>
    %65 = arith.addf %61, %64 : vector<14x84xf32>
    %c4_82 = arith.constant 4 : index
    %c0_83 = arith.constant 0 : index
    %c0_84 = arith.constant 0 : index
    %c0_85 = arith.constant 0 : index
    %66 = vector.load %arg3[%c4_82, %c0_83, %c0_84, %c0_85] : memref<5x2x96x84xf32, #tpu.memory_space<vmem>>, vector<1x1x96x84xf32>
    %67 = vector.shape_cast %66 : vector<1x1x96x84xf32> to vector<96x84xf32>
    %cst_86 = arith.constant dense<0.000000e+00> : vector<14x84xf32>
    %68 = tpu.matmul %11, %67, %cst_86 {dimension_numbers = #tpu.dot_dimension_numbers<[1], [0], [0], [1], [0, 0, 1, 1], [], []>} : vector<14x96xf32>, vector<96x84xf32>, vector<14x84xf32> -> vector<14x84xf32>
    %69 = arith.addf %65, %68 : vector<14x84xf32>
    %70 = arith.maximumf %50, %69 : vector<14x84xf32>
    %c0_87 = arith.constant 0 : index
    %c1_88 = arith.constant 1 : index
    %c0_89 = arith.constant 0 : index
    %c0_90 = arith.constant 0 : index
    %71 = vector.load %arg3[%c0_87, %c1_88, %c0_89, %c0_90] : memref<5x2x96x84xf32, #tpu.memory_space<vmem>>, vector<1x1x96x84xf32>
    %72 = vector.shape_cast %71 : vector<1x1x96x84xf32> to vector<96x84xf32>
    %cst_91 = arith.constant dense<0.000000e+00> : vector<14x84xf32>
    %73 = tpu.matmul %3, %72, %cst_91 {dimension_numbers = #tpu.dot_dimension_numbers<[1], [0], [0], [1], [0, 0, 1, 1], [], []>} : vector<14x96xf32>, vector<96x84xf32>, vector<14x84xf32> -> vector<14x84xf32>
    %c1_92 = arith.constant 1 : index
    %c1_93 = arith.constant 1 : index
    %c0_94 = arith.constant 0 : index
    %c0_95 = arith.constant 0 : index
    %74 = vector.load %arg3[%c1_92, %c1_93, %c0_94, %c0_95] : memref<5x2x96x84xf32, #tpu.memory_space<vmem>>, vector<1x1x96x84xf32>
    %75 = vector.shape_cast %74 : vector<1x1x96x84xf32> to vector<96x84xf32>
    %cst_96 = arith.constant dense<0.000000e+00> : vector<14x84xf32>
    %76 = tpu.matmul %5, %75, %cst_96 {dimension_numbers = #tpu.dot_dimension_numbers<[1], [0], [0], [1], [0, 0, 1, 1], [], []>} : vector<14x96xf32>, vector<96x84xf32>, vector<14x84xf32> -> vector<14x84xf32>
    %77 = arith.addf %73, %76 : vector<14x84xf32>
    %c2_97 = arith.constant 2 : index
    %c1_98 = arith.constant 1 : index
    %c0_99 = arith.constant 0 : index
    %c0_100 = arith.constant 0 : index
    %78 = vector.load %arg3[%c2_97, %c1_98, %c0_99, %c0_100] : memref<5x2x96x84xf32, #tpu.memory_space<vmem>>, vector<1x1x96x84xf32>
    %79 = vector.shape_cast %78 : vector<1x1x96x84xf32> to vector<96x84xf32>
    %cst_101 = arith.constant dense<0.000000e+00> : vector<14x84xf32>
    %80 = tpu.matmul %7, %79, %cst_101 {dimension_numbers = #tpu.dot_dimension_numbers<[1], [0], [0], [1], [0, 0, 1, 1], [], []>} : vector<14x96xf32>, vector<96x84xf32>, vector<14x84xf32> -> vector<14x84xf32>
    %81 = arith.addf %77, %80 : vector<14x84xf32>
    %c3_102 = arith.constant 3 : index
    %c1_103 = arith.constant 1 : index
    %c0_104 = arith.constant 0 : index
    %c0_105 = arith.constant 0 : index
    %82 = vector.load %arg3[%c3_102, %c1_103, %c0_104, %c0_105] : memref<5x2x96x84xf32, #tpu.memory_space<vmem>>, vector<1x1x96x84xf32>
    %83 = vector.shape_cast %82 : vector<1x1x96x84xf32> to vector<96x84xf32>
    %cst_106 = arith.constant dense<0.000000e+00> : vector<14x84xf32>
    %84 = tpu.matmul %9, %83, %cst_106 {dimension_numbers = #tpu.dot_dimension_numbers<[1], [0], [0], [1], [0, 0, 1, 1], [], []>} : vector<14x96xf32>, vector<96x84xf32>, vector<14x84xf32> -> vector<14x84xf32>
    %85 = arith.addf %81, %84 : vector<14x84xf32>
    %c4_107 = arith.constant 4 : index
    %c1_108 = arith.constant 1 : index
    %c0_109 = arith.constant 0 : index
    %c0_110 = arith.constant 0 : index
    %86 = vector.load %arg3[%c4_107, %c1_108, %c0_109, %c0_110] : memref<5x2x96x84xf32, #tpu.memory_space<vmem>>, vector<1x1x96x84xf32>
    %87 = vector.shape_cast %86 : vector<1x1x96x84xf32> to vector<96x84xf32>
    %cst_111 = arith.constant dense<0.000000e+00> : vector<14x84xf32>
    %88 = tpu.matmul %11, %87, %cst_111 {dimension_numbers = #tpu.dot_dimension_numbers<[1], [0], [0], [1], [0, 0, 1, 1], [], []>} : vector<14x96xf32>, vector<96x84xf32>, vector<14x84xf32> -> vector<14x84xf32>
    %89 = arith.addf %85, %88 : vector<14x84xf32>
    %90 = arith.maximumf %70, %89 : vector<14x84xf32>
    %c0_112 = arith.constant 0 : index
    %c0_113 = arith.constant 0 : index
    %91 = vector.load %arg4[%c0_112, %c0_113] : memref<1x84xf32, #tpu.memory_space<vmem>>, vector<1x84xf32>
    %92 = vector.broadcast %91 : vector<1x84xf32> to vector<14x84xf32>
    %93 = arith.addf %90, %92 : vector<14x84xf32>
    %cst_114 = arith.constant 0.000000e+00 : f32
    %94 = vector.broadcast %cst_114 : f32 to vector<14x84xf32>
    %95 = arith.maximumf %93, %94 : vector<14x84xf32>
    %c0_115 = arith.constant 0 : index
    %c0_116 = arith.constant 0 : index
    %c0_117 = arith.constant 0 : index
    %96 = vector.load %arg5[%c0_115, %c0_116, %c0_117] : memref<1x14x84xf32, #tpu.memory_space<vmem>>, vector<1x14x84xf32>
    %97 = vector.shape_cast %96 : vector<1x14x84xf32> to vector<14x84xf32>
    %98 = vector.shape_cast %95 : vector<14x84xf32> to vector<1x14x84xf32>
    tpu.vector_store %arg5[%c0_115, %c0_116, %c0_117], %98 {strides = array<i32>} : memref<1x14x84xf32, #tpu.memory_space<vmem>>, vector<1x14x84xf32>,
    return
  }
  func.func @transform_0(%arg0: i32) -> (i32, i32, i32) {
    %c0_i32 = arith.constant 0 : i32
    %c0_i32_0 = arith.constant 0 : i32
    %c0_i32_1 = arith.constant 0 : i32
    return %arg0, %c0_i32, %c0_i32_0 : i32, i32, i32
  }
  func.func @transform_1(%arg0: i32) -> (i32, i32, i32) {
    %c0_i32 = arith.constant 0 : i32
    %c0_i32_0 = arith.constant 0 : i32
    %c0_i32_1 = arith.constant 0 : i32
    return %arg0, %c0_i32, %c0_i32_0 : i32, i32, i32
  }
  func.func @transform_2(%arg0: i32) -> (i32, i32, i32, i32) {
    %c0_i32 = arith.constant 0 : i32
    %c0_i32_0 = arith.constant 0 : i32
    %c0_i32_1 = arith.constant 0 : i32
    %c0_i32_2 = arith.constant 0 : i32
    %c0_i32_3 = arith.constant 0 : i32
    return %c0_i32, %c0_i32_0, %c0_i32_1, %c0_i32_2 : i32, i32, i32, i32
  }
  func.func @transform_3(%arg0: i32) -> (i32, i32) {
    %c0_i32 = arith.constant 0 : i32
    %c0_i32_0 = arith.constant 0 : i32
    %c0_i32_1 = arith.constant 0 : i32
    return %c0_i32, %c0_i32_0 : i32, i32
  }
  func.func @transform_4(%arg0: i32) -> (i32, i32, i32) {
    %c0_i32 = arith.constant 0 : i32
    %c0_i32_0 = arith.constant 0 : i32
    %c0_i32_1 = arith.constant 0 : i32
    return %arg0, %c0_i32, %c0_i32_0 : i32, i32, i32
  }
}

module attributes {stable_mosaic.version = 11 : i64} {
  func.func @_conv_relu_pool_kernel(%arg0: i32, %arg1: memref<1x7x84xf32, #tpu.memory_space<vmem>>, %arg2: memref<1x7x84xf32, #tpu.memory_space<vmem>>, %arg3: memref<5x2x84x80xf32, #tpu.memory_space<vmem>>, %arg4: memref<1x80xf32, #tpu.memory_space<vmem>>, %arg5: memref<1x5x80xf32, #tpu.memory_space<vmem>>) attributes {dimension_semantics = [#tpu.dimension_semantics<parallel>], iteration_bounds = array<i64: 2>, scalar_prefetch = 0 : i64, scratch_operands = 0 : i64, tpu.core_type = #tpu.core_type<tc>, window_params = [{transform_indices = @transform_0, window_bounds = array<i64: 1, 7, 84>}, {transform_indices = @transform_1, window_bounds = array<i64: 1, 7, 84>}, {pipeline_mode = #tpu.pipeline_mode<synchronous>, transform_indices = @transform_2, window_bounds = array<i64: 5, 2, 84, 80>}, {pipeline_mode = #tpu.pipeline_mode<synchronous>, transform_indices = @transform_3, window_bounds = array<i64: 1, 80>}, {transform_indices = @transform_4, window_bounds = array<i64: 1, 5, 80>}]} {
    %c0 = arith.constant 0 : index
    %c0_0 = arith.constant 0 : index
    %c0_1 = arith.constant 0 : index
    %0 = vector.load %arg1[%c0, %c0_0, %c0_1] : memref<1x7x84xf32, #tpu.memory_space<vmem>>, vector<1x5x84xf32>
    %1 = vector.shape_cast %0 : vector<1x5x84xf32> to vector<5x84xf32>
    %c0_2 = arith.constant 0 : index
    %c0_3 = arith.constant 0 : index
    %c0_4 = arith.constant 0 : index
    %2 = vector.load %arg2[%c0_2, %c0_3, %c0_4] : memref<1x7x84xf32, #tpu.memory_space<vmem>>, vector<1x5x84xf32>
    %3 = vector.shape_cast %2 : vector<1x5x84xf32> to vector<5x84xf32>
    %c0_5 = arith.constant 0 : index
    %c1 = arith.constant 1 : index
    %c0_6 = arith.constant 0 : index
    %4 = vector.load %arg1[%c0_5, %c1, %c0_6] : memref<1x7x84xf32, #tpu.memory_space<vmem>>, vector<1x5x84xf32>
    %5 = vector.shape_cast %4 : vector<1x5x84xf32> to vector<5x84xf32>
    %c0_7 = arith.constant 0 : index
    %c1_8 = arith.constant 1 : index
    %c0_9 = arith.constant 0 : index
    %6 = vector.load %arg2[%c0_7, %c1_8, %c0_9] : memref<1x7x84xf32, #tpu.memory_space<vmem>>, vector<1x5x84xf32>
    %7 = vector.shape_cast %6 : vector<1x5x84xf32> to vector<5x84xf32>
    %c0_10 = arith.constant 0 : index
    %c2 = arith.constant 2 : index
    %c0_11 = arith.constant 0 : index
    %8 = vector.load %arg1[%c0_10, %c2, %c0_11] : memref<1x7x84xf32, #tpu.memory_space<vmem>>, vector<1x5x84xf32>
    %9 = vector.shape_cast %8 : vector<1x5x84xf32> to vector<5x84xf32>
    %c0_12 = arith.constant 0 : index
    %c2_13 = arith.constant 2 : index
    %c0_14 = arith.constant 0 : index
    %10 = vector.load %arg2[%c0_12, %c2_13, %c0_14] : memref<1x7x84xf32, #tpu.memory_space<vmem>>, vector<1x5x84xf32>
    %11 = vector.shape_cast %10 : vector<1x5x84xf32> to vector<5x84xf32>
    %c0_15 = arith.constant 0 : index
    %c0_16 = arith.constant 0 : index
    %c0_17 = arith.constant 0 : index
    %c0_18 = arith.constant 0 : index
    %12 = vector.load %arg3[%c0_15, %c0_16, %c0_17, %c0_18] : memref<5x2x84x80xf32, #tpu.memory_space<vmem>>, vector<1x1x84x80xf32>
    %13 = vector.shape_cast %12 : vector<1x1x84x80xf32> to vector<84x80xf32>
    %cst = arith.constant dense<0.000000e+00> : vector<5x80xf32>
    %14 = tpu.matmul %1, %13, %cst {dimension_numbers = #tpu.dot_dimension_numbers<[1], [0], [0], [1], [0, 0, 1, 1], [], []>} : vector<5x84xf32>, vector<84x80xf32>, vector<5x80xf32> -> vector<5x80xf32>
    %c1_19 = arith.constant 1 : index
    %c0_20 = arith.constant 0 : index
    %c0_21 = arith.constant 0 : index
    %c0_22 = arith.constant 0 : index
    %15 = vector.load %arg3[%c1_19, %c0_20, %c0_21, %c0_22] : memref<5x2x84x80xf32, #tpu.memory_space<vmem>>, vector<1x1x84x80xf32>
    %16 = vector.shape_cast %15 : vector<1x1x84x80xf32> to vector<84x80xf32>
    %cst_23 = arith.constant dense<0.000000e+00> : vector<5x80xf32>
    %17 = tpu.matmul %3, %16, %cst_23 {dimension_numbers = #tpu.dot_dimension_numbers<[1], [0], [0], [1], [0, 0, 1, 1], [], []>} : vector<5x84xf32>, vector<84x80xf32>, vector<5x80xf32> -> vector<5x80xf32>
    %18 = arith.addf %14, %17 : vector<5x80xf32>
    %c2_24 = arith.constant 2 : index
    %c0_25 = arith.constant 0 : index
    %c0_26 = arith.constant 0 : index
    %c0_27 = arith.constant 0 : index
    %19 = vector.load %arg3[%c2_24, %c0_25, %c0_26, %c0_27] : memref<5x2x84x80xf32, #tpu.memory_space<vmem>>, vector<1x1x84x80xf32>
    %20 = vector.shape_cast %19 : vector<1x1x84x80xf32> to vector<84x80xf32>
    %cst_28 = arith.constant dense<0.000000e+00> : vector<5x80xf32>
    %21 = tpu.matmul %5, %20, %cst_28 {dimension_numbers = #tpu.dot_dimension_numbers<[1], [0], [0], [1], [0, 0, 1, 1], [], []>} : vector<5x84xf32>, vector<84x80xf32>, vector<5x80xf32> -> vector<5x80xf32>
    %22 = arith.addf %18, %21 : vector<5x80xf32>
    %c3 = arith.constant 3 : index
    %c0_29 = arith.constant 0 : index
    %c0_30 = arith.constant 0 : index
    %c0_31 = arith.constant 0 : index
    %23 = vector.load %arg3[%c3, %c0_29, %c0_30, %c0_31] : memref<5x2x84x80xf32, #tpu.memory_space<vmem>>, vector<1x1x84x80xf32>
    %24 = vector.shape_cast %23 : vector<1x1x84x80xf32> to vector<84x80xf32>
    %cst_32 = arith.constant dense<0.000000e+00> : vector<5x80xf32>
    %25 = tpu.matmul %7, %24, %cst_32 {dimension_numbers = #tpu.dot_dimension_numbers<[1], [0], [0], [1], [0, 0, 1, 1], [], []>} : vector<5x84xf32>, vector<84x80xf32>, vector<5x80xf32> -> vector<5x80xf32>
    %26 = arith.addf %22, %25 : vector<5x80xf32>
    %c4 = arith.constant 4 : index
    %c0_33 = arith.constant 0 : index
    %c0_34 = arith.constant 0 : index
    %c0_35 = arith.constant 0 : index
    %27 = vector.load %arg3[%c4, %c0_33, %c0_34, %c0_35] : memref<5x2x84x80xf32, #tpu.memory_space<vmem>>, vector<1x1x84x80xf32>
    %28 = vector.shape_cast %27 : vector<1x1x84x80xf32> to vector<84x80xf32>
    %cst_36 = arith.constant dense<0.000000e+00> : vector<5x80xf32>
    %29 = tpu.matmul %9, %28, %cst_36 {dimension_numbers = #tpu.dot_dimension_numbers<[1], [0], [0], [1], [0, 0, 1, 1], [], []>} : vector<5x84xf32>, vector<84x80xf32>, vector<5x80xf32> -> vector<5x80xf32>
    %30 = arith.addf %26, %29 : vector<5x80xf32>
    %c0_37 = arith.constant 0 : index
    %c1_38 = arith.constant 1 : index
    %c0_39 = arith.constant 0 : index
    %c0_40 = arith.constant 0 : index
    %31 = vector.load %arg3[%c0_37, %c1_38, %c0_39, %c0_40] : memref<5x2x84x80xf32, #tpu.memory_space<vmem>>, vector<1x1x84x80xf32>
    %32 = vector.shape_cast %31 : vector<1x1x84x80xf32> to vector<84x80xf32>
    %cst_41 = arith.constant dense<0.000000e+00> : vector<5x80xf32>
    %33 = tpu.matmul %1, %32, %cst_41 {dimension_numbers = #tpu.dot_dimension_numbers<[1], [0], [0], [1], [0, 0, 1, 1], [], []>} : vector<5x84xf32>, vector<84x80xf32>, vector<5x80xf32> -> vector<5x80xf32>
    %c1_42 = arith.constant 1 : index
    %c1_43 = arith.constant 1 : index
    %c0_44 = arith.constant 0 : index
    %c0_45 = arith.constant 0 : index
    %34 = vector.load %arg3[%c1_42, %c1_43, %c0_44, %c0_45] : memref<5x2x84x80xf32, #tpu.memory_space<vmem>>, vector<1x1x84x80xf32>
    %35 = vector.shape_cast %34 : vector<1x1x84x80xf32> to vector<84x80xf32>
    %cst_46 = arith.constant dense<0.000000e+00> : vector<5x80xf32>
    %36 = tpu.matmul %3, %35, %cst_46 {dimension_numbers = #tpu.dot_dimension_numbers<[1], [0], [0], [1], [0, 0, 1, 1], [], []>} : vector<5x84xf32>, vector<84x80xf32>, vector<5x80xf32> -> vector<5x80xf32>
    %37 = arith.addf %33, %36 : vector<5x80xf32>
    %c2_47 = arith.constant 2 : index
    %c1_48 = arith.constant 1 : index
    %c0_49 = arith.constant 0 : index
    %c0_50 = arith.constant 0 : index
    %38 = vector.load %arg3[%c2_47, %c1_48, %c0_49, %c0_50] : memref<5x2x84x80xf32, #tpu.memory_space<vmem>>, vector<1x1x84x80xf32>
    %39 = vector.shape_cast %38 : vector<1x1x84x80xf32> to vector<84x80xf32>
    %cst_51 = arith.constant dense<0.000000e+00> : vector<5x80xf32>
    %40 = tpu.matmul %5, %39, %cst_51 {dimension_numbers = #tpu.dot_dimension_numbers<[1], [0], [0], [1], [0, 0, 1, 1], [], []>} : vector<5x84xf32>, vector<84x80xf32>, vector<5x80xf32> -> vector<5x80xf32>
    %41 = arith.addf %37, %40 : vector<5x80xf32>
    %c3_52 = arith.constant 3 : index
    %c1_53 = arith.constant 1 : index
    %c0_54 = arith.constant 0 : index
    %c0_55 = arith.constant 0 : index
    %42 = vector.load %arg3[%c3_52, %c1_53, %c0_54, %c0_55] : memref<5x2x84x80xf32, #tpu.memory_space<vmem>>, vector<1x1x84x80xf32>
    %43 = vector.shape_cast %42 : vector<1x1x84x80xf32> to vector<84x80xf32>
    %cst_56 = arith.constant dense<0.000000e+00> : vector<5x80xf32>
    %44 = tpu.matmul %7, %43, %cst_56 {dimension_numbers = #tpu.dot_dimension_numbers<[1], [0], [0], [1], [0, 0, 1, 1], [], []>} : vector<5x84xf32>, vector<84x80xf32>, vector<5x80xf32> -> vector<5x80xf32>
    %45 = arith.addf %41, %44 : vector<5x80xf32>
    %c4_57 = arith.constant 4 : index
    %c1_58 = arith.constant 1 : index
    %c0_59 = arith.constant 0 : index
    %c0_60 = arith.constant 0 : index
    %46 = vector.load %arg3[%c4_57, %c1_58, %c0_59, %c0_60] : memref<5x2x84x80xf32, #tpu.memory_space<vmem>>, vector<1x1x84x80xf32>
    %47 = vector.shape_cast %46 : vector<1x1x84x80xf32> to vector<84x80xf32>
    %cst_61 = arith.constant dense<0.000000e+00> : vector<5x80xf32>
    %48 = tpu.matmul %9, %47, %cst_61 {dimension_numbers = #tpu.dot_dimension_numbers<[1], [0], [0], [1], [0, 0, 1, 1], [], []>} : vector<5x84xf32>, vector<84x80xf32>, vector<5x80xf32> -> vector<5x80xf32>
    %49 = arith.addf %45, %48 : vector<5x80xf32>
    %50 = arith.maximumf %30, %49 : vector<5x80xf32>
    %c0_62 = arith.constant 0 : index
    %c0_63 = arith.constant 0 : index
    %c0_64 = arith.constant 0 : index
    %c0_65 = arith.constant 0 : index
    %51 = vector.load %arg3[%c0_62, %c0_63, %c0_64, %c0_65] : memref<5x2x84x80xf32, #tpu.memory_space<vmem>>, vector<1x1x84x80xf32>
    %52 = vector.shape_cast %51 : vector<1x1x84x80xf32> to vector<84x80xf32>
    %cst_66 = arith.constant dense<0.000000e+00> : vector<5x80xf32>
    %53 = tpu.matmul %3, %52, %cst_66 {dimension_numbers = #tpu.dot_dimension_numbers<[1], [0], [0], [1], [0, 0, 1, 1], [], []>} : vector<5x84xf32>, vector<84x80xf32>, vector<5x80xf32> -> vector<5x80xf32>
    %c1_67 = arith.constant 1 : index
    %c0_68 = arith.constant 0 : index
    %c0_69 = arith.constant 0 : index
    %c0_70 = arith.constant 0 : index
    %54 = vector.load %arg3[%c1_67, %c0_68, %c0_69, %c0_70] : memref<5x2x84x80xf32, #tpu.memory_space<vmem>>, vector<1x1x84x80xf32>
    %55 = vector.shape_cast %54 : vector<1x1x84x80xf32> to vector<84x80xf32>
    %cst_71 = arith.constant dense<0.000000e+00> : vector<5x80xf32>
    %56 = tpu.matmul %5, %55, %cst_71 {dimension_numbers = #tpu.dot_dimension_numbers<[1], [0], [0], [1], [0, 0, 1, 1], [], []>} : vector<5x84xf32>, vector<84x80xf32>, vector<5x80xf32> -> vector<5x80xf32>
    %57 = arith.addf %53, %56 : vector<5x80xf32>
    %c2_72 = arith.constant 2 : index
    %c0_73 = arith.constant 0 : index
    %c0_74 = arith.constant 0 : index
    %c0_75 = arith.constant 0 : index
    %58 = vector.load %arg3[%c2_72, %c0_73, %c0_74, %c0_75] : memref<5x2x84x80xf32, #tpu.memory_space<vmem>>, vector<1x1x84x80xf32>
    %59 = vector.shape_cast %58 : vector<1x1x84x80xf32> to vector<84x80xf32>
    %cst_76 = arith.constant dense<0.000000e+00> : vector<5x80xf32>
    %60 = tpu.matmul %7, %59, %cst_76 {dimension_numbers = #tpu.dot_dimension_numbers<[1], [0], [0], [1], [0, 0, 1, 1], [], []>} : vector<5x84xf32>, vector<84x80xf32>, vector<5x80xf32> -> vector<5x80xf32>
    %61 = arith.addf %57, %60 : vector<5x80xf32>
    %c3_77 = arith.constant 3 : index
    %c0_78 = arith.constant 0 : index
    %c0_79 = arith.constant 0 : index
    %c0_80 = arith.constant 0 : index
    %62 = vector.load %arg3[%c3_77, %c0_78, %c0_79, %c0_80] : memref<5x2x84x80xf32, #tpu.memory_space<vmem>>, vector<1x1x84x80xf32>
    %63 = vector.shape_cast %62 : vector<1x1x84x80xf32> to vector<84x80xf32>
    %cst_81 = arith.constant dense<0.000000e+00> : vector<5x80xf32>
    %64 = tpu.matmul %9, %63, %cst_81 {dimension_numbers = #tpu.dot_dimension_numbers<[1], [0], [0], [1], [0, 0, 1, 1], [], []>} : vector<5x84xf32>, vector<84x80xf32>, vector<5x80xf32> -> vector<5x80xf32>
    %65 = arith.addf %61, %64 : vector<5x80xf32>
    %c4_82 = arith.constant 4 : index
    %c0_83 = arith.constant 0 : index
    %c0_84 = arith.constant 0 : index
    %c0_85 = arith.constant 0 : index
    %66 = vector.load %arg3[%c4_82, %c0_83, %c0_84, %c0_85] : memref<5x2x84x80xf32, #tpu.memory_space<vmem>>, vector<1x1x84x80xf32>
    %67 = vector.shape_cast %66 : vector<1x1x84x80xf32> to vector<84x80xf32>
    %cst_86 = arith.constant dense<0.000000e+00> : vector<5x80xf32>
    %68 = tpu.matmul %11, %67, %cst_86 {dimension_numbers = #tpu.dot_dimension_numbers<[1], [0], [0], [1], [0, 0, 1, 1], [], []>} : vector<5x84xf32>, vector<84x80xf32>, vector<5x80xf32> -> vector<5x80xf32>
    %69 = arith.addf %65, %68 : vector<5x80xf32>
    %70 = arith.maximumf %50, %69 : vector<5x80xf32>
    %c0_87 = arith.constant 0 : index
    %c1_88 = arith.constant 1 : index
    %c0_89 = arith.constant 0 : index
    %c0_90 = arith.constant 0 : index
    %71 = vector.load %arg3[%c0_87, %c1_88, %c0_89, %c0_90] : memref<5x2x84x80xf32, #tpu.memory_space<vmem>>, vector<1x1x84x80xf32>
    %72 = vector.shape_cast %71 : vector<1x1x84x80xf32> to vector<84x80xf32>
    %cst_91 = arith.constant dense<0.000000e+00> : vector<5x80xf32>
    %73 = tpu.matmul %3, %72, %cst_91 {dimension_numbers = #tpu.dot_dimension_numbers<[1], [0], [0], [1], [0, 0, 1, 1], [], []>} : vector<5x84xf32>, vector<84x80xf32>, vector<5x80xf32> -> vector<5x80xf32>
    %c1_92 = arith.constant 1 : index
    %c1_93 = arith.constant 1 : index
    %c0_94 = arith.constant 0 : index
    %c0_95 = arith.constant 0 : index
    %74 = vector.load %arg3[%c1_92, %c1_93, %c0_94, %c0_95] : memref<5x2x84x80xf32, #tpu.memory_space<vmem>>, vector<1x1x84x80xf32>
    %75 = vector.shape_cast %74 : vector<1x1x84x80xf32> to vector<84x80xf32>
    %cst_96 = arith.constant dense<0.000000e+00> : vector<5x80xf32>
    %76 = tpu.matmul %5, %75, %cst_96 {dimension_numbers = #tpu.dot_dimension_numbers<[1], [0], [0], [1], [0, 0, 1, 1], [], []>} : vector<5x84xf32>, vector<84x80xf32>, vector<5x80xf32> -> vector<5x80xf32>
    %77 = arith.addf %73, %76 : vector<5x80xf32>
    %c2_97 = arith.constant 2 : index
    %c1_98 = arith.constant 1 : index
    %c0_99 = arith.constant 0 : index
    %c0_100 = arith.constant 0 : index
    %78 = vector.load %arg3[%c2_97, %c1_98, %c0_99, %c0_100] : memref<5x2x84x80xf32, #tpu.memory_space<vmem>>, vector<1x1x84x80xf32>
    %79 = vector.shape_cast %78 : vector<1x1x84x80xf32> to vector<84x80xf32>
    %cst_101 = arith.constant dense<0.000000e+00> : vector<5x80xf32>
    %80 = tpu.matmul %7, %79, %cst_101 {dimension_numbers = #tpu.dot_dimension_numbers<[1], [0], [0], [1], [0, 0, 1, 1], [], []>} : vector<5x84xf32>, vector<84x80xf32>, vector<5x80xf32> -> vector<5x80xf32>
    %81 = arith.addf %77, %80 : vector<5x80xf32>
    %c3_102 = arith.constant 3 : index
    %c1_103 = arith.constant 1 : index
    %c0_104 = arith.constant 0 : index
    %c0_105 = arith.constant 0 : index
    %82 = vector.load %arg3[%c3_102, %c1_103, %c0_104, %c0_105] : memref<5x2x84x80xf32, #tpu.memory_space<vmem>>, vector<1x1x84x80xf32>
    %83 = vector.shape_cast %82 : vector<1x1x84x80xf32> to vector<84x80xf32>
    %cst_106 = arith.constant dense<0.000000e+00> : vector<5x80xf32>
    %84 = tpu.matmul %9, %83, %cst_106 {dimension_numbers = #tpu.dot_dimension_numbers<[1], [0], [0], [1], [0, 0, 1, 1], [], []>} : vector<5x84xf32>, vector<84x80xf32>, vector<5x80xf32> -> vector<5x80xf32>
    %85 = arith.addf %81, %84 : vector<5x80xf32>
    %c4_107 = arith.constant 4 : index
    %c1_108 = arith.constant 1 : index
    %c0_109 = arith.constant 0 : index
    %c0_110 = arith.constant 0 : index
    %86 = vector.load %arg3[%c4_107, %c1_108, %c0_109, %c0_110] : memref<5x2x84x80xf32, #tpu.memory_space<vmem>>, vector<1x1x84x80xf32>
    %87 = vector.shape_cast %86 : vector<1x1x84x80xf32> to vector<84x80xf32>
    %cst_111 = arith.constant dense<0.000000e+00> : vector<5x80xf32>
    %88 = tpu.matmul %11, %87, %cst_111 {dimension_numbers = #tpu.dot_dimension_numbers<[1], [0], [0], [1], [0, 0, 1, 1], [], []>} : vector<5x84xf32>, vector<84x80xf32>, vector<5x80xf32> -> vector<5x80xf32>
    %89 = arith.addf %85, %88 : vector<5x80xf32>
    %90 = arith.maximumf %70, %89 : vector<5x80xf32>
    %c0_112 = arith.constant 0 : index
    %c0_113 = arith.constant 0 : index
    %91 = vector.load %arg4[%c0_112, %c0_113] : memref<1x80xf32, #tpu.memory_space<vmem>>, vector<1x80xf32>
    %92 = vector.broadcast %91 : vector<1x80xf32> to vector<5x80xf32>
    %93 = arith.addf %90, %92 : vector<5x80xf32>
    %cst_114 = arith.constant 0.000000e+00 : f32
    %94 = vector.broadcast %cst_114 : f32 to vector<5x80xf32>
    %95 = arith.maximumf %93, %94 : vector<5x80xf32>
    %c0_115 = arith.constant 0 : index
    %c0_116 = arith.constant 0 : index
    %c0_117 = arith.constant 0 : index
    %96 = vector.load %arg5[%c0_115, %c0_116, %c0_117] : memref<1x5x80xf32, #tpu.memory_space<vmem>>, vector<1x5x80xf32>
    %97 = vector.shape_cast %96 : vector<1x5x80xf32> to vector<5x80xf32>
    %98 = vector.shape_cast %95 : vector<5x80xf32> to vector<1x5x80xf32>
    tpu.vector_store %arg5[%c0_115, %c0_116, %c0_117], %98 {strides = array<i32>} : memref<1x5x80xf32, #tpu.memory_space<vmem>>, vector<1x5x80xf32>,
    return
  }
  func.func @transform_0(%arg0: i32) -> (i32, i32, i32) {
    %c0_i32 = arith.constant 0 : i32
    %c0_i32_0 = arith.constant 0 : i32
    %c0_i32_1 = arith.constant 0 : i32
    return %arg0, %c0_i32, %c0_i32_0 : i32, i32, i32
  }
  func.func @transform_1(%arg0: i32) -> (i32, i32, i32) {
    %c0_i32 = arith.constant 0 : i32
    %c0_i32_0 = arith.constant 0 : i32
    %c0_i32_1 = arith.constant 0 : i32
    return %arg0, %c0_i32, %c0_i32_0 : i32, i32, i32
  }
  func.func @transform_2(%arg0: i32) -> (i32, i32, i32, i32) {
    %c0_i32 = arith.constant 0 : i32
    %c0_i32_0 = arith.constant 0 : i32
    %c0_i32_1 = arith.constant 0 : i32
    %c0_i32_2 = arith.constant 0 : i32
    %c0_i32_3 = arith.constant 0 : i32
    return %c0_i32, %c0_i32_0, %c0_i32_1, %c0_i32_2 : i32, i32, i32, i32
  }
  func.func @transform_3(%arg0: i32) -> (i32, i32) {
    %c0_i32 = arith.constant 0 : i32
    %c0_i32_0 = arith.constant 0 : i32
    %c0_i32_1 = arith.constant 0 : i32
    return %c0_i32, %c0_i32_0 : i32, i32
  }
  func.func @transform_4(%arg0: i32) -> (i32, i32, i32) {
    %c0_i32 = arith.constant 0 : i32
    %c0_i32_0 = arith.constant 0 : i32
    %c0_i32_1 = arith.constant 0 : i32
    return %arg0, %c0_i32, %c0_i32_0 : i32, i32, i32
  }
}

module attributes {stable_mosaic.version = 11 : i64} {
  func.func @_mlp_kernel(%arg0: i32, %arg1: memref<8x400xf32, #tpu.memory_space<vmem>>, %arg2: memref<400x120xf32, #tpu.memory_space<vmem>>, %arg3: memref<1x120xf32, #tpu.memory_space<vmem>>, %arg4: memref<120x84xf32, #tpu.memory_space<vmem>>, %arg5: memref<1x84xf32, #tpu.memory_space<vmem>>, %arg6: memref<84x10xf32, #tpu.memory_space<vmem>>, %arg7: memref<1x10xf32, #tpu.memory_space<vmem>>, %arg8: memref<8x10xf32, #tpu.memory_space<vmem>>) attributes {dimension_semantics = [#tpu.dimension_semantics<parallel>], iteration_bounds = array<i64: 1>, scalar_prefetch = 0 : i64, scratch_operands = 0 : i64, tpu.core_type = #tpu.core_type<tc>, window_params = [{transform_indices = @transform_0, window_bounds = array<i64: 8, 400>}, {pipeline_mode = #tpu.pipeline_mode<synchronous>, transform_indices = @transform_1, window_bounds = array<i64: 400, 120>}, {pipeline_mode = #tpu.pipeline_mode<synchronous>, transform_indices = @transform_2, window_bounds = array<i64: 1, 120>}, {pipeline_mode = #tpu.pipeline_mode<synchronous>, transform_indices = @transform_3, window_bounds = array<i64: 120, 84>}, {pipeline_mode = #tpu.pipeline_mode<synchronous>, transform_indices = @transform_4, window_bounds = array<i64: 1, 84>}, {pipeline_mode = #tpu.pipeline_mode<synchronous>, transform_indices = @transform_5, window_bounds = array<i64: 84, 10>}, {pipeline_mode = #tpu.pipeline_mode<synchronous>, transform_indices = @transform_6, window_bounds = array<i64: 1, 10>}, {transform_indices = @transform_7, window_bounds = array<i64: 8, 10>}]} {
    %c0 = arith.constant 0 : index
    %c0_0 = arith.constant 0 : index
    %0 = vector.load %arg1[%c0, %c0_0] : memref<8x400xf32, #tpu.memory_space<vmem>>, vector<8x400xf32>
    %c0_1 = arith.constant 0 : index
    %c0_2 = arith.constant 0 : index
    %1 = vector.load %arg2[%c0_1, %c0_2] : memref<400x120xf32, #tpu.memory_space<vmem>>, vector<400x120xf32>
    %cst = arith.constant dense<0.000000e+00> : vector<8x120xf32>
    %2 = tpu.matmul %0, %1, %cst {dimension_numbers = #tpu.dot_dimension_numbers<[1], [0], [0], [1], [0, 0, 1, 1], [], []>} : vector<8x400xf32>, vector<400x120xf32>, vector<8x120xf32> -> vector<8x120xf32>
    %c0_3 = arith.constant 0 : index
    %c0_4 = arith.constant 0 : index
    %3 = vector.load %arg3[%c0_3, %c0_4] : memref<1x120xf32, #tpu.memory_space<vmem>>, vector<1x120xf32>
    %4 = vector.broadcast %3 : vector<1x120xf32> to vector<8x120xf32>
    %5 = arith.addf %2, %4 : vector<8x120xf32>
    %cst_5 = arith.constant 0.000000e+00 : f32
    %6 = vector.broadcast %cst_5 : f32 to vector<8x120xf32>
    %7 = arith.maximumf %5, %6 : vector<8x120xf32>
    %c0_6 = arith.constant 0 : index
    %c0_7 = arith.constant 0 : index
    %8 = vector.load %arg4[%c0_6, %c0_7] : memref<120x84xf32, #tpu.memory_space<vmem>>, vector<120x84xf32>
    %cst_8 = arith.constant dense<0.000000e+00> : vector<8x84xf32>
    %9 = tpu.matmul %7, %8, %cst_8 {dimension_numbers = #tpu.dot_dimension_numbers<[1], [0], [0], [1], [0, 0, 1, 1], [], []>} : vector<8x120xf32>, vector<120x84xf32>, vector<8x84xf32> -> vector<8x84xf32>
    %c0_9 = arith.constant 0 : index
    %c0_10 = arith.constant 0 : index
    %10 = vector.load %arg5[%c0_9, %c0_10] : memref<1x84xf32, #tpu.memory_space<vmem>>, vector<1x84xf32>
    %11 = vector.broadcast %10 : vector<1x84xf32> to vector<8x84xf32>
    %12 = arith.addf %9, %11 : vector<8x84xf32>
    %cst_11 = arith.constant 0.000000e+00 : f32
    %13 = vector.broadcast %cst_11 : f32 to vector<8x84xf32>
    %14 = arith.maximumf %12, %13 : vector<8x84xf32>
    %c0_12 = arith.constant 0 : index
    %c0_13 = arith.constant 0 : index
    %15 = vector.load %arg6[%c0_12, %c0_13] : memref<84x10xf32, #tpu.memory_space<vmem>>, vector<84x10xf32>
    %cst_14 = arith.constant dense<0.000000e+00> : vector<8x10xf32>
    %16 = tpu.matmul %14, %15, %cst_14 {dimension_numbers = #tpu.dot_dimension_numbers<[1], [0], [0], [1], [0, 0, 1, 1], [], []>} : vector<8x84xf32>, vector<84x10xf32>, vector<8x10xf32> -> vector<8x10xf32>
    %c0_15 = arith.constant 0 : index
    %c0_16 = arith.constant 0 : index
    %17 = vector.load %arg7[%c0_15, %c0_16] : memref<1x10xf32, #tpu.memory_space<vmem>>, vector<1x10xf32>
    %18 = vector.broadcast %17 : vector<1x10xf32> to vector<8x10xf32>
    %19 = arith.addf %16, %18 : vector<8x10xf32>
    %c0_17 = arith.constant 0 : index
    %c0_18 = arith.constant 0 : index
    %20 = vector.load %arg8[%c0_17, %c0_18] : memref<8x10xf32, #tpu.memory_space<vmem>>, vector<8x10xf32>
    tpu.vector_store %arg8[%c0_17, %c0_18], %19 {strides = array<i32>} : memref<8x10xf32, #tpu.memory_space<vmem>>, vector<8x10xf32>,
    return
  }
  func.func @transform_0(%arg0: i32) -> (i32, i32) {
    %c0_i32 = arith.constant 0 : i32
    %c0_i32_0 = arith.constant 0 : i32
    return %arg0, %c0_i32 : i32, i32
  }
  func.func @transform_1(%arg0: i32) -> (i32, i32) {
    %c0_i32 = arith.constant 0 : i32
    %c0_i32_0 = arith.constant 0 : i32
    %c0_i32_1 = arith.constant 0 : i32
    return %c0_i32, %c0_i32_0 : i32, i32
  }
  func.func @transform_2(%arg0: i32) -> (i32, i32) {
    %c0_i32 = arith.constant 0 : i32
    %c0_i32_0 = arith.constant 0 : i32
    %c0_i32_1 = arith.constant 0 : i32
    return %c0_i32, %c0_i32_0 : i32, i32
  }
  func.func @transform_3(%arg0: i32) -> (i32, i32) {
    %c0_i32 = arith.constant 0 : i32
    %c0_i32_0 = arith.constant 0 : i32
    %c0_i32_1 = arith.constant 0 : i32
    return %c0_i32, %c0_i32_0 : i32, i32
  }
  func.func @transform_4(%arg0: i32) -> (i32, i32) {
    %c0_i32 = arith.constant 0 : i32
    %c0_i32_0 = arith.constant 0 : i32
    %c0_i32_1 = arith.constant 0 : i32
    return %c0_i32, %c0_i32_0 : i32, i32
  }
  func.func @transform_5(%arg0: i32) -> (i32, i32) {
    %c0_i32 = arith.constant 0 : i32
    %c0_i32_0 = arith.constant 0 : i32
    %c0_i32_1 = arith.constant 0 : i32
    return %c0_i32, %c0_i32_0 : i32, i32
  }
  func.func @transform_6(%arg0: i32) -> (i32, i32) {
    %c0_i32 = arith.constant 0 : i32
    %c0_i32_0 = arith.constant 0 : i32
    %c0_i32_1 = arith.constant 0 : i32
    return %c0_i32, %c0_i32_0 : i32, i32
  }
  func.func @transform_7(%arg0: i32) -> (i32, i32) {
    %c0_i32 = arith.constant 0 : i32
    %c0_i32_0 = arith.constant 0 : i32
    return %arg0, %c0_i32 : i32, i32
  }
}

</mosaic_0001>

<llo_original>
// kernel: net_forward.3
$region0: #{net_forward.3}
  #allocation0 [shape = 'u32[]', space=smem, size = 0x4, offset = 0x4, fixed_abs, tag = 'smem constant byte address 0x4 - core index']
  #allocation1 [shape = 'u32[144,128]{1,0:T(1,128)}', space=vmem, size = 0x12000, scoped, tag = 'internal scratch']
  %s0 = inlined_call_operand.vmem [shape: f32[2,16,96], index: 0, kind: input, shape index: {}]
  %s1 = inlined_call_operand.vmem [shape: f32[2,16,96], index: 1, kind: input, shape index: {}]
  %s2 = inlined_call_operand.vmem [shape: f32[5,2,96,84], index: 2, kind: input, shape index: {}]
  %s3 = inlined_call_operand.vmem [shape: f32[1,84], index: 3, kind: input, shape index: {}]
  %s4 = inlined_call_operand.vmem [shape: f32[2,14,84], index: 4, kind: output, shape index: {}]
  %s5 = sld [smem:[#allocation0]]
  $region49: #{net_forward.3} parent=0
    _
  %s7 = ssub.s32 1, %s5
  %s8 = scalar_select 0, %s7, %s5
  loop: start=0, step=1, limit=4
  $region2: #{net_forward.3} parent=0 // loop_pre_header
    _
  $region3: #{net_forward.3} parent=0 // loop_header
    %s10 = sphi 0, %s14
    %p11 = scmp.ge.s32.totalorder %s10, 4
    %s20 = sphi 0, %s22
    %s23 = sphi 0, %s20
    %s24 = sphi 0, %s23
    %s40 = sphi 0, %s24
    %s46 = sphi 0, %s48
    %s49 = sphi 0, %s46
    %s50 = sphi 0, %s49
    %s66 = sphi 0, %s50
    %s70 = sphi 0, %s70
    %s72 = sphi 0, %s70
    %s73 = sphi 0, %s72
    %s87 = sphi 0, %s73
    %s91 = sphi 0, %s91
    %s93 = sphi 0, %s91
    %s94 = sphi 0, %s93
    %s108 = sphi 0, %s94
    %s114 = sphi 0, %s116
    %s117 = sphi 0, %s114
    %s118 = sphi 0, %s117
    %s134 = sphi 0, %s118
  $region4: #{net_forward.3} parent=0 // loop_header_branch
    %13 = sbr.rel (%p11) target = $region8
  $region5: #{net_forward.3} parent=0 // loop_body
    %s15 = ssub.s32 %s10, 1
    %s16 = ssub.s32 %s10, 2
    %s17 = sadd.s32 %s10, 1
    %s18 = ssub.s32 %s10, %s17
    %p19 = scmp.eq.s32.totalorder %s18, 0
    %s21 = sadd.s32 %s20, 1
    %s22 = scalar_select %p19, %s20, %s21
    %p25 = pneg %p19
    %p26 = scmp.eq.s32.totalorder %s10, 1
    %p27 = por %p25, %p26
    %p28 = scmp.ne.s32.totalorder %s20, %s23
    %p29 = scmp.eq.s32.totalorder %s10, 0
    %p30 = por %p28, %p29
    %p31 = scmp.ne.s32.totalorder %s20, %s23
    %p32 = scmp.eq.s32.totalorder %s15, 1
    %p33 = por %p31, %p32
    %p34 = scmp.ne.s32.totalorder %s23, %s24
    %p35 = scmp.eq.s32.totalorder %s15, 0
    %p36 = por %p34, %p35
    %p37 = scmp.ne.s32.totalorder %s23, %s24
    %p38 = scmp.eq.s32.totalorder %s16, 1
    %p39 = por %p37, %p38
    %p41 = scmp.ne.s32.totalorder %s24, %s40
    %p42 = scmp.eq.s32.totalorder %s16, 0
    %p43 = por %p41, %p42
    %s44 = ssub.s32 %s10, %s17
    %p45 = scmp.eq.s32.totalorder %s44, 0
    %s47 = sadd.s32 %s46, 1
    %s48 = scalar_select %p45, %s46, %s47
    %p51 = pneg %p45
    %p52 = scmp.eq.s32.totalorder %s10, 1
    %p53 = por %p51, %p52
    %p54 = scmp.ne.s32.totalorder %s46, %s49
    %p55 = scmp.eq.s32.totalorder %s10, 0
    %p56 = por %p54, %p55
    %p57 = scmp.ne.s32.totalorder %s46, %s49
    %p58 = scmp.eq.s32.totalorder %s15, 1
    %p59 = por %p57, %p58
    %p60 = scmp.ne.s32.totalorder %s49, %s50
    %p61 = scmp.eq.s32.totalorder %s15, 0
    %p62 = por %p60, %p61
    %p63 = scmp.ne.s32.totalorder %s49, %s50
    %p64 = scmp.eq.s32.totalorder %s16, 1
    %p65 = por %p63, %p64
    %p67 = scmp.ne.s32.totalorder %s50, %s66
    %p68 = scmp.eq.s32.totalorder %s16, 0
    %p69 = por %p67, %p68
    %s71 = sadd.s32 %s70, 1
    %p74 = scmp.eq.s32.totalorder %s10, 1
    %p75 = scmp.ne.s32.totalorder %s70, %s72
    %p76 = scmp.eq.s32.totalorder %s10, 0
    %p77 = por %p75, %p76
    %p78 = scmp.ne.s32.totalorder %s70, %s72
    %p79 = scmp.eq.s32.totalorder %s15, 1
    %p80 = por %p78, %p79
    %p81 = scmp.ne.s32.totalorder %s72, %s73
    %p82 = scmp.eq.s32.totalorder %s15, 0
    %p83 = por %p81, %p82
    %p84 = scmp.ne.s32.totalorder %s72, %s73
    %p85 = scmp.eq.s32.totalorder %s16, 1
    %p86 = por %p84, %p85
    %p88 = scmp.ne.s32.totalorder %s73, %s87
    %p89 = scmp.eq.s32.totalorder %s16, 0
    %p90 = por %p88, %p89
    %s92 = sadd.s32 %s91, 1
    %p95 = scmp.eq.s32.totalorder %s10, 1
    %p96 = scmp.ne.s32.totalorder %s91, %s93
    %p97 = scmp.eq.s32.totalorder %s10, 0
    %p98 = por %p96, %p97
    %p99 = scmp.ne.s32.totalorder %s91, %s93
    %p100 = scmp.eq.s32.totalorder %s15, 1
    %p101 = por %p99, %p100
    %p102 = scmp.ne.s32.totalorder %s93, %s94
    %p103 = scmp.eq.s32.totalorder %s15, 0
    %p104 = por %p102, %p103
    %p105 = scmp.ne.s32.totalorder %s93, %s94
    %p106 = scmp.eq.s32.totalorder %s16, 1
    %p107 = por %p105, %p106
    %p109 = scmp.ne.s32.totalorder %s94, %s108
    %p110 = scmp.eq.s32.totalorder %s16, 0
    %p111 = por %p109, %p110
    %s112 = ssub.s32 %s10, %s17
    %p113 = scmp.eq.s32.totalorder %s112, 0
    %s115 = sadd.s32 %s114, 1
    %s116 = scalar_select %p113, %s114, %s115
    %p119 = pneg %p113
    %p120 = scmp.eq.s32.totalorder %s10, 1
    %p121 = por %p119, %p120
    %p122 = scmp.ne.s32.totalorder %s114, %s117
    %p123 = scmp.eq.s32.totalorder %s10, 0
    %p124 = por %p122, %p123
    %p125 = scmp.ne.s32.totalorder %s114, %s117
    %p126 = scmp.eq.s32.totalorder %s15, 1
    %p127 = por %p125, %p126
    %p128 = scmp.ne.s32.totalorder %s117, %s118
    %p129 = scmp.eq.s32.totalorder %s15, 0
    %p130 = por %p128, %p129
    %p131 = scmp.ne.s32.totalorder %s117, %s118
    %p132 = scmp.eq.s32.totalorder %s16, 1
    %p133 = por %p131, %p132
    %p135 = scmp.ne.s32.totalorder %s118, %s134
    %p136 = scmp.eq.s32.totalorder %s16, 0
    %p137 = por %p135, %p136
    %p138 = scmp.le.s32.totalorder 1, %s10
    %p139 = scmp.lt.s32.totalorder %s10, 3
    %p140 = pnand %p138, %p139
    %p141 = pneg %p140
    // Predicated region
    $region9: #{net_forward.3} parent=5 // pred_check
      _
    $region10: #{net_forward.3} parent=5 // pred_check_branch
      %143 = sbr.rel (%p140) target = $region12
    $region11: #{net_forward.3} parent=5 // pred_region
      %s144 = ssub.s32 %s10, 1
      // Predicated region
      $region13: #{net_forward.3} parent=11 // pred_check
        %p145 = pneg %p83
      $region14: #{net_forward.3} parent=11 // pred_check_branch
        %147 = sbr.rel (%p145) target = $region16
      $region15: #{net_forward.3} parent=11 // pred_region
        _
      $region16: #{net_forward.3} parent=11 // pred_fallthru
        _
      // Predicated region
      $region17: #{net_forward.3} parent=11 // pred_check
        %p148 = pneg %p104
      $region18: #{net_forward.3} parent=11 // pred_check_branch
        %150 = sbr.rel (%p148) target = $region20
      $region19: #{net_forward.3} parent=11 // pred_region
        _
      $region20: #{net_forward.3} parent=11 // pred_fallthru
        _
    $region12: #{net_forward.3} parent=5 // pred_fallthru
      _
    %p151 = scmp.lt.s32.totalorder %s10, 2
    // Predicated region
    $region21: #{net_forward.3} parent=5 // pred_check
      %p152 = pneg %p151
    $region22: #{net_forward.3} parent=5 // pred_check_branch
      %154 = sbr.rel (%p152) target = $region24
    $region23: #{net_forward.3} parent=5 // pred_region
      // Predicated region
      $region25: #{net_forward.3} parent=23 // pred_check
        %p155 = pneg %p30
      $region26: #{net_forward.3} parent=23 // pred_check_branch
        %157 = sbr.rel (%p155) target = $region28
      $region27: #{net_forward.3} parent=23 // pred_region
        %p158 = scmp.lt.s32.totalorder %s10, 1
        %s159 = scalar_select %p158, %s10, 1
        %s160 = smul.addr %s159, 2
        %s161 = smul.addr %s160, 8
        %s162 = scalar_lea.vmem %s0, %s161
      $region28: #{net_forward.3} parent=23 // pred_fallthru
        _
      // Predicated region
      $region29: #{net_forward.3} parent=23 // pred_check
        %p163 = pneg %p56
      $region30: #{net_forward.3} parent=23 // pred_check_branch
        %165 = sbr.rel (%p163) target = $region32
      $region31: #{net_forward.3} parent=23 // pred_region
        %p166 = scmp.lt.s32.totalorder %s10, 1
        %s167 = scalar_select %p166, %s10, 1
        %s168 = smul.addr %s167, 2
        %s169 = smul.addr %s168, 8
        %s170 = scalar_lea.vmem %s1, %s169
      $region32: #{net_forward.3} parent=23 // pred_fallthru
        _
    $region24: #{net_forward.3} parent=5 // pred_fallthru
      _
    %p171 = scmp.le.s32.totalorder 1, %s10
    %p172 = scmp.lt.s32.totalorder %s10, 3
    %p173 = pnand %p171, %p172
    %p174 = pneg %p173
    // Predicated region
    $region33: #{net_forward.3} parent=5 // pred_check
      _
    $region34: #{net_forward.3} parent=5 // pred_check_branch
      %176 = sbr.rel (%p173) target = $region36
    $region35: #{net_forward.3} parent=5 // pred_region
      %s177 = ssub.s32 %s10, 1
      %p178 = scmp.lt.s32.totalorder %s15, 1
      %s179 = scalar_select %p178, %s15, 1
      %s180 = smul.addr %s179, 2
      %s181 = smul.addr %s180, 8
      %s182 = scalar_lea.vmem %s0, %s181
      %p183 = pneg %p36
      %p184 = pneg %p33
      %p185 = scmp.lt.s32.totalorder %s15, 1
      %s186 = scalar_select %p185, %s15, 1
      %s187 = smul.addr %s186, 2
      %s188 = smul.addr %s187, 8
      %s189 = scalar_lea.vmem %s1, %s188
      %p190 = pneg %p62
      %p191 = pneg %p59
      %p192 = pneg %p83
      %p193 = pneg %p80
      %p194 = pneg %p104
      %p195 = pneg %p101
      %p196 = pneg %p130
      %p197 = pneg %p127
      %p198 = scmp.lt.s32.totalorder %s15, 1
      %s199 = scalar_select %p198, %s15, 1
      %s200 = smul.addr %s199, 2
      %s201 = smul.addr %s200, 8
      %s202 = scalar_lea.vmem %s4, %s201
      %p203 = scmp.lt.s32.totalorder %s15, 1
      %s204 = scalar_select %p203, %s15, 1
      %s205 = smul.addr %s204, 2
      %s206 = smul.addr %s205, 8
      %s207 = scalar_lea.vmem %s0, %s206
      %p208 = scmp.lt.s32.totalorder %s15, 1
      %s209 = scalar_select %p208, %s15, 1
      %s210 = smul.addr %s209, 2
      %s211 = smul.addr %s210, 8
      %s212 = scalar_lea.vmem %s1, %s211
      %p213 = scmp.lt.s32.totalorder %s15, 1
      %s214 = scalar_select %p213, %s15, 1
      %s215 = smul.addr %s214, 2
      %s216 = smul.addr %s215, 8
      %s217 = scalar_lea.vmem %s4, %s216
      %v218 = vld [vmem:[%s207] sm:$0xff]
      %v219 = vld [vmem:[%s207 + $0x8] sm:$0x3f]
      %v220 = vld [vmem:[%s212] sm:$0xff]
      %v221 = vld [vmem:[%s212 + $0x8] sm:$0x3f]
      %v222 = vld [vmem:[%s207 + $0x1] sm:$0xff]
      %v223 = vld [vmem:[%s207 + $0x9] sm:$0x3f]
      %v224 = vld [vmem:[%s212 + $0x1] sm:$0xff]
      %v225 = vld [vmem:[%s212 + $0x9] sm:$0x3f]
      %v226 = vld [vmem:[%s207 + $0x2] sm:$0xff]
      %v227 = vld [vmem:[%s207 + $0xa] sm:$0x3f]
      %v228 = vld [vmem:[%s212 + $0x2] sm:$0xff]
      %v229 = vld [vmem:[%s212 + $0xa] sm:$0x3f]
      %v230 = vld [vmem:[%s2] sm:$0xff]
      %v231 = vld [vmem:[%s2 + $0x8] sm:$0xff]
      %v232 = vld [vmem:[%s2 + $0x10] sm:$0xff]
      %v233 = vld [vmem:[%s2 + $0x18] sm:$0xff]
      %v234 = vld [vmem:[%s2 + $0x20] sm:$0xff]
      %v235 = vld [vmem:[%s2 + $0x28] sm:$0xff]
      %v236 = vld [vmem:[%s2 + $0x30] sm:$0xff]
      %v237 = vld [vmem:[%s2 + $0x38] sm:$0xff]
      %v238 = vld [vmem:[%s2 + $0x40] sm:$0xff]
      %v239 = vld [vmem:[%s2 + $0x48] sm:$0xff]
      %v240 = vld [vmem:[%s2 + $0x50] sm:$0xff]
      %v241 = vld [vmem:[%s2 + $0x58] sm:$0xff]
      %s242 = scalar_lea.vmem %s2, 192
      %v243 = vld [vmem:[%s242] sm:$0xff]
      %v244 = vld [vmem:[%s242 + $0x8] sm:$0xff]
      %v245 = vld [vmem:[%s242 + $0x10] sm:$0xff]
      %v246 = vld [vmem:[%s242 + $0x18] sm:$0xff]
      %v247 = vld [vmem:[%s242 + $0x20] sm:$0xff]
      %v248 = vld [vmem:[%s242 + $0x28] sm:$0xff]
      %v249 = vld [vmem:[%s242 + $0x30] sm:$0xff]
      %v250 = vld [vmem:[%s242 + $0x38] sm:$0xff]
      %v251 = vld [vmem:[%s242 + $0x40] sm:$0xff]
      %v252 = vld [vmem:[%s242 + $0x48] sm:$0xff]
      %v253 = vld [vmem:[%s242 + $0x50] sm:$0xff]
      %v254 = vld [vmem:[%s242 + $0x58] sm:$0xff]
      %vm255 = vcmask 785408
      %v257 = vsel %vm255, %v220, 0
      %v260 = vsel %vm255, %v221, 0
      %262 = vmatprep.subr.mxu0 0.0
      %263 = vmatpush1.msra.mxu0 0.0
      %264 = vmatprep.subr.mxu0 0.0
      %265 = vmatpush1.msra.mxu0 0.0
      %266 = vmatprep.subr.mxu0 0.0
      %267 = vmatpush1.msra.mxu0 0.0
      %268 = vmatprep.subr.mxu0 0.0
      %269 = vmatpush1.msra.mxu0 0.0
      %270 = vmatprep.subr.mxu0 0.0
      %271 = vmatpush1.msra.mxu0 %v254
      %272 = vmatprep.subr.mxu0 0.0
      %273 = vmatpush1.msra.mxu0 %v253
      %274 = vmatprep.subr.mxu0 0.0
      %275 = vmatpush1.msra.mxu0 %v252
      %276 = vmatprep.subr.mxu0 0.0
      %277 = vmatpush1.msra.mxu0 %v251
      %278 = vmatprep.subr.mxu0 0.0
      %279 = vmatpush1.msra.mxu0 %v250
      %280 = vmatprep.subr.mxu0 0.0
      %281 = vmatpush1.msra.mxu0 %v249
      %282 = vmatprep.subr.mxu0 0.0
      %283 = vmatpush1.msra.mxu0 %v248
      %284 = vmatprep.subr.mxu0 0.0
      %285 = vmatpush1.msra.mxu0 %v247
      %286 = vmatprep.subr.mxu0 0.0
      %287 = vmatpush1.msra.mxu0 %v246
      %288 = vmatprep.subr.mxu0 0.0
      %289 = vmatpush1.msra.mxu0 %v245
      %290 = vmatprep.subr.mxu0 0.0
      %291 = vmatpush1.msra.mxu0 %v244
      %292 = vmatprep.subr.mxu0 0.0
      %293 = vmatpush1.msra.mxu0 %v243
      %294 = vmatprep.subr.mxu0 0.0
      %295 = vmatpush2.msra.mxu0 0.0
      %296 = vmatprep.subr.mxu0 0.0
      %297 = vmatpush2.msra.mxu0 0.0
      %298 = vmatprep.subr.mxu0 0.0
      %299 = vmatpush2.msra.mxu0 0.0
      %300 = vmatprep.subr.mxu0 0.0
      %301 = vmatpush2.msra.mxu0 0.0
      %302 = vmatprep.subr.mxu0 0.0
      %303 = vmatpush2.msra.mxu0 0.0
      %304 = vmatprep.subr.mxu0 0.0
      %305 = vmatpush2.msra.mxu0 0.0
      %306 = vmatprep.subr.mxu0 0.0
      %307 = vmatpush2.msra.mxu0 0.0
      %308 = vmatprep.subr.mxu0 0.0
      %309 = vmatpush2.msra.mxu0 0.0
      %310 = vmatprep.subr.mxu0 0.0
      %311 = vmatpush2.msra.mxu0 0.0
      %312 = vmatprep.subr.mxu0 0.0
      %313 = vmatpush2.msra.mxu0 0.0
      %314 = vmatprep.subr.mxu0 0.0
      %315 = vmatpush2.msra.mxu0 0.0
      %316 = vmatprep.subr.mxu0 0.0
      %317 = vmatpush2.msra.mxu0 0.0
      %318 = vmatprep.subr.mxu0 0.0
      %319 = vmatpush2.msra.mxu0 0.0
      %320 = vmatprep.subr.mxu0 0.0
      %321 = vmatpush2.msra.mxu0 0.0
      %322 = vmatprep.subr.mxu0 0.0
      %323 = vmatpush2.msra.mxu0 0.0
      %324 = vmatprep.subr.mxu0 0.0
      %325 = vmatpush2.msra.mxu0 0.0
      %326 = vmatprep.mubr.f32.mxu0 0.0
      %327 = vmatmul.mubr.f32.gmra.mxu0 %v257
      %v328 = vpop.f32.mrf.mxu0
      %v329 = vadd.f32 0.0, %v328
      %v330 = vpop.f32.mrf.mxu0
      %331 = vmatprep.mubr.f32.mxu0 0.0
      %332 = vmatmul.mubr.f32.gmra.mxu0 %v260
      %v333 = vpop.f32.mrf.mxu0
      %v334 = vadd.f32 0.0, %v333
      %v335 = vpop.f32.mrf.mxu0
      %336 = vdwg.mxu0
      %v338 = vsel %vm255, %v218, 0
      %v341 = vsel %vm255, %v219, 0
      %343 = vmatprep.subr.mxu0 0.0
      %344 = vmatpush1.msra.mxu0 0.0
      %345 = vmatprep.subr.mxu0 0.0
      %346 = vmatpush1.msra.mxu0 0.0
      %347 = vmatprep.subr.mxu0 0.0
      %348 = vmatpush1.msra.mxu0 0.0
      %349 = vmatprep.subr.mxu0 0.0
      %350 = vmatpush1.msra.mxu0 0.0
      %351 = vmatprep.subr.mxu0 0.0
      %352 = vmatpush1.msra.mxu0 %v241
      %353 = vmatprep.subr.mxu0 0.0
      %354 = vmatpush1.msra.mxu0 %v240
      %355 = vmatprep.subr.mxu0 0.0
      %356 = vmatpush1.msra.mxu0 %v239
      %357 = vmatprep.subr.mxu0 0.0
      %358 = vmatpush1.msra.mxu0 %v238
      %359 = vmatprep.subr.mxu0 0.0
      %360 = vmatpush1.msra.mxu0 %v237
      %361 = vmatprep.subr.mxu0 0.0
      %362 = vmatpush1.msra.mxu0 %v236
      %363 = vmatprep.subr.mxu0 0.0
      %364 = vmatpush1.msra.mxu0 %v235
      %365 = vmatprep.subr.mxu0 0.0
      %366 = vmatpush1.msra.mxu0 %v234
      %367 = vmatprep.subr.mxu0 0.0
      %368 = vmatpush1.msra.mxu0 %v233
      %369 = vmatprep.subr.mxu0 0.0
      %370 = vmatpush1.msra.mxu0 %v232
      %371 = vmatprep.subr.mxu0 0.0
      %372 = vmatpush1.msra.mxu0 %v231
      %373 = vmatprep.subr.mxu0 0.0
      %374 = vmatpush1.msra.mxu0 %v230
      %375 = vmatprep.subr.mxu0 0.0
      %376 = vmatpush2.msra.mxu0 0.0
      %377 = vmatprep.subr.mxu0 0.0
      %378 = vmatpush2.msra.mxu0 0.0
      %379 = vmatprep.subr.mxu0 0.0
      %380 = vmatpush2.msra.mxu0 0.0
      %381 = vmatprep.subr.mxu0 0.0
      %382 = vmatpush2.msra.mxu0 0.0
      %383 = vmatprep.subr.mxu0 0.0
      %384 = vmatpush2.msra.mxu0 0.0
      %385 = vmatprep.subr.mxu0 0.0
      %386 = vmatpush2.msra.mxu0 0.0
      %387 = vmatprep.subr.mxu0 0.0
      %388 = vmatpush2.msra.mxu0 0.0
      %389 = vmatprep.subr.mxu0 0.0
      %390 = vmatpush2.msra.mxu0 0.0
      %391 = vmatprep.subr.mxu0 0.0
      %392 = vmatpush2.msra.mxu0 0.0
      %393 = vmatprep.subr.mxu0 0.0
      %394 = vmatpush2.msra.mxu0 0.0
      %395 = vmatprep.subr.mxu0 0.0
      %396 = vmatpush2.msra.mxu0 0.0
      %397 = vmatprep.subr.mxu0 0.0
      %398 = vmatpush2.msra.mxu0 0.0
      %399 = vmatprep.subr.mxu0 0.0
      %400 = vmatpush2.msra.mxu0 0.0
      %401 = vmatprep.subr.mxu0 0.0
      %402 = vmatpush2.msra.mxu0 0.0
      %403 = vmatprep.subr.mxu0 0.0
      %404 = vmatpush2.msra.mxu0 0.0
      %405 = vmatprep.subr.mxu0 0.0
      %406 = vmatpush2.msra.mxu0 0.0
      %407 = vmatprep.mubr.f32.mxu0 0.0
      %408 = vmatmul.mubr.f32.gmra.mxu0 %v338
      %v409 = vpop.f32.mrf.mxu0
      %v410 = vadd.f32 %v329, %v409
      %v411 = vpop.f32.mrf.mxu0
      %412 = vmatprep.mubr.f32.mxu0 0.0
      %413 = vmatmul.mubr.f32.gmra.mxu0 %v341
      %v414 = vpop.f32.mrf.mxu0
      %v415 = vadd.f32 %v334, %v414
      %v416 = vpop.f32.mrf.mxu0
      %417 = vdwg.mxu0
      %s418 = scalar_lea.vmem %s2, 384
      %v419 = vld [vmem:[%s418] sm:$0xff]
      %v420 = vld [vmem:[%s418 + $0x8] sm:$0xff]
      %v421 = vld [vmem:[%s418 + $0x10] sm:$0xff]
      %v422 = vld [vmem:[%s418 + $0x18] sm:$0xff]
      %v423 = vld [vmem:[%s418 + $0x20] sm:$0xff]
      %v424 = vld [vmem:[%s418 + $0x28] sm:$0xff]
      %v425 = vld [vmem:[%s418 + $0x30] sm:$0xff]
      %v426 = vld [vmem:[%s418 + $0x38] sm:$0xff]
      %v427 = vld [vmem:[%s418 + $0x40] sm:$0xff]
      %v428 = vld [vmem:[%s418 + $0x48] sm:$0xff]
      %v429 = vld [vmem:[%s418 + $0x50] sm:$0xff]
      %v430 = vld [vmem:[%s418 + $0x58] sm:$0xff]
      %v432 = vsel %vm255, %v222, 0
      %v435 = vsel %vm255, %v223, 0
      %437 = vmatprep.subr.mxu0 0.0
      %438 = vmatpush1.msra.mxu0 0.0
      %439 = vmatprep.subr.mxu0 0.0
      %440 = vmatpush1.msra.mxu0 0.0
      %441 = vmatprep.subr.mxu0 0.0
      %442 = vmatpush1.msra.mxu0 0.0
      %443 = vmatprep.subr.mxu0 0.0
      %444 = vmatpush1.msra.mxu0 0.0
      %445 = vmatprep.subr.mxu0 0.0
      %446 = vmatpush1.msra.mxu0 %v430
      %447 = vmatprep.subr.mxu0 0.0
      %448 = vmatpush1.msra.mxu0 %v429
      %449 = vmatprep.subr.mxu0 0.0
      %450 = vmatpush1.msra.mxu0 %v428
      %451 = vmatprep.subr.mxu0 0.0
      %452 = vmatpush1.msra.mxu0 %v427
      %453 = vmatprep.subr.mxu0 0.0
      %454 = vmatpush1.msra.mxu0 %v426
      %455 = vmatprep.subr.mxu0 0.0
      %456 = vmatpush1.msra.mxu0 %v425
      %457 = vmatprep.subr.mxu0 0.0
      %458 = vmatpush1.msra.mxu0 %v424
      %459 = vmatprep.subr.mxu0 0.0
      %460 = vmatpush1.msra.mxu0 %v423
      %461 = vmatprep.subr.mxu0 0.0
      %462 = vmatpush1.msra.mxu0 %v422
      %463 = vmatprep.subr.mxu0 0.0
      %464 = vmatpush1.msra.mxu0 %v421
      %465 = vmatprep.subr.mxu0 0.0
      %466 = vmatpush1.msra.mxu0 %v420
      %467 = vmatprep.subr.mxu0 0.0
      %468 = vmatpush1.msra.mxu0 %v419
      %469 = vmatprep.subr.mxu0 0.0
      %470 = vmatpush2.msra.mxu0 0.0
      %471 = vmatprep.subr.mxu0 0.0
      %472 = vmatpush2.msra.mxu0 0.0
      %473 = vmatprep.subr.mxu0 0.0
      %474 = vmatpush2.msra.mxu0 0.0
      %475 = vmatprep.subr.mxu0 0.0
      %476 = vmatpush2.msra.mxu0 0.0
      %477 = vmatprep.subr.mxu0 0.0
      %478 = vmatpush2.msra.mxu0 0.0
      %479 = vmatprep.subr.mxu0 0.0
      %480 = vmatpush2.msra.mxu0 0.0
      %481 = vmatprep.subr.mxu0 0.0
      %482 = vmatpush2.msra.mxu0 0.0
      %483 = vmatprep.subr.mxu0 0.0
      %484 = vmatpush2.msra.mxu0 0.0
      %485 = vmatprep.subr.mxu0 0.0
      %486 = vmatpush2.msra.mxu0 0.0
      %487 = vmatprep.subr.mxu0 0.0
      %488 = vmatpush2.msra.mxu0 0.0
      %489 = vmatprep.subr.mxu0 0.0
      %490 = vmatpush2.msra.mxu0 0.0
      %491 = vmatprep.subr.mxu0 0.0
      %492 = vmatpush2.msra.mxu0 0.0
      %493 = vmatprep.subr.mxu0 0.0
      %494 = vmatpush2.msra.mxu0 0.0
      %495 = vmatprep.subr.mxu0 0.0
      %496 = vmatpush2.msra.mxu0 0.0
      %497 = vmatprep.subr.mxu0 0.0
      %498 = vmatpush2.msra.mxu0 0.0
      %499 = vmatprep.subr.mxu0 0.0
      %500 = vmatpush2.msra.mxu0 0.0
      %501 = vmatprep.mubr.f32.mxu0 0.0
      %502 = vmatmul.mubr.f32.gmra.mxu0 %v432
      %v503 = vpop.f32.mrf.mxu0
      %v504 = vadd.f32 0.0, %v503
      %v505 = vpop.f32.mrf.mxu0
      %506 = vmatprep.mubr.f32.mxu0 0.0
      %507 = vmatmul.mubr.f32.gmra.mxu0 %v435
      %v508 = vpop.f32.mrf.mxu0
      %v509 = vadd.f32 0.0, %v508
      %v510 = vpop.f32.mrf.mxu0
      %511 = vdwg.mxu0
      %v512 = vadd.f32 %v410, %v504
      %v513 = vadd.f32 %v415, %v509
      %s514 = scalar_lea.vmem %s2, 576
      %v515 = vld [vmem:[%s514] sm:$0xff]
      %v516 = vld [vmem:[%s514 + $0x8] sm:$0xff]
      %v517 = vld [vmem:[%s514 + $0x10] sm:$0xff]
      %v518 = vld [vmem:[%s514 + $0x18] sm:$0xff]
      %v519 = vld [vmem:[%s514 + $0x20] sm:$0xff]
      %v520 = vld [vmem:[%s514 + $0x28] sm:$0xff]
      %v521 = vld [vmem:[%s514 + $0x30] sm:$0xff]
      %v522 = vld [vmem:[%s514 + $0x38] sm:$0xff]
      %v523 = vld [vmem:[%s514 + $0x40] sm:$0xff]
      %v524 = vld [vmem:[%s514 + $0x48] sm:$0xff]
      %v525 = vld [vmem:[%s514 + $0x50] sm:$0xff]
      %v526 = vld [vmem:[%s514 + $0x58] sm:$0xff]
      %v528 = vsel %vm255, %v224, 0
      %v531 = vsel %vm255, %v225, 0
      %533 = vmatprep.subr.mxu0 0.0
      %534 = vmatpush1.msra.mxu0 0.0
      %535 = vmatprep.subr.mxu0 0.0
      %536 = vmatpush1.msra.mxu0 0.0
      %537 = vmatprep.subr.mxu0 0.0
      %538 = vmatpush1.msra.mxu0 0.0
      %539 = vmatprep.subr.mxu0 0.0
      %540 = vmatpush1.msra.mxu0 0.0
      %541 = vmatprep.subr.mxu0 0.0
      %542 = vmatpush1.msra.mxu0 %v526
      %543 = vmatprep.subr.mxu0 0.0
      %544 = vmatpush1.msra.mxu0 %v525
      %545 = vmatprep.subr.mxu0 0.0
      %546 = vmatpush1.msra.mxu0 %v524
      %547 = vmatprep.subr.mxu0 0.0
      %548 = vmatpush1.msra.mxu0 %v523
      %549 = vmatprep.subr.mxu0 0.0
      %550 = vmatpush1.msra.mxu0 %v522
      %551 = vmatprep.subr.mxu0 0.0
      %552 = vmatpush1.msra.mxu0 %v521
      %553 = vmatprep.subr.mxu0 0.0
      %554 = vmatpush1.msra.mxu0 %v520
      %555 = vmatprep.subr.mxu0 0.0
      %556 = vmatpush1.msra.mxu0 %v519
      %557 = vmatprep.subr.mxu0 0.0
      %558 = vmatpush1.msra.mxu0 %v518
      %559 = vmatprep.subr.mxu0 0.0
      %560 = vmatpush1.msra.mxu0 %v517
      %561 = vmatprep.subr.mxu0 0.0
      %562 = vmatpush1.msra.mxu0 %v516
      %563 = vmatprep.subr.mxu0 0.0
      %564 = vmatpush1.msra.mxu0 %v515
      %565 = vmatprep.subr.mxu0 0.0
      %566 = vmatpush2.msra.mxu0 0.0
      %567 = vmatprep.subr.mxu0 0.0
      %568 = vmatpush2.msra.mxu0 0.0
      %569 = vmatprep.subr.mxu0 0.0
      %570 = vmatpush2.msra.mxu0 0.0
      %571 = vmatprep.subr.mxu0 0.0
      %572 = vmatpush2.msra.mxu0 0.0
      %573 = vmatprep.subr.mxu0 0.0
      %574 = vmatpush2.msra.mxu0 0.0
      %575 = vmatprep.subr.mxu0 0.0
      %576 = vmatpush2.msra.mxu0 0.0
      %577 = vmatprep.subr.mxu0 0.0
      %578 = vmatpush2.msra.mxu0 0.0
      %579 = vmatprep.subr.mxu0 0.0
      %580 = vmatpush2.msra.mxu0 0.0
      %581 = vmatprep.subr.mxu0 0.0
      %582 = vmatpush2.msra.mxu0 0.0
      %583 = vmatprep.subr.mxu0 0.0
      %584 = vmatpush2.msra.mxu0 0.0
      %585 = vmatprep.subr.mxu0 0.0
      %586 = vmatpush2.msra.mxu0 0.0
      %587 = vmatprep.subr.mxu0 0.0
      %588 = vmatpush2.msra.mxu0 0.0
      %589 = vmatprep.subr.mxu0 0.0
      %590 = vmatpush2.msra.mxu0 0.0
      %591 = vmatprep.subr.mxu0 0.0
      %592 = vmatpush2.msra.mxu0 0.0
      %593 = vmatprep.subr.mxu0 0.0
      %594 = vmatpush2.msra.mxu0 0.0
      %595 = vmatprep.subr.mxu0 0.0
      %596 = vmatpush2.msra.mxu0 0.0
      %597 = vmatprep.mubr.f32.mxu0 0.0
      %598 = vmatmul.mubr.f32.gmra.mxu0 %v528
      %v599 = vpop.f32.mrf.mxu0
      %v600 = vadd.f32 0.0, %v599
      %v601 = vpop.f32.mrf.mxu0
      %602 = vmatprep.mubr.f32.mxu0 0.0
      %603 = vmatmul.mubr.f32.gmra.mxu0 %v531
      %v604 = vpop.f32.mrf.mxu0
      %v605 = vadd.f32 0.0, %v604
      %v606 = vpop.f32.mrf.mxu0
      %607 = vdwg.mxu0
      %v608 = vadd.f32 %v512, %v600
      %v609 = vadd.f32 %v513, %v605
      %s610 = scalar_lea.vmem %s2, 768
      %v611 = vld [vmem:[%s610] sm:$0xff]
      %v612 = vld [vmem:[%s610 + $0x8] sm:$0xff]
      %v613 = vld [vmem:[%s610 + $0x10] sm:$0xff]
      %v614 = vld [vmem:[%s610 + $0x18] sm:$0xff]
      %v615 = vld [vmem:[%s610 + $0x20] sm:$0xff]
      %v616 = vld [vmem:[%s610 + $0x28] sm:$0xff]
      %v617 = vld [vmem:[%s610 + $0x30] sm:$0xff]
      %v618 = vld [vmem:[%s610 + $0x38] sm:$0xff]
      %v619 = vld [vmem:[%s610 + $0x40] sm:$0xff]
      %v620 = vld [vmem:[%s610 + $0x48] sm:$0xff]
      %v621 = vld [vmem:[%s610 + $0x50] sm:$0xff]
      %v622 = vld [vmem:[%s610 + $0x58] sm:$0xff]
      %v624 = vsel %vm255, %v226, 0
      %v627 = vsel %vm255, %v227, 0
      %629 = vmatprep.subr.mxu0 0.0
      %630 = vmatpush1.msra.mxu0 0.0
      %631 = vmatprep.subr.mxu0 0.0
      %632 = vmatpush1.msra.mxu0 0.0
      %633 = vmatprep.subr.mxu0 0.0
      %634 = vmatpush1.msra.mxu0 0.0
      %635 = vmatprep.subr.mxu0 0.0
      %636 = vmatpush1.msra.mxu0 0.0
      %637 = vmatprep.subr.mxu0 0.0
      %638 = vmatpush1.msra.mxu0 %v622
      %639 = vmatprep.subr.mxu0 0.0
      %640 = vmatpush1.msra.mxu0 %v621
      %641 = vmatprep.subr.mxu0 0.0
      %642 = vmatpush1.msra.mxu0 %v620
      %643 = vmatprep.subr.mxu0 0.0
      %644 = vmatpush1.msra.mxu0 %v619
      %645 = vmatprep.subr.mxu0 0.0
      %646 = vmatpush1.msra.mxu0 %v618
      %647 = vmatprep.subr.mxu0 0.0
      %648 = vmatpush1.msra.mxu0 %v617
      %649 = vmatprep.subr.mxu0 0.0
      %650 = vmatpush1.msra.mxu0 %v616
      %651 = vmatprep.subr.mxu0 0.0
      %652 = vmatpush1.msra.mxu0 %v615
      %653 = vmatprep.subr.mxu0 0.0
      %654 = vmatpush1.msra.mxu0 %v614
      %655 = vmatprep.subr.mxu0 0.0
      %656 = vmatpush1.msra.mxu0 %v613
      %657 = vmatprep.subr.mxu0 0.0
      %658 = vmatpush1.msra.mxu0 %v612
      %659 = vmatprep.subr.mxu0 0.0
      %660 = vmatpush1.msra.mxu0 %v611
      %661 = vmatprep.subr.mxu0 0.0
      %662 = vmatpush2.msra.mxu0 0.0
      %663 = vmatprep.subr.mxu0 0.0
      %664 = vmatpush2.msra.mxu0 0.0
      %665 = vmatprep.subr.mxu0 0.0
      %666 = vmatpush2.msra.mxu0 0.0
      %667 = vmatprep.subr.mxu0 0.0
      %668 = vmatpush2.msra.mxu0 0.0
      %669 = vmatprep.subr.mxu0 0.0
      %670 = vmatpush2.msra.mxu0 0.0
      %671 = vmatprep.subr.mxu0 0.0
      %672 = vmatpush2.msra.mxu0 0.0
      %673 = vmatprep.subr.mxu0 0.0
      %674 = vmatpush2.msra.mxu0 0.0
      %675 = vmatprep.subr.mxu0 0.0
      %676 = vmatpush2.msra.mxu0 0.0
      %677 = vmatprep.subr.mxu0 0.0
      %678 = vmatpush2.msra.mxu0 0.0
      %679 = vmatprep.subr.mxu0 0.0
      %680 = vmatpush2.msra.mxu0 0.0
      %681 = vmatprep.subr.mxu0 0.0
      %682 = vmatpush2.msra.mxu0 0.0
      %683 = vmatprep.subr.mxu0 0.0
      %684 = vmatpush2.msra.mxu0 0.0
      %685 = vmatprep.subr.mxu0 0.0
      %686 = vmatpush2.msra.mxu0 0.0
      %687 = vmatprep.subr.mxu0 0.0
      %688 = vmatpush2.msra.mxu0 0.0
      %689 = vmatprep.subr.mxu0 0.0
      %690 = vmatpush2.msra.mxu0 0.0
      %691 = vmatprep.subr.mxu0 0.0
      %692 = vmatpush2.msra.mxu0 0.0
      %693 = vmatprep.mubr.f32.mxu0 0.0
      %694 = vmatmul.mubr.f32.gmra.mxu0 %v624
      %v695 = vpop.f32.mrf.mxu0
      %v696 = vadd.f32 0.0, %v695
      %v697 = vpop.f32.mrf.mxu0
      %698 = vmatprep.mubr.f32.mxu0 0.0
      %699 = vmatmul.mubr.f32.gmra.mxu0 %v627
      %v700 = vpop.f32.mrf.mxu0
      %v701 = vadd.f32 0.0, %v700
      %v702 = vpop.f32.mrf.mxu0
      %703 = vdwg.mxu0
      %v704 = vadd.f32 %v608, %v696
      %v705 = vadd.f32 %v609, %v701
      %s706 = scalar_lea.vmem %s2, 96
      %v707 = vld [vmem:[%s706] sm:$0xff]
      %v708 = vld [vmem:[%s706 + $0x8] sm:$0xff]
      %v709 = vld [vmem:[%s706 + $0x10] sm:$0xff]
      %v710 = vld [vmem:[%s706 + $0x18] sm:$0xff]
      %v711 = vld [vmem:[%s706 + $0x20] sm:$0xff]
      %v712 = vld [vmem:[%s706 + $0x28] sm:$0xff]
      %v713 = vld [vmem:[%s706 + $0x30] sm:$0xff]
      %v714 = vld [vmem:[%s706 + $0x38] sm:$0xff]
      %v715 = vld [vmem:[%s706 + $0x40] sm:$0xff]
      %v716 = vld [vmem:[%s706 + $0x48] sm:$0xff]
      %v717 = vld [vmem:[%s706 + $0x50] sm:$0xff]
      %v718 = vld [vmem:[%s706 + $0x58] sm:$0xff]
      %s719 = scalar_lea.vmem %s2, 288
      %v720 = vld [vmem:[%s719] sm:$0xff]
      %v721 = vld [vmem:[%s719 + $0x8] sm:$0xff]
      %v722 = vld [vmem:[%s719 + $0x10] sm:$0xff]
      %v723 = vld [vmem:[%s719 + $0x18] sm:$0xff]
      %v724 = vld [vmem:[%s719 + $0x20] sm:$0xff]
      %v725 = vld [vmem:[%s719 + $0x28] sm:$0xff]
      %v726 = vld [vmem:[%s719 + $0x30] sm:$0xff]
      %v727 = vld [vmem:[%s719 + $0x38] sm:$0xff]
      %v728 = vld [vmem:[%s719 + $0x40] sm:$0xff]
      %v729 = vld [vmem:[%s719 + $0x48] sm:$0xff]
      %v730 = vld [vmem:[%s719 + $0x50] sm:$0xff]
      %v731 = vld [vmem:[%s719 + $0x58] sm:$0xff]
      %732 = vmatprep.subr.mxu0 0.0
      %733 = vmatpush1.msra.mxu0 0.0
      %734 = vmatprep.subr.mxu0 0.0
      %735 = vmatpush1.msra.mxu0 0.0
      %736 = vmatprep.subr.mxu0 0.0
      %737 = vmatpush1.msra.mxu0 0.0
      %738 = vmatprep.subr.mxu0 0.0
      %739 = vmatpush1.msra.mxu0 0.0
      %740 = vmatprep.subr.mxu0 0.0
      %741 = vmatpush1.msra.mxu0 %v731
      %742 = vmatprep.subr.mxu0 0.0
      %743 = vmatpush1.msra.mxu0 %v730
      %744 = vmatprep.subr.mxu0 0.0
      %745 = vmatpush1.msra.mxu0 %v729
      %746 = vmatprep.subr.mxu0 0.0
      %747 = vmatpush1.msra.mxu0 %v728
      %748 = vmatprep.subr.mxu0 0.0
      %749 = vmatpush1.msra.mxu0 %v727
      %750 = vmatprep.subr.mxu0 0.0
      %751 = vmatpush1.msra.mxu0 %v726
      %752 = vmatprep.subr.mxu0 0.0
      %753 = vmatpush1.msra.mxu0 %v725
      %754 = vmatprep.subr.mxu0 0.0
      %755 = vmatpush1.msra.mxu0 %v724
      %756 = vmatprep.subr.mxu0 0.0
      %757 = vmatpush1.msra.mxu0 %v723
      %758 = vmatprep.subr.mxu0 0.0
      %759 = vmatpush1.msra.mxu0 %v722
      %760 = vmatprep.subr.mxu0 0.0
      %761 = vmatpush1.msra.mxu0 %v721
      %762 = vmatprep.subr.mxu0 0.0
      %763 = vmatpush1.msra.mxu0 %v720
      %764 = vmatprep.subr.mxu0 0.0
      %765 = vmatpush2.msra.mxu0 0.0
      %766 = vmatprep.subr.mxu0 0.0
      %767 = vmatpush2.msra.mxu0 0.0
      %768 = vmatprep.subr.mxu0 0.0
      %769 = vmatpush2.msra.mxu0 0.0
      %770 = vmatprep.subr.mxu0 0.0
      %771 = vmatpush2.msra.mxu0 0.0
      %772 = vmatprep.subr.mxu0 0.0
      %773 = vmatpush2.msra.mxu0 0.0
      %774 = vmatprep.subr.mxu0 0.0
      %775 = vmatpush2.msra.mxu0 0.0
      %776 = vmatprep.subr.mxu0 0.0
      %777 = vmatpush2.msra.mxu0 0.0
      %778 = vmatprep.subr.mxu0 0.0
      %779 = vmatpush2.msra.mxu0 0.0
      %780 = vmatprep.subr.mxu0 0.0
      %781 = vmatpush2.msra.mxu0 0.0
      %782 = vmatprep.subr.mxu0 0.0
      %783 = vmatpush2.msra.mxu0 0.0
      %784 = vmatprep.subr.mxu0 0.0
      %785 = vmatpush2.msra.mxu0 0.0
      %786 = vmatprep.subr.mxu0 0.0
      %787 = vmatpush2.msra.mxu0 0.0
      %788 = vmatprep.subr.mxu0 0.0
      %789 = vmatpush2.msra.mxu0 0.0
      %790 = vmatprep.subr.mxu0 0.0
      %791 = vmatpush2.msra.mxu0 0.0
      %792 = vmatprep.subr.mxu0 0.0
      %793 = vmatpush2.msra.mxu0 0.0
      %794 = vmatprep.subr.mxu0 0.0
      %795 = vmatpush2.msra.mxu0 0.0
      %796 = vmatprep.mubr.f32.mxu0 0.0
      %797 = vmatmul.mubr.f32.gmra.mxu0 %v257
      %v798 = vpop.f32.mrf.mxu0
      %v799 = vadd.f32 0.0, %v798
      %v800 = vpop.f32.mrf.mxu0
      %801 = vmatprep.mubr.f32.mxu0 0.0
      %802 = vmatmul.mubr.f32.gmra.mxu0 %v260
      %v803 = vpop.f32.mrf.mxu0
      %v804 = vadd.f32 0.0, %v803
      %v805 = vpop.f32.mrf.mxu0
      %806 = vdwg.mxu0
      %807 = vmatprep.subr.mxu0 0.0
      %808 = vmatpush1.msra.mxu0 0.0
      %809 = vmatprep.subr.mxu0 0.0
      %810 = vmatpush1.msra.mxu0 0.0
      %811 = vmatprep.subr.mxu0 0.0
      %812 = vmatpush1.msra.mxu0 0.0
      %813 = vmatprep.subr.mxu0 0.0
      %814 = vmatpush1.msra.mxu0 0.0
      %815 = vmatprep.subr.mxu0 0.0
      %816 = vmatpush1.msra.mxu0 %v718
      %817 = vmatprep.subr.mxu0 0.0
      %818 = vmatpush1.msra.mxu0 %v717
      %819 = vmatprep.subr.mxu0 0.0
      %820 = vmatpush1.msra.mxu0 %v716
      %821 = vmatprep.subr.mxu0 0.0
      %822 = vmatpush1.msra.mxu0 %v715
      %823 = vmatprep.subr.mxu0 0.0
      %824 = vmatpush1.msra.mxu0 %v714
      %825 = vmatprep.subr.mxu0 0.0
      %826 = vmatpush1.msra.mxu0 %v713
      %827 = vmatprep.subr.mxu0 0.0
      %828 = vmatpush1.msra.mxu0 %v712
      %829 = vmatprep.subr.mxu0 0.0
      %830 = vmatpush1.msra.mxu0 %v711
      %831 = vmatprep.subr.mxu0 0.0
      %832 = vmatpush1.msra.mxu0 %v710
      %833 = vmatprep.subr.mxu0 0.0
      %834 = vmatpush1.msra.mxu0 %v709
      %835 = vmatprep.subr.mxu0 0.0
      %836 = vmatpush1.msra.mxu0 %v708
      %837 = vmatprep.subr.mxu0 0.0
      %838 = vmatpush1.msra.mxu0 %v707
      %839 = vmatprep.subr.mxu0 0.0
      %840 = vmatpush2.msra.mxu0 0.0
      %841 = vmatprep.subr.mxu0 0.0
      %842 = vmatpush2.msra.mxu0 0.0
      %843 = vmatprep.subr.mxu0 0.0
      %844 = vmatpush2.msra.mxu0 0.0
      %845 = vmatprep.subr.mxu0 0.0
      %846 = vmatpush2.msra.mxu0 0.0
      %847 = vmatprep.subr.mxu0 0.0
      %848 = vmatpush2.msra.mxu0 0.0
      %849 = vmatprep.subr.mxu0 0.0
      %850 = vmatpush2.msra.mxu0 0.0
      %851 = vmatprep.subr.mxu0 0.0
      %852 = vmatpush2.msra.mxu0 0.0
      %853 = vmatprep.subr.mxu0 0.0
      %854 = vmatpush2.msra.mxu0 0.0
      %855 = vmatprep.subr.mxu0 0.0
      %856 = vmatpush2.msra.mxu0 0.0
      %857 = vmatprep.subr.mxu0 0.0
      %858 = vmatpush2.msra.mxu0 0.0
      %859 = vmatprep.subr.mxu0 0.0
      %860 = vmatpush2.msra.mxu0 0.0
      %861 = vmatprep.subr.mxu0 0.0
      %862 = vmatpush2.msra.mxu0 0.0
      %863 = vmatprep.subr.mxu0 0.0
      %864 = vmatpush2.msra.mxu0 0.0
      %865 = vmatprep.subr.mxu0 0.0
      %866 = vmatpush2.msra.mxu0 0.0
      %867 = vmatprep.subr.mxu0 0.0
      %868 = vmatpush2.msra.mxu0 0.0
      %869 = vmatprep.subr.mxu0 0.0
      %870 = vmatpush2.msra.mxu0 0.0
      %871 = vmatprep.mubr.f32.mxu0 0.0
      %872 = vmatmul.mubr.f32.gmra.mxu0 %v338
      %v873 = vpop.f32.mrf.mxu0
      %v874 = vadd.f32 %v799, %v873
      %v875 = vpop.f32.mrf.mxu0
      %876 = vmatprep.mubr.f32.mxu0 0.0
      %877 = vmatmul.mubr.f32.gmra.mxu0 %v341
      %v878 = vpop.f32.mrf.mxu0
      %v879 = vadd.f32 %v804, %v878
      %v880 = vpop.f32.mrf.mxu0
      %881 = vdwg.mxu0
      %s882 = scalar_lea.vmem %s2, 480
      %v883 = vld [vmem:[%s882] sm:$0xff]
      %v884 = vld [vmem:[%s882 + $0x8] sm:$0xff]
      %v885 = vld [vmem:[%s882 + $0x10] sm:$0xff]
      %v886 = vld [vmem:[%s882 + $0x18] sm:$0xff]
      %v887 = vld [vmem:[%s882 + $0x20] sm:$0xff]
      %v888 = vld [vmem:[%s882 + $0x28] sm:$0xff]
      %v889 = vld [vmem:[%s882 + $0x30] sm:$0xff]
      %v890 = vld [vmem:[%s882 + $0x38] sm:$0xff]
      %v891 = vld [vmem:[%s882 + $0x40] sm:$0xff]
      %v892 = vld [vmem:[%s882 + $0x48] sm:$0xff]
      %v893 = vld [vmem:[%s882 + $0x50] sm:$0xff]
      %v894 = vld [vmem:[%s882 + $0x58] sm:$0xff]
      %895 = vmatprep.subr.mxu0 0.0
      %896 = vmatpush1.msra.mxu0 0.0
      %897 = vmatprep.subr.mxu0 0.0
      %898 = vmatpush1.msra.mxu0 0.0
      %899 = vmatprep.subr.mxu0 0.0
      %900 = vmatpush1.msra.mxu0 0.0
      %901 = vmatprep.subr.mxu0 0.0
      %902 = vmatpush1.msra.mxu0 0.0
      %903 = vmatprep.subr.mxu0 0.0
      %904 = vmatpush1.msra.mxu0 %v894
      %905 = vmatprep.subr.mxu0 0.0
      %906 = vmatpush1.msra.mxu0 %v893
      %907 = vmatprep.subr.mxu0 0.0
      %908 = vmatpush1.msra.mxu0 %v892
      %909 = vmatprep.subr.mxu0 0.0
      %910 = vmatpush1.msra.mxu0 %v891
      %911 = vmatprep.subr.mxu0 0.0
      %912 = vmatpush1.msra.mxu0 %v890
      %913 = vmatprep.subr.mxu0 0.0
      %914 = vmatpush1.msra.mxu0 %v889
      %915 = vmatprep.subr.mxu0 0.0
      %916 = vmatpush1.msra.mxu0 %v888
      %917 = vmatprep.subr.mxu0 0.0
      %918 = vmatpush1.msra.mxu0 %v887
      %919 = vmatprep.subr.mxu0 0.0
      %920 = vmatpush1.msra.mxu0 %v886
      %921 = vmatprep.subr.mxu0 0.0
      %922 = vmatpush1.msra.mxu0 %v885
      %923 = vmatprep.subr.mxu0 0.0
      %924 = vmatpush1.msra.mxu0 %v884
      %925 = vmatprep.subr.mxu0 0.0
      %926 = vmatpush1.msra.mxu0 %v883
      %927 = vmatprep.subr.mxu0 0.0
      %928 = vmatpush2.msra.mxu0 0.0
      %929 = vmatprep.subr.mxu0 0.0
      %930 = vmatpush2.msra.mxu0 0.0
      %931 = vmatprep.subr.mxu0 0.0
      %932 = vmatpush2.msra.mxu0 0.0
      %933 = vmatprep.subr.mxu0 0.0
      %934 = vmatpush2.msra.mxu0 0.0
      %935 = vmatprep.subr.mxu0 0.0
      %936 = vmatpush2.msra.mxu0 0.0
      %937 = vmatprep.subr.mxu0 0.0
      %938 = vmatpush2.msra.mxu0 0.0
      %939 = vmatprep.subr.mxu0 0.0
      %940 = vmatpush2.msra.mxu0 0.0
      %941 = vmatprep.subr.mxu0 0.0
      %942 = vmatpush2.msra.mxu0 0.0
      %943 = vmatprep.subr.mxu0 0.0
      %944 = vmatpush2.msra.mxu0 0.0
      %945 = vmatprep.subr.mxu0 0.0
      %946 = vmatpush2.msra.mxu0 0.0
      %947 = vmatprep.subr.mxu0 0.0
      %948 = vmatpush2.msra.mxu0 0.0
      %949 = vmatprep.subr.mxu0 0.0
      %950 = vmatpush2.msra.mxu0 0.0
      %951 = vmatprep.subr.mxu0 0.0
      %952 = vmatpush2.msra.mxu0 0.0
      %953 = vmatprep.subr.mxu0 0.0
      %954 = vmatpush2.msra.mxu0 0.0
      %955 = vmatprep.subr.mxu0 0.0
      %956 = vmatpush2.msra.mxu0 0.0
      %957 = vmatprep.subr.mxu0 0.0
      %958 = vmatpush2.msra.mxu0 0.0
      %959 = vmatprep.mubr.f32.mxu0 0.0
      %960 = vmatmul.mubr.f32.gmra.mxu0 %v432
      %v961 = vpop.f32.mrf.mxu0
      %v962 = vadd.f32 0.0, %v961
      %v963 = vpop.f32.mrf.mxu0
      %964 = vmatprep.mubr.f32.mxu0 0.0
      %965 = vmatmul.mubr.f32.gmra.mxu0 %v435
      %v966 = vpop.f32.mrf.mxu0
      %v967 = vadd.f32 0.0, %v966
      %v968 = vpop.f32.mrf.mxu0
      %969 = vdwg.mxu0
      %v970 = vadd.f32 %v874, %v962
      %v971 = vadd.f32 %v879, %v967
      %s972 = scalar_lea.vmem %s2, 672
      %v973 = vld [vmem:[%s972] sm:$0xff]
      %v974 = vld [vmem:[%s972 + $0x8] sm:$0xff]
      %v975 = vld [vmem:[%s972 + $0x10] sm:$0xff]
      %v976 = vld [vmem:[%s972 + $0x18] sm:$0xff]
      %v977 = vld [vmem:[%s972 + $0x20] sm:$0xff]
      %v978 = vld [vmem:[%s972 + $0x28] sm:$0xff]
      %v979 = vld [vmem:[%s972 + $0x30] sm:$0xff]
      %v980 = vld [vmem:[%s972 + $0x38] sm:$0xff]
      %v981 = vld [vmem:[%s972 + $0x40] sm:$0xff]
      %v982 = vld [vmem:[%s972 + $0x48] sm:$0xff]
      %v983 = vld [vmem:[%s972 + $0x50] sm:$0xff]
      %v984 = vld [vmem:[%s972 + $0x58] sm:$0xff]
      %985 = vmatprep.subr.mxu0 0.0
      %986 = vmatpush1.msra.mxu0 0.0
      %987 = vmatprep.subr.mxu0 0.0
      %988 = vmatpush1.msra.mxu0 0.0
      %989 = vmatprep.subr.mxu0 0.0
      %990 = vmatpush1.msra.mxu0 0.0
      %991 = vmatprep.subr.mxu0 0.0
      %992 = vmatpush1.msra.mxu0 0.0
      %993 = vmatprep.subr.mxu0 0.0
      %994 = vmatpush1.msra.mxu0 %v984
      %995 = vmatprep.subr.mxu0 0.0
      %996 = vmatpush1.msra.mxu0 %v983
      %997 = vmatprep.subr.mxu0 0.0
      %998 = vmatpush1.msra.mxu0 %v982
      %999 = vmatprep.subr.mxu0 0.0
      %1000 = vmatpush1.msra.mxu0 %v981
      %1001 = vmatprep.subr.mxu0 0.0
      %1002 = vmatpush1.msra.mxu0 %v980
      %1003 = vmatprep.subr.mxu0 0.0
      %1004 = vmatpush1.msra.mxu0 %v979
      %1005 = vmatprep.subr.mxu0 0.0
      %1006 = vmatpush1.msra.mxu0 %v978
      %1007 = vmatprep.subr.mxu0 0.0
      %1008 = vmatpush1.msra.mxu0 %v977
      %1009 = vmatprep.subr.mxu0 0.0
      %1010 = vmatpush1.msra.mxu0 %v976
      %1011 = vmatprep.subr.mxu0 0.0
      %1012 = vmatpush1.msra.mxu0 %v975
      %1013 = vmatprep.subr.mxu0 0.0
      %1014 = vmatpush1.msra.mxu0 %v974
      %1015 = vmatprep.subr.mxu0 0.0
      %1016 = vmatpush1.msra.mxu0 %v973
      %1017 = vmatprep.subr.mxu0 0.0
      %1018 = vmatpush2.msra.mxu0 0.0
      %1019 = vmatprep.subr.mxu0 0.0
      %1020 = vmatpush2.msra.mxu0 0.0
      %1021 = vmatprep.subr.mxu0 0.0
      %1022 = vmatpush2.msra.mxu0 0.0
      %1023 = vmatprep.subr.mxu0 0.0
      %1024 = vmatpush2.msra.mxu0 0.0
      %1025 = vmatprep.subr.mxu0 0.0
      %1026 = vmatpush2.msra.mxu0 0.0
      %1027 = vmatprep.subr.mxu0 0.0
      %1028 = vmatpush2.msra.mxu0 0.0
      %1029 = vmatprep.subr.mxu0 0.0
      %1030 = vmatpush2.msra.mxu0 0.0
      %1031 = vmatprep.subr.mxu0 0.0
      %1032 = vmatpush2.msra.mxu0 0.0
      %1033 = vmatprep.subr.mxu0 0.0
      %1034 = vmatpush2.msra.mxu0 0.0
      %1035 = vmatprep.subr.mxu0 0.0
      %1036 = vmatpush2.msra.mxu0 0.0
      %1037 = vmatprep.subr.mxu0 0.0
      %1038 = vmatpush2.msra.mxu0 0.0
      %1039 = vmatprep.subr.mxu0 0.0
      %1040 = vmatpush2.msra.mxu0 0.0
      %1041 = vmatprep.subr.mxu0 0.0
      %1042 = vmatpush2.msra.mxu0 0.0
      %1043 = vmatprep.subr.mxu0 0.0
      %1044 = vmatpush2.msra.mxu0 0.0
      %1045 = vmatprep.subr.mxu0 0.0
      %1046 = vmatpush2.msra.mxu0 0.0
      %1047 = vmatprep.subr.mxu0 0.0
      %1048 = vmatpush2.msra.mxu0 0.0
      %1049 = vmatprep.mubr.f32.mxu0 0.0
      %1050 = vmatmul.mubr.f32.gmra.mxu0 %v528
      %v1051 = vpop.f32.mrf.mxu0
      %v1052 = vadd.f32 0.0, %v1051
      %v1053 = vpop.f32.mrf.mxu0
      %1054 = vmatprep.mubr.f32.mxu0 0.0
      %1055 = vmatmul.mubr.f32.gmra.mxu0 %v531
      %v1056 = vpop.f32.mrf.mxu0
      %v1057 = vadd.f32 0.0, %v1056
      %v1058 = vpop.f32.mrf.mxu0
      %1059 = vdwg.mxu0
      %v1060 = vadd.f32 %v970, %v1052
      %v1061 = vadd.f32 %v971, %v1057
      %s1062 = scalar_lea.vmem %s2, 864
      %v1063 = vld [vmem:[%s1062] sm:$0xff]
      %v1064 = vld [vmem:[%s1062 + $0x8] sm:$0xff]
      %v1065 = vld [vmem:[%s1062 + $0x10] sm:$0xff]
      %v1066 = vld [vmem:[%s1062 + $0x18] sm:$0xff]
      %v1067 = vld [vmem:[%s1062 + $0x20] sm:$0xff]
      %v1068 = vld [vmem:[%s1062 + $0x28] sm:$0xff]
      %v1069 = vld [vmem:[%s1062 + $0x30] sm:$0xff]
      %v1070 = vld [vmem:[%s1062 + $0x38] sm:$0xff]
      %v1071 = vld [vmem:[%s1062 + $0x40] sm:$0xff]
      %v1072 = vld [vmem:[%s1062 + $0x48] sm:$0xff]
      %v1073 = vld [vmem:[%s1062 + $0x50] sm:$0xff]
      %v1074 = vld [vmem:[%s1062 + $0x58] sm:$0xff]
      %1075 = vmatprep.subr.mxu0 0.0
      %1076 = vmatpush1.msra.mxu0 0.0
      %1077 = vmatprep.subr.mxu0 0.0
      %1078 = vmatpush1.msra.mxu0 0.0
      %1079 = vmatprep.subr.mxu0 0.0
      %1080 = vmatpush1.msra.mxu0 0.0
      %1081 = vmatprep.subr.mxu0 0.0
      %1082 = vmatpush1.msra.mxu0 0.0
      %1083 = vmatprep.subr.mxu0 0.0
      %1084 = vmatpush1.msra.mxu0 %v1074
      %1085 = vmatprep.subr.mxu0 0.0
      %1086 = vmatpush1.msra.mxu0 %v1073
      %1087 = vmatprep.subr.mxu0 0.0
      %1088 = vmatpush1.msra.mxu0 %v1072
      %1089 = vmatprep.subr.mxu0 0.0
      %1090 = vmatpush1.msra.mxu0 %v1071
      %1091 = vmatprep.subr.mxu0 0.0
      %1092 = vmatpush1.msra.mxu0 %v1070
      %1093 = vmatprep.subr.mxu0 0.0
      %1094 = vmatpush1.msra.mxu0 %v1069
      %1095 = vmatprep.subr.mxu0 0.0
      %1096 = vmatpush1.msra.mxu0 %v1068
      %1097 = vmatprep.subr.mxu0 0.0
      %1098 = vmatpush1.msra.mxu0 %v1067
      %1099 = vmatprep.subr.mxu0 0.0
      %1100 = vmatpush1.msra.mxu0 %v1066
      %1101 = vmatprep.subr.mxu0 0.0
      %1102 = vmatpush1.msra.mxu0 %v1065
      %1103 = vmatprep.subr.mxu0 0.0
      %1104 = vmatpush1.msra.mxu0 %v1064
      %1105 = vmatprep.subr.mxu0 0.0
      %1106 = vmatpush1.msra.mxu0 %v1063
      %1107 = vmatprep.subr.mxu0 0.0
      %1108 = vmatpush2.msra.mxu0 0.0
      %1109 = vmatprep.subr.mxu0 0.0
      %1110 = vmatpush2.msra.mxu0 0.0
      %1111 = vmatprep.subr.mxu0 0.0
      %1112 = vmatpush2.msra.mxu0 0.0
      %1113 = vmatprep.subr.mxu0 0.0
      %1114 = vmatpush2.msra.mxu0 0.0
      %1115 = vmatprep.subr.mxu0 0.0
      %1116 = vmatpush2.msra.mxu0 0.0
      %1117 = vmatprep.subr.mxu0 0.0
      %1118 = vmatpush2.msra.mxu0 0.0
      %1119 = vmatprep.subr.mxu0 0.0
      %1120 = vmatpush2.msra.mxu0 0.0
      %1121 = vmatprep.subr.mxu0 0.0
      %1122 = vmatpush2.msra.mxu0 0.0
      %1123 = vmatprep.subr.mxu0 0.0
      %1124 = vmatpush2.msra.mxu0 0.0
      %1125 = vmatprep.subr.mxu0 0.0
      %1126 = vmatpush2.msra.mxu0 0.0
      %1127 = vmatprep.subr.mxu0 0.0
      %1128 = vmatpush2.msra.mxu0 0.0
      %1129 = vmatprep.subr.mxu0 0.0
      %1130 = vmatpush2.msra.mxu0 0.0
      %1131 = vmatprep.subr.mxu0 0.0
      %1132 = vmatpush2.msra.mxu0 0.0
      %1133 = vmatprep.subr.mxu0 0.0
      %1134 = vmatpush2.msra.mxu0 0.0
      %1135 = vmatprep.subr.mxu0 0.0
      %1136 = vmatpush2.msra.mxu0 0.0
      %1137 = vmatprep.subr.mxu0 0.0
      %1138 = vmatpush2.msra.mxu0 0.0
      %1139 = vmatprep.mubr.f32.mxu0 0.0
      %1140 = vmatmul.mubr.f32.gmra.mxu0 %v624
      %v1141 = vpop.f32.mrf.mxu0
      %v1142 = vadd.f32 0.0, %v1141
      %v1143 = vpop.f32.mrf.mxu0
      %1144 = vmatprep.mubr.f32.mxu0 0.0
      %1145 = vmatmul.mubr.f32.gmra.mxu0 %v627
      %v1146 = vpop.f32.mrf.mxu0
      %v1147 = vadd.f32 0.0, %v1146
      %v1148 = vpop.f32.mrf.mxu0
      %1149 = vdwg.mxu0
      %v1150 = vadd.f32 %v1060, %v1142
      %v1151 = vadd.f32 %v1061, %v1147
      %v1152 = vmax.f32 %v704, %v1150
      %v1153 = vmax.f32 %v705, %v1151
      %1154 = vmatprep.subr.mxu0 0.0
      %1155 = vmatpush1.msra.mxu0 0.0
      %1156 = vmatprep.subr.mxu0 0.0
      %1157 = vmatpush1.msra.mxu0 0.0
      %1158 = vmatprep.subr.mxu0 0.0
      %1159 = vmatpush1.msra.mxu0 0.0
      %1160 = vmatprep.subr.mxu0 0.0
      %1161 = vmatpush1.msra.mxu0 0.0
      %1162 = vmatprep.subr.mxu0 0.0
      %1163 = vmatpush1.msra.mxu0 %v254
      %1164 = vmatprep.subr.mxu0 0.0
      %1165 = vmatpush1.msra.mxu0 %v253
      %1166 = vmatprep.subr.mxu0 0.0
      %1167 = vmatpush1.msra.mxu0 %v252
      %1168 = vmatprep.subr.mxu0 0.0
      %1169 = vmatpush1.msra.mxu0 %v251
      %1170 = vmatprep.subr.mxu0 0.0
      %1171 = vmatpush1.msra.mxu0 %v250
      %1172 = vmatprep.subr.mxu0 0.0
      %1173 = vmatpush1.msra.mxu0 %v249
      %1174 = vmatprep.subr.mxu0 0.0
      %1175 = vmatpush1.msra.mxu0 %v248
      %1176 = vmatprep.subr.mxu0 0.0
      %1177 = vmatpush1.msra.mxu0 %v247
      %1178 = vmatprep.subr.mxu0 0.0
      %1179 = vmatpush1.msra.mxu0 %v246
      %1180 = vmatprep.subr.mxu0 0.0
      %1181 = vmatpush1.msra.mxu0 %v245
      %1182 = vmatprep.subr.mxu0 0.0
      %1183 = vmatpush1.msra.mxu0 %v244
      %1184 = vmatprep.subr.mxu0 0.0
      %1185 = vmatpush1.msra.mxu0 %v243
      %1186 = vmatprep.subr.mxu0 0.0
      %1187 = vmatpush2.msra.mxu0 0.0
      %1188 = vmatprep.subr.mxu0 0.0
      %1189 = vmatpush2.msra.mxu0 0.0
      %1190 = vmatprep.subr.mxu0 0.0
      %1191 = vmatpush2.msra.mxu0 0.0
      %1192 = vmatprep.subr.mxu0 0.0
      %1193 = vmatpush2.msra.mxu0 0.0
      %1194 = vmatprep.subr.mxu0 0.0
      %1195 = vmatpush2.msra.mxu0 0.0
      %1196 = vmatprep.subr.mxu0 0.0
      %1197 = vmatpush2.msra.mxu0 0.0
      %1198 = vmatprep.subr.mxu0 0.0
      %1199 = vmatpush2.msra.mxu0 0.0
      %1200 = vmatprep.subr.mxu0 0.0
      %1201 = vmatpush2.msra.mxu0 0.0
      %1202 = vmatprep.subr.mxu0 0.0
      %1203 = vmatpush2.msra.mxu0 0.0
      %1204 = vmatprep.subr.mxu0 0.0
      %1205 = vmatpush2.msra.mxu0 0.0
      %1206 = vmatprep.subr.mxu0 0.0
      %1207 = vmatpush2.msra.mxu0 0.0
      %1208 = vmatprep.subr.mxu0 0.0
      %1209 = vmatpush2.msra.mxu0 0.0
      %1210 = vmatprep.subr.mxu0 0.0
      %1211 = vmatpush2.msra.mxu0 0.0
      %1212 = vmatprep.subr.mxu0 0.0
      %1213 = vmatpush2.msra.mxu0 0.0
      %1214 = vmatprep.subr.mxu0 0.0
      %1215 = vmatpush2.msra.mxu0 0.0
      %1216 = vmatprep.subr.mxu0 0.0
      %1217 = vmatpush2.msra.mxu0 0.0
      %1218 = vmatprep.mubr.f32.mxu0 0.0
      %1219 = vmatmul.mubr.f32.gmra.mxu0 %v432
      %v1220 = vpop.f32.mrf.mxu0
      %v1221 = vadd.f32 0.0, %v1220
      %v1222 = vpop.f32.mrf.mxu0
      %1223 = vmatprep.mubr.f32.mxu0 0.0
      %1224 = vmatmul.mubr.f32.gmra.mxu0 %v435
      %v1225 = vpop.f32.mrf.mxu0
      %v1226 = vadd.f32 0.0, %v1225
      %v1227 = vpop.f32.mrf.mxu0
      %1228 = vdwg.mxu0
      %1229 = vmatprep.subr.mxu0 0.0
      %1230 = vmatpush1.msra.mxu0 0.0
      %1231 = vmatprep.subr.mxu0 0.0
      %1232 = vmatpush1.msra.mxu0 0.0
      %1233 = vmatprep.subr.mxu0 0.0
      %1234 = vmatpush1.msra.mxu0 0.0
      %1235 = vmatprep.subr.mxu0 0.0
      %1236 = vmatpush1.msra.mxu0 0.0
      %1237 = vmatprep.subr.mxu0 0.0
      %1238 = vmatpush1.msra.mxu0 %v241
      %1239 = vmatprep.subr.mxu0 0.0
      %1240 = vmatpush1.msra.mxu0 %v240
      %1241 = vmatprep.subr.mxu0 0.0
      %1242 = vmatpush1.msra.mxu0 %v239
      %1243 = vmatprep.subr.mxu0 0.0
      %1244 = vmatpush1.msra.mxu0 %v238
      %1245 = vmatprep.subr.mxu0 0.0
      %1246 = vmatpush1.msra.mxu0 %v237
      %1247 = vmatprep.subr.mxu0 0.0
      %1248 = vmatpush1.msra.mxu0 %v236
      %1249 = vmatprep.subr.mxu0 0.0
      %1250 = vmatpush1.msra.mxu0 %v235
      %1251 = vmatprep.subr.mxu0 0.0
      %1252 = vmatpush1.msra.mxu0 %v234
      %1253 = vmatprep.subr.mxu0 0.0
      %1254 = vmatpush1.msra.mxu0 %v233
      %1255 = vmatprep.subr.mxu0 0.0
      %1256 = vmatpush1.msra.mxu0 %v232
      %1257 = vmatprep.subr.mxu0 0.0
      %1258 = vmatpush1.msra.mxu0 %v231
      %1259 = vmatprep.subr.mxu0 0.0
      %1260 = vmatpush1.msra.mxu0 %v230
      %1261 = vmatprep.subr.mxu0 0.0
      %1262 = vmatpush2.msra.mxu0 0.0
      %1263 = vmatprep.subr.mxu0 0.0
      %1264 = vmatpush2.msra.mxu0 0.0
      %1265 = vmatprep.subr.mxu0 0.0
      %1266 = vmatpush2.msra.mxu0 0.0
      %1267 = vmatprep.subr.mxu0 0.0
      %1268 = vmatpush2.msra.mxu0 0.0
      %1269 = vmatprep.subr.mxu0 0.0
      %1270 = vmatpush2.msra.mxu0 0.0
      %1271 = vmatprep.subr.mxu0 0.0
      %1272 = vmatpush2.msra.mxu0 0.0
      %1273 = vmatprep.subr.mxu0 0.0
      %1274 = vmatpush2.msra.mxu0 0.0
      %1275 = vmatprep.subr.mxu0 0.0
      %1276 = vmatpush2.msra.mxu0 0.0
      %1277 = vmatprep.subr.mxu0 0.0
      %1278 = vmatpush2.msra.mxu0 0.0
      %1279 = vmatprep.subr.mxu0 0.0
      %1280 = vmatpush2.msra.mxu0 0.0
      %1281 = vmatprep.subr.mxu0 0.0
      %1282 = vmatpush2.msra.mxu0 0.0
      %1283 = vmatprep.subr.mxu0 0.0
      %1284 = vmatpush2.msra.mxu0 0.0
      %1285 = vmatprep.subr.mxu0 0.0
      %1286 = vmatpush2.msra.mxu0 0.0
      %1287 = vmatprep.subr.mxu0 0.0
      %1288 = vmatpush2.msra.mxu0 0.0
      %1289 = vmatprep.subr.mxu0 0.0
      %1290 = vmatpush2.msra.mxu0 0.0
      %1291 = vmatprep.subr.mxu0 0.0
      %1292 = vmatpush2.msra.mxu0 0.0
      %1293 = vmatprep.mubr.f32.mxu0 0.0
      %1294 = vmatmul.mubr.f32.gmra.mxu0 %v257
      %v1295 = vpop.f32.mrf.mxu0
      %v1296 = vadd.f32 %v1221, %v1295
      %v1297 = vpop.f32.mrf.mxu0
      %1298 = vmatprep.mubr.f32.mxu0 0.0
      %1299 = vmatmul.mubr.f32.gmra.mxu0 %v260
      %v1300 = vpop.f32.mrf.mxu0
      %v1301 = vadd.f32 %v1226, %v1300
      %v1302 = vpop.f32.mrf.mxu0
      %1303 = vdwg.mxu0
      %1304 = vmatprep.subr.mxu0 0.0
      %1305 = vmatpush1.msra.mxu0 0.0
      %1306 = vmatprep.subr.mxu0 0.0
      %1307 = vmatpush1.msra.mxu0 0.0
      %1308 = vmatprep.subr.mxu0 0.0
      %1309 = vmatpush1.msra.mxu0 0.0
      %1310 = vmatprep.subr.mxu0 0.0
      %1311 = vmatpush1.msra.mxu0 0.0
      %1312 = vmatprep.subr.mxu0 0.0
      %1313 = vmatpush1.msra.mxu0 %v430
      %1314 = vmatprep.subr.mxu0 0.0
      %1315 = vmatpush1.msra.mxu0 %v429
      %1316 = vmatprep.subr.mxu0 0.0
      %1317 = vmatpush1.msra.mxu0 %v428
      %1318 = vmatprep.subr.mxu0 0.0
      %1319 = vmatpush1.msra.mxu0 %v427
      %1320 = vmatprep.subr.mxu0 0.0
      %1321 = vmatpush1.msra.mxu0 %v426
      %1322 = vmatprep.subr.mxu0 0.0
      %1323 = vmatpush1.msra.mxu0 %v425
      %1324 = vmatprep.subr.mxu0 0.0
      %1325 = vmatpush1.msra.mxu0 %v424
      %1326 = vmatprep.subr.mxu0 0.0
      %1327 = vmatpush1.msra.mxu0 %v423
      %1328 = vmatprep.subr.mxu0 0.0
      %1329 = vmatpush1.msra.mxu0 %v422
      %1330 = vmatprep.subr.mxu0 0.0
      %1331 = vmatpush1.msra.mxu0 %v421
      %1332 = vmatprep.subr.mxu0 0.0
      %1333 = vmatpush1.msra.mxu0 %v420
      %1334 = vmatprep.subr.mxu0 0.0
      %1335 = vmatpush1.msra.mxu0 %v419
      %1336 = vmatprep.subr.mxu0 0.0
      %1337 = vmatpush2.msra.mxu0 0.0
      %1338 = vmatprep.subr.mxu0 0.0
      %1339 = vmatpush2.msra.mxu0 0.0
      %1340 = vmatprep.subr.mxu0 0.0
      %1341 = vmatpush2.msra.mxu0 0.0
      %1342 = vmatprep.subr.mxu0 0.0
      %1343 = vmatpush2.msra.mxu0 0.0
      %1344 = vmatprep.subr.mxu0 0.0
      %1345 = vmatpush2.msra.mxu0 0.0
      %1346 = vmatprep.subr.mxu0 0.0
      %1347 = vmatpush2.msra.mxu0 0.0
      %1348 = vmatprep.subr.mxu0 0.0
      %1349 = vmatpush2.msra.mxu0 0.0
      %1350 = vmatprep.subr.mxu0 0.0
      %1351 = vmatpush2.msra.mxu0 0.0
      %1352 = vmatprep.subr.mxu0 0.0
      %1353 = vmatpush2.msra.mxu0 0.0
      %1354 = vmatprep.subr.mxu0 0.0
      %1355 = vmatpush2.msra.mxu0 0.0
      %1356 = vmatprep.subr.mxu0 0.0
      %1357 = vmatpush2.msra.mxu0 0.0
      %1358 = vmatprep.subr.mxu0 0.0
      %1359 = vmatpush2.msra.mxu0 0.0
      %1360 = vmatprep.subr.mxu0 0.0
      %1361 = vmatpush2.msra.mxu0 0.0
      %1362 = vmatprep.subr.mxu0 0.0
      %1363 = vmatpush2.msra.mxu0 0.0
      %1364 = vmatprep.subr.mxu0 0.0
      %1365 = vmatpush2.msra.mxu0 0.0
      %1366 = vmatprep.subr.mxu0 0.0
      %1367 = vmatpush2.msra.mxu0 0.0
      %1368 = vmatprep.mubr.f32.mxu0 0.0
      %1369 = vmatmul.mubr.f32.gmra.mxu0 %v528
      %v1370 = vpop.f32.mrf.mxu0
      %v1371 = vadd.f32 0.0, %v1370
      %v1372 = vpop.f32.mrf.mxu0
      %1373 = vmatprep.mubr.f32.mxu0 0.0
      %1374 = vmatmul.mubr.f32.gmra.mxu0 %v531
      %v1375 = vpop.f32.mrf.mxu0
      %v1376 = vadd.f32 0.0, %v1375
      %v1377 = vpop.f32.mrf.mxu0
      %1378 = vdwg.mxu0
      %v1379 = vadd.f32 %v1296, %v1371
      %v1380 = vadd.f32 %v1301, %v1376
      %1381 = vmatprep.subr.mxu0 0.0
      %1382 = vmatpush1.msra.mxu0 0.0
      %1383 = vmatprep.subr.mxu0 0.0
      %1384 = vmatpush1.msra.mxu0 0.0
      %1385 = vmatprep.subr.mxu0 0.0
      %1386 = vmatpush1.msra.mxu0 0.0
      %1387 = vmatprep.subr.mxu0 0.0
      %1388 = vmatpush1.msra.mxu0 0.0
      %1389 = vmatprep.subr.mxu0 0.0
      %1390 = vmatpush1.msra.mxu0 %v526
      %1391 = vmatprep.subr.mxu0 0.0
      %1392 = vmatpush1.msra.mxu0 %v525
      %1393 = vmatprep.subr.mxu0 0.0
      %1394 = vmatpush1.msra.mxu0 %v524
      %1395 = vmatprep.subr.mxu0 0.0
      %1396 = vmatpush1.msra.mxu0 %v523
      %1397 = vmatprep.subr.mxu0 0.0
      %1398 = vmatpush1.msra.mxu0 %v522
      %1399 = vmatprep.subr.mxu0 0.0
      %1400 = vmatpush1.msra.mxu0 %v521
      %1401 = vmatprep.subr.mxu0 0.0
      %1402 = vmatpush1.msra.mxu0 %v520
      %1403 = vmatprep.subr.mxu0 0.0
      %1404 = vmatpush1.msra.mxu0 %v519
      %1405 = vmatprep.subr.mxu0 0.0
      %1406 = vmatpush1.msra.mxu0 %v518
      %1407 = vmatprep.subr.mxu0 0.0
      %1408 = vmatpush1.msra.mxu0 %v517
      %1409 = vmatprep.subr.mxu0 0.0
      %1410 = vmatpush1.msra.mxu0 %v516
      %1411 = vmatprep.subr.mxu0 0.0
      %1412 = vmatpush1.msra.mxu0 %v515
      %1413 = vmatprep.subr.mxu0 0.0
      %1414 = vmatpush2.msra.mxu0 0.0
      %1415 = vmatprep.subr.mxu0 0.0
      %1416 = vmatpush2.msra.mxu0 0.0
      %1417 = vmatprep.subr.mxu0 0.0
      %1418 = vmatpush2.msra.mxu0 0.0
      %1419 = vmatprep.subr.mxu0 0.0
      %1420 = vmatpush2.msra.mxu0 0.0
      %1421 = vmatprep.subr.mxu0 0.0
      %1422 = vmatpush2.msra.mxu0 0.0
      %1423 = vmatprep.subr.mxu0 0.0
      %1424 = vmatpush2.msra.mxu0 0.0
      %1425 = vmatprep.subr.mxu0 0.0
      %1426 = vmatpush2.msra.mxu0 0.0
      %1427 = vmatprep.subr.mxu0 0.0
      %1428 = vmatpush2.msra.mxu0 0.0
      %1429 = vmatprep.subr.mxu0 0.0
      %1430 = vmatpush2.msra.mxu0 0.0
      %1431 = vmatprep.subr.mxu0 0.0
      %1432 = vmatpush2.msra.mxu0 0.0
      %1433 = vmatprep.subr.mxu0 0.0
      %1434 = vmatpush2.msra.mxu0 0.0
      %1435 = vmatprep.subr.mxu0 0.0
      %1436 = vmatpush2.msra.mxu0 0.0
      %1437 = vmatprep.subr.mxu0 0.0
      %1438 = vmatpush2.msra.mxu0 0.0
      %1439 = vmatprep.subr.mxu0 0.0
      %1440 = vmatpush2.msra.mxu0 0.0
      %1441 = vmatprep.subr.mxu0 0.0
      %1442 = vmatpush2.msra.mxu0 0.0
      %1443 = vmatprep.subr.mxu0 0.0
      %1444 = vmatpush2.msra.mxu0 0.0
      %1445 = vmatprep.mubr.f32.mxu0 0.0
      %1446 = vmatmul.mubr.f32.gmra.mxu0 %v624
      %v1447 = vpop.f32.mrf.mxu0
      %v1448 = vadd.f32 0.0, %v1447
      %v1449 = vpop.f32.mrf.mxu0
      %1450 = vmatprep.mubr.f32.mxu0 0.0
      %1451 = vmatmul.mubr.f32.gmra.mxu0 %v627
      %v1452 = vpop.f32.mrf.mxu0
      %v1453 = vadd.f32 0.0, %v1452
      %v1454 = vpop.f32.mrf.mxu0
      %1455 = vdwg.mxu0
      %v1456 = vadd.f32 %v1379, %v1448
      %v1457 = vadd.f32 %v1380, %v1453
      %v1459 = vsel %vm255, %v228, 0
      %v1462 = vsel %vm255, %v229, 0
      %1464 = vmatprep.subr.mxu0 0.0
      %1465 = vmatpush1.msra.mxu0 0.0
      %1466 = vmatprep.subr.mxu0 0.0
      %1467 = vmatpush1.msra.mxu0 0.0
      %1468 = vmatprep.subr.mxu0 0.0
      %1469 = vmatpush1.msra.mxu0 0.0
      %1470 = vmatprep.subr.mxu0 0.0
      %1471 = vmatpush1.msra.mxu0 0.0
      %1472 = vmatprep.subr.mxu0 0.0
      %1473 = vmatpush1.msra.mxu0 %v622
      %1474 = vmatprep.subr.mxu0 0.0
      %1475 = vmatpush1.msra.mxu0 %v621
      %1476 = vmatprep.subr.mxu0 0.0
      %1477 = vmatpush1.msra.mxu0 %v620
      %1478 = vmatprep.subr.mxu0 0.0
      %1479 = vmatpush1.msra.mxu0 %v619
      %1480 = vmatprep.subr.mxu0 0.0
      %1481 = vmatpush1.msra.mxu0 %v618
      %1482 = vmatprep.subr.mxu0 0.0
      %1483 = vmatpush1.msra.mxu0 %v617
      %1484 = vmatprep.subr.mxu0 0.0
      %1485 = vmatpush1.msra.mxu0 %v616
      %1486 = vmatprep.subr.mxu0 0.0
      %1487 = vmatpush1.msra.mxu0 %v615
      %1488 = vmatprep.subr.mxu0 0.0
      %1489 = vmatpush1.msra.mxu0 %v614
      %1490 = vmatprep.subr.mxu0 0.0
      %1491 = vmatpush1.msra.mxu0 %v613
      %1492 = vmatprep.subr.mxu0 0.0
      %1493 = vmatpush1.msra.mxu0 %v612
      %1494 = vmatprep.subr.mxu0 0.0
      %1495 = vmatpush1.msra.mxu0 %v611
      %1496 = vmatprep.subr.mxu0 0.0
      %1497 = vmatpush2.msra.mxu0 0.0
      %1498 = vmatprep.subr.mxu0 0.0
      %1499 = vmatpush2.msra.mxu0 0.0
      %1500 = vmatprep.subr.mxu0 0.0
      %1501 = vmatpush2.msra.mxu0 0.0
      %1502 = vmatprep.subr.mxu0 0.0
      %1503 = vmatpush2.msra.mxu0 0.0
      %1504 = vmatprep.subr.mxu0 0.0
      %1505 = vmatpush2.msra.mxu0 0.0
      %1506 = vmatprep.subr.mxu0 0.0
      %1507 = vmatpush2.msra.mxu0 0.0
      %1508 = vmatprep.subr.mxu0 0.0
      %1509 = vmatpush2.msra.mxu0 0.0
      %1510 = vmatprep.subr.mxu0 0.0
      %1511 = vmatpush2.msra.mxu0 0.0
      %1512 = vmatprep.subr.mxu0 0.0
      %1513 = vmatpush2.msra.mxu0 0.0
      %1514 = vmatprep.subr.mxu0 0.0
      %1515 = vmatpush2.msra.mxu0 0.0
      %1516 = vmatprep.subr.mxu0 0.0
      %1517 = vmatpush2.msra.mxu0 0.0
      %1518 = vmatprep.subr.mxu0 0.0
      %1519 = vmatpush2.msra.mxu0 0.0
      %1520 = vmatprep.subr.mxu0 0.0
      %1521 = vmatpush2.msra.mxu0 0.0
      %1522 = vmatprep.subr.mxu0 0.0
      %1523 = vmatpush2.msra.mxu0 0.0
      %1524 = vmatprep.subr.mxu0 0.0
      %1525 = vmatpush2.msra.mxu0 0.0
      %1526 = vmatprep.subr.mxu0 0.0
      %1527 = vmatpush2.msra.mxu0 0.0
      %1528 = vmatprep.mubr.f32.mxu0 0.0
      %1529 = vmatmul.mubr.f32.gmra.mxu0 %v1459
      %v1530 = vpop.f32.mrf.mxu0
      %v1531 = vadd.f32 0.0, %v1530
      %v1532 = vpop.f32.mrf.mxu0
      %1533 = vmatprep.mubr.f32.mxu0 0.0
      %1534 = vmatmul.mubr.f32.gmra.mxu0 %v1462
      %v1535 = vpop.f32.mrf.mxu0
      %v1536 = vadd.f32 0.0, %v1535
      %v1537 = vpop.f32.mrf.mxu0
      %1538 = vdwg.mxu0
      %v1539 = vadd.f32 %v1456, %v1531
      %v1540 = vadd.f32 %v1457, %v1536
      %v1541 = vmax.f32 %v1152, %v1539
      %v1542 = vmax.f32 %v1153, %v1540
      %1543 = vmatprep.subr.mxu0 0.0
      %1544 = vmatpush1.msra.mxu0 0.0
      %1545 = vmatprep.subr.mxu0 0.0
      %1546 = vmatpush1.msra.mxu0 0.0
      %1547 = vmatprep.subr.mxu0 0.0
      %1548 = vmatpush1.msra.mxu0 0.0
      %1549 = vmatprep.subr.mxu0 0.0
      %1550 = vmatpush1.msra.mxu0 0.0
      %1551 = vmatprep.subr.mxu0 0.0
      %1552 = vmatpush1.msra.mxu0 %v731
      %1553 = vmatprep.subr.mxu0 0.0
      %1554 = vmatpush1.msra.mxu0 %v730
      %1555 = vmatprep.subr.mxu0 0.0
      %1556 = vmatpush1.msra.mxu0 %v729
      %1557 = vmatprep.subr.mxu0 0.0
      %1558 = vmatpush1.msra.mxu0 %v728
      %1559 = vmatprep.subr.mxu0 0.0
      %1560 = vmatpush1.msra.mxu0 %v727
      %1561 = vmatprep.subr.mxu0 0.0
      %1562 = vmatpush1.msra.mxu0 %v726
      %1563 = vmatprep.subr.mxu0 0.0
      %1564 = vmatpush1.msra.mxu0 %v725
      %1565 = vmatprep.subr.mxu0 0.0
      %1566 = vmatpush1.msra.mxu0 %v724
      %1567 = vmatprep.subr.mxu0 0.0
      %1568 = vmatpush1.msra.mxu0 %v723
      %1569 = vmatprep.subr.mxu0 0.0
      %1570 = vmatpush1.msra.mxu0 %v722
      %1571 = vmatprep.subr.mxu0 0.0
      %1572 = vmatpush1.msra.mxu0 %v721
      %1573 = vmatprep.subr.mxu0 0.0
      %1574 = vmatpush1.msra.mxu0 %v720
      %1575 = vmatprep.subr.mxu0 0.0
      %1576 = vmatpush2.msra.mxu0 0.0
      %1577 = vmatprep.subr.mxu0 0.0
      %1578 = vmatpush2.msra.mxu0 0.0
      %1579 = vmatprep.subr.mxu0 0.0
      %1580 = vmatpush2.msra.mxu0 0.0
      %1581 = vmatprep.subr.mxu0 0.0
      %1582 = vmatpush2.msra.mxu0 0.0
      %1583 = vmatprep.subr.mxu0 0.0
      %1584 = vmatpush2.msra.mxu0 0.0
      %1585 = vmatprep.subr.mxu0 0.0
      %1586 = vmatpush2.msra.mxu0 0.0
      %1587 = vmatprep.subr.mxu0 0.0
      %1588 = vmatpush2.msra.mxu0 0.0
      %1589 = vmatprep.subr.mxu0 0.0
      %1590 = vmatpush2.msra.mxu0 0.0
      %1591 = vmatprep.subr.mxu0 0.0
      %1592 = vmatpush2.msra.mxu0 0.0
      %1593 = vmatprep.subr.mxu0 0.0
      %1594 = vmatpush2.msra.mxu0 0.0
      %1595 = vmatprep.subr.mxu0 0.0
      %1596 = vmatpush2.msra.mxu0 0.0
      %1597 = vmatprep.subr.mxu0 0.0
      %1598 = vmatpush2.msra.mxu0 0.0
      %1599 = vmatprep.subr.mxu0 0.0
      %1600 = vmatpush2.msra.mxu0 0.0
      %1601 = vmatprep.subr.mxu0 0.0
      %1602 = vmatpush2.msra.mxu0 0.0
      %1603 = vmatprep.subr.mxu0 0.0
      %1604 = vmatpush2.msra.mxu0 0.0
      %1605 = vmatprep.subr.mxu0 0.0
      %1606 = vmatpush2.msra.mxu0 0.0
      %1607 = vmatprep.mubr.f32.mxu0 0.0
      %1608 = vmatmul.mubr.f32.gmra.mxu0 %v432
      %v1609 = vpop.f32.mrf.mxu0
      %v1610 = vadd.f32 0.0, %v1609
      %v1611 = vpop.f32.mrf.mxu0
      %1612 = vmatprep.mubr.f32.mxu0 0.0
      %1613 = vmatmul.mubr.f32.gmra.mxu0 %v435
      %v1614 = vpop.f32.mrf.mxu0
      %v1615 = vadd.f32 0.0, %v1614
      %v1616 = vpop.f32.mrf.mxu0
      %1617 = vdwg.mxu0
      %1618 = vmatprep.subr.mxu0 0.0
      %1619 = vmatpush1.msra.mxu0 0.0
      %1620 = vmatprep.subr.mxu0 0.0
      %1621 = vmatpush1.msra.mxu0 0.0
      %1622 = vmatprep.subr.mxu0 0.0
      %1623 = vmatpush1.msra.mxu0 0.0
      %1624 = vmatprep.subr.mxu0 0.0
      %1625 = vmatpush1.msra.mxu0 0.0
      %1626 = vmatprep.subr.mxu0 0.0
      %1627 = vmatpush1.msra.mxu0 %v718
      %1628 = vmatprep.subr.mxu0 0.0
      %1629 = vmatpush1.msra.mxu0 %v717
      %1630 = vmatprep.subr.mxu0 0.0
      %1631 = vmatpush1.msra.mxu0 %v716
      %1632 = vmatprep.subr.mxu0 0.0
      %1633 = vmatpush1.msra.mxu0 %v715
      %1634 = vmatprep.subr.mxu0 0.0
      %1635 = vmatpush1.msra.mxu0 %v714
      %1636 = vmatprep.subr.mxu0 0.0
      %1637 = vmatpush1.msra.mxu0 %v713
      %1638 = vmatprep.subr.mxu0 0.0
      %1639 = vmatpush1.msra.mxu0 %v712
      %1640 = vmatprep.subr.mxu0 0.0
      %1641 = vmatpush1.msra.mxu0 %v711
      %1642 = vmatprep.subr.mxu0 0.0
      %1643 = vmatpush1.msra.mxu0 %v710
      %1644 = vmatprep.subr.mxu0 0.0
      %1645 = vmatpush1.msra.mxu0 %v709
      %1646 = vmatprep.subr.mxu0 0.0
      %1647 = vmatpush1.msra.mxu0 %v708
      %1648 = vmatprep.subr.mxu0 0.0
      %1649 = vmatpush1.msra.mxu0 %v707
      %1650 = vmatprep.subr.mxu0 0.0
      %1651 = vmatpush2.msra.mxu0 0.0
      %1652 = vmatprep.subr.mxu0 0.0
      %1653 = vmatpush2.msra.mxu0 0.0
      %1654 = vmatprep.subr.mxu0 0.0
      %1655 = vmatpush2.msra.mxu0 0.0
      %1656 = vmatprep.subr.mxu0 0.0
      %1657 = vmatpush2.msra.mxu0 0.0
      %1658 = vmatprep.subr.mxu0 0.0
      %1659 = vmatpush2.msra.mxu0 0.0
      %1660 = vmatprep.subr.mxu0 0.0
      %1661 = vmatpush2.msra.mxu0 0.0
      %1662 = vmatprep.subr.mxu0 0.0
      %1663 = vmatpush2.msra.mxu0 0.0
      %1664 = vmatprep.subr.mxu0 0.0
      %1665 = vmatpush2.msra.mxu0 0.0
      %1666 = vmatprep.subr.mxu0 0.0
      %1667 = vmatpush2.msra.mxu0 0.0
      %1668 = vmatprep.subr.mxu0 0.0
      %1669 = vmatpush2.msra.mxu0 0.0
      %1670 = vmatprep.subr.mxu0 0.0
      %1671 = vmatpush2.msra.mxu0 0.0
      %1672 = vmatprep.subr.mxu0 0.0
      %1673 = vmatpush2.msra.mxu0 0.0
      %1674 = vmatprep.subr.mxu0 0.0
      %1675 = vmatpush2.msra.mxu0 0.0
      %1676 = vmatprep.subr.mxu0 0.0
      %1677 = vmatpush2.msra.mxu0 0.0
      %1678 = vmatprep.subr.mxu0 0.0
      %1679 = vmatpush2.msra.mxu0 0.0
      %1680 = vmatprep.subr.mxu0 0.0
      %1681 = vmatpush2.msra.mxu0 0.0
      %1682 = vmatprep.mubr.f32.mxu0 0.0
      %1683 = vmatmul.mubr.f32.gmra.mxu0 %v257
      %v1684 = vpop.f32.mrf.mxu0
      %v1685 = vadd.f32 %v1610, %v1684
      %v1686 = vpop.f32.mrf.mxu0
      %1687 = vmatprep.mubr.f32.mxu0 0.0
      %1688 = vmatmul.mubr.f32.gmra.mxu0 %v260
      %v1689 = vpop.f32.mrf.mxu0
      %v1690 = vadd.f32 %v1615, %v1689
      %v1691 = vpop.f32.mrf.mxu0
      %1692 = vdwg.mxu0
      %1693 = vmatprep.subr.mxu0 0.0
      %1694 = vmatpush1.msra.mxu0 0.0
      %1695 = vmatprep.subr.mxu0 0.0
      %1696 = vmatpush1.msra.mxu0 0.0
      %1697 = vmatprep.subr.mxu0 0.0
      %1698 = vmatpush1.msra.mxu0 0.0
      %1699 = vmatprep.subr.mxu0 0.0
      %1700 = vmatpush1.msra.mxu0 0.0
      %1701 = vmatprep.subr.mxu0 0.0
      %1702 = vmatpush1.msra.mxu0 %v894
      %1703 = vmatprep.subr.mxu0 0.0
      %1704 = vmatpush1.msra.mxu0 %v893
      %1705 = vmatprep.subr.mxu0 0.0
      %1706 = vmatpush1.msra.mxu0 %v892
      %1707 = vmatprep.subr.mxu0 0.0
      %1708 = vmatpush1.msra.mxu0 %v891
      %1709 = vmatprep.subr.mxu0 0.0
      %1710 = vmatpush1.msra.mxu0 %v890
      %1711 = vmatprep.subr.mxu0 0.0
      %1712 = vmatpush1.msra.mxu0 %v889
      %1713 = vmatprep.subr.mxu0 0.0
      %1714 = vmatpush1.msra.mxu0 %v888
      %1715 = vmatprep.subr.mxu0 0.0
      %1716 = vmatpush1.msra.mxu0 %v887
      %1717 = vmatprep.subr.mxu0 0.0
      %1718 = vmatpush1.msra.mxu0 %v886
      %1719 = vmatprep.subr.mxu0 0.0
      %1720 = vmatpush1.msra.mxu0 %v885
      %1721 = vmatprep.subr.mxu0 0.0
      %1722 = vmatpush1.msra.mxu0 %v884
      %1723 = vmatprep.subr.mxu0 0.0
      %1724 = vmatpush1.msra.mxu0 %v883
      %1725 = vmatprep.subr.mxu0 0.0
      %1726 = vmatpush2.msra.mxu0 0.0
      %1727 = vmatprep.subr.mxu0 0.0
      %1728 = vmatpush2.msra.mxu0 0.0
      %1729 = vmatprep.subr.mxu0 0.0
      %1730 = vmatpush2.msra.mxu0 0.0
      %1731 = vmatprep.subr.mxu0 0.0
      %1732 = vmatpush2.msra.mxu0 0.0
      %1733 = vmatprep.subr.mxu0 0.0
      %1734 = vmatpush2.msra.mxu0 0.0
      %1735 = vmatprep.subr.mxu0 0.0
      %1736 = vmatpush2.msra.mxu0 0.0
      %1737 = vmatprep.subr.mxu0 0.0
      %1738 = vmatpush2.msra.mxu0 0.0
      %1739 = vmatprep.subr.mxu0 0.0
      %1740 = vmatpush2.msra.mxu0 0.0
      %1741 = vmatprep.subr.mxu0 0.0
      %1742 = vmatpush2.msra.mxu0 0.0
      %1743 = vmatprep.subr.mxu0 0.0
      %1744 = vmatpush2.msra.mxu0 0.0
      %1745 = vmatprep.subr.mxu0 0.0
      %1746 = vmatpush2.msra.mxu0 0.0
      %1747 = vmatprep.subr.mxu0 0.0
      %1748 = vmatpush2.msra.mxu0 0.0
      %1749 = vmatprep.subr.mxu0 0.0
      %1750 = vmatpush2.msra.mxu0 0.0
      %1751 = vmatprep.subr.mxu0 0.0
      %1752 = vmatpush2.msra.mxu0 0.0
      %1753 = vmatprep.subr.mxu0 0.0
      %1754 = vmatpush2.msra.mxu0 0.0
      %1755 = vmatprep.subr.mxu0 0.0
      %1756 = vmatpush2.msra.mxu0 0.0
      %1757 = vmatprep.mubr.f32.mxu0 0.0
      %1758 = vmatmul.mubr.f32.gmra.mxu0 %v528
      %v1759 = vpop.f32.mrf.mxu0
      %v1760 = vadd.f32 0.0, %v1759
      %v1761 = vpop.f32.mrf.mxu0
      %1762 = vmatprep.mubr.f32.mxu0 0.0
      %1763 = vmatmul.mubr.f32.gmra.mxu0 %v531
      %v1764 = vpop.f32.mrf.mxu0
      %v1765 = vadd.f32 0.0, %v1764
      %v1766 = vpop.f32.mrf.mxu0
      %1767 = vdwg.mxu0
      %v1768 = vadd.f32 %v1685, %v1760
      %v1769 = vadd.f32 %v1690, %v1765
      %1770 = vmatprep.subr.mxu0 0.0
      %1771 = vmatpush1.msra.mxu0 0.0
      %1772 = vmatprep.subr.mxu0 0.0
      %1773 = vmatpush1.msra.mxu0 0.0
      %1774 = vmatprep.subr.mxu0 0.0
      %1775 = vmatpush1.msra.mxu0 0.0
      %1776 = vmatprep.subr.mxu0 0.0
      %1777 = vmatpush1.msra.mxu0 0.0
      %1778 = vmatprep.subr.mxu0 0.0
      %1779 = vmatpush1.msra.mxu0 %v984
      %1780 = vmatprep.subr.mxu0 0.0
      %1781 = vmatpush1.msra.mxu0 %v983
      %1782 = vmatprep.subr.mxu0 0.0
      %1783 = vmatpush1.msra.mxu0 %v982
      %1784 = vmatprep.subr.mxu0 0.0
      %1785 = vmatpush1.msra.mxu0 %v981
      %1786 = vmatprep.subr.mxu0 0.0
      %1787 = vmatpush1.msra.mxu0 %v980
      %1788 = vmatprep.subr.mxu0 0.0
      %1789 = vmatpush1.msra.mxu0 %v979
      %1790 = vmatprep.subr.mxu0 0.0
      %1791 = vmatpush1.msra.mxu0 %v978
      %1792 = vmatprep.subr.mxu0 0.0
      %1793 = vmatpush1.msra.mxu0 %v977
      %1794 = vmatprep.subr.mxu0 0.0
      %1795 = vmatpush1.msra.mxu0 %v976
      %1796 = vmatprep.subr.mxu0 0.0
      %1797 = vmatpush1.msra.mxu0 %v975
      %1798 = vmatprep.subr.mxu0 0.0
      %1799 = vmatpush1.msra.mxu0 %v974
      %1800 = vmatprep.subr.mxu0 0.0
      %1801 = vmatpush1.msra.mxu0 %v973
      %1802 = vmatprep.subr.mxu0 0.0
      %1803 = vmatpush2.msra.mxu0 0.0
      %1804 = vmatprep.subr.mxu0 0.0
      %1805 = vmatpush2.msra.mxu0 0.0
      %1806 = vmatprep.subr.mxu0 0.0
      %1807 = vmatpush2.msra.mxu0 0.0
      %1808 = vmatprep.subr.mxu0 0.0
      %1809 = vmatpush2.msra.mxu0 0.0
      %1810 = vmatprep.subr.mxu0 0.0
      %1811 = vmatpush2.msra.mxu0 0.0
      %1812 = vmatprep.subr.mxu0 0.0
      %1813 = vmatpush2.msra.mxu0 0.0
      %1814 = vmatprep.subr.mxu0 0.0
      %1815 = vmatpush2.msra.mxu0 0.0
      %1816 = vmatprep.subr.mxu0 0.0
      %1817 = vmatpush2.msra.mxu0 0.0
      %1818 = vmatprep.subr.mxu0 0.0
      %1819 = vmatpush2.msra.mxu0 0.0
      %1820 = vmatprep.subr.mxu0 0.0
      %1821 = vmatpush2.msra.mxu0 0.0
      %1822 = vmatprep.subr.mxu0 0.0
      %1823 = vmatpush2.msra.mxu0 0.0
      %1824 = vmatprep.subr.mxu0 0.0
      %1825 = vmatpush2.msra.mxu0 0.0
      %1826 = vmatprep.subr.mxu0 0.0
      %1827 = vmatpush2.msra.mxu0 0.0
      %1828 = vmatprep.subr.mxu0 0.0
      %1829 = vmatpush2.msra.mxu0 0.0
      %1830 = vmatprep.subr.mxu0 0.0
      %1831 = vmatpush2.msra.mxu0 0.0
      %1832 = vmatprep.subr.mxu0 0.0
      %1833 = vmatpush2.msra.mxu0 0.0
      %1834 = vmatprep.mubr.f32.mxu0 0.0
      %1835 = vmatmul.mubr.f32.gmra.mxu0 %v624
      %v1836 = vpop.f32.mrf.mxu0
      %v1837 = vadd.f32 0.0, %v1836
      %v1838 = vpop.f32.mrf.mxu0
      %1839 = vmatprep.mubr.f32.mxu0 0.0
      %1840 = vmatmul.mubr.f32.gmra.mxu0 %v627
      %v1841 = vpop.f32.mrf.mxu0
      %v1842 = vadd.f32 0.0, %v1841
      %v1843 = vpop.f32.mrf.mxu0
      %1844 = vdwg.mxu0
      %v1845 = vadd.f32 %v1768, %v1837
      %v1846 = vadd.f32 %v1769, %v1842
      %1847 = vmatprep.subr.mxu0 0.0
      %1848 = vmatpush1.msra.mxu0 0.0
      %1849 = vmatprep.subr.mxu0 0.0
      %1850 = vmatpush1.msra.mxu0 0.0
      %1851 = vmatprep.subr.mxu0 0.0
      %1852 = vmatpush1.msra.mxu0 0.0
      %1853 = vmatprep.subr.mxu0 0.0
      %1854 = vmatpush1.msra.mxu0 0.0
      %1855 = vmatprep.subr.mxu0 0.0
      %1856 = vmatpush1.msra.mxu0 %v1074
      %1857 = vmatprep.subr.mxu0 0.0
      %1858 = vmatpush1.msra.mxu0 %v1073
      %1859 = vmatprep.subr.mxu0 0.0
      %1860 = vmatpush1.msra.mxu0 %v1072
      %1861 = vmatprep.subr.mxu0 0.0
      %1862 = vmatpush1.msra.mxu0 %v1071
      %1863 = vmatprep.subr.mxu0 0.0
      %1864 = vmatpush1.msra.mxu0 %v1070
      %1865 = vmatprep.subr.mxu0 0.0
      %1866 = vmatpush1.msra.mxu0 %v1069
      %1867 = vmatprep.subr.mxu0 0.0
      %1868 = vmatpush1.msra.mxu0 %v1068
      %1869 = vmatprep.subr.mxu0 0.0
      %1870 = vmatpush1.msra.mxu0 %v1067
      %1871 = vmatprep.subr.mxu0 0.0
      %1872 = vmatpush1.msra.mxu0 %v1066
      %1873 = vmatprep.subr.mxu0 0.0
      %1874 = vmatpush1.msra.mxu0 %v1065
      %1875 = vmatprep.subr.mxu0 0.0
      %1876 = vmatpush1.msra.mxu0 %v1064
      %1877 = vmatprep.subr.mxu0 0.0
      %1878 = vmatpush1.msra.mxu0 %v1063
      %1879 = vmatprep.subr.mxu0 0.0
      %1880 = vmatpush2.msra.mxu0 0.0
      %1881 = vmatprep.subr.mxu0 0.0
      %1882 = vmatpush2.msra.mxu0 0.0
      %1883 = vmatprep.subr.mxu0 0.0
      %1884 = vmatpush2.msra.mxu0 0.0
      %1885 = vmatprep.subr.mxu0 0.0
      %1886 = vmatpush2.msra.mxu0 0.0
      %1887 = vmatprep.subr.mxu0 0.0
      %1888 = vmatpush2.msra.mxu0 0.0
      %1889 = vmatprep.subr.mxu0 0.0
      %1890 = vmatpush2.msra.mxu0 0.0
      %1891 = vmatprep.subr.mxu0 0.0
      %1892 = vmatpush2.msra.mxu0 0.0
      %1893 = vmatprep.subr.mxu0 0.0
      %1894 = vmatpush2.msra.mxu0 0.0
      %1895 = vmatprep.subr.mxu0 0.0
      %1896 = vmatpush2.msra.mxu0 0.0
      %1897 = vmatprep.subr.mxu0 0.0
      %1898 = vmatpush2.msra.mxu0 0.0
      %1899 = vmatprep.subr.mxu0 0.0
      %1900 = vmatpush2.msra.mxu0 0.0
      %1901 = vmatprep.subr.mxu0 0.0
      %1902 = vmatpush2.msra.mxu0 0.0
      %1903 = vmatprep.subr.mxu0 0.0
      %1904 = vmatpush2.msra.mxu0 0.0
      %1905 = vmatprep.subr.mxu0 0.0
      %1906 = vmatpush2.msra.mxu0 0.0
      %1907 = vmatprep.subr.mxu0 0.0
      %1908 = vmatpush2.msra.mxu0 0.0
      %1909 = vmatprep.subr.mxu0 0.0
      %1910 = vmatpush2.msra.mxu0 0.0
      %1911 = vmatprep.mubr.f32.mxu0 0.0
      %1912 = vmatmul.mubr.f32.gmra.mxu0 %v1459
      %v1913 = vpop.f32.mrf.mxu0
      %v1914 = vadd.f32 0.0, %v1913
      %v1915 = vpop.f32.mrf.mxu0
      %1916 = vmatprep.mubr.f32.mxu0 0.0
      %1917 = vmatmul.mubr.f32.gmra.mxu0 %v1462
      %v1918 = vpop.f32.mrf.mxu0
      %v1919 = vadd.f32 0.0, %v1918
      %v1920 = vpop.f32.mrf.mxu0
      %1921 = vdwg.mxu0
      %v1922 = vadd.f32 %v1845, %v1914
      %v1923 = vadd.f32 %v1846, %v1919
      %v1924 = vmax.f32 %v1541, %v1922
      %v1925 = vmax.f32 %v1542, %v1923
      %v1926 = vld [vmem:[%s3] sm:$0x1]
      %v1928 = vlaneseq
      %v1929 = vshrl.u32 %v1928, 7
      %v1930 = vsub.s32 0, %v1929
      %v1931 = vrot.slane %v1926, %v1930
      %v1933 = vadd.f32 %v1924, %v1931
      %v1934 = vadd.f32 %v1925, %v1931
      %v1935 = vmax.f32 %v1933, 0.0
      %v1936 = vmax.f32 %v1934, 0.0
      %vm1937 = vcmask 687104
      %1938 = vst.msk [vmem:[%s217] sm:$0xff] %vm1937, %v1935
      %vm1939 = vcmask 685056
      %1940 = vst.msk [vmem:[%s217 + $0x8] sm:$0x3f] %vm1939, %v1936
      %p1941 = scmp.lt.s32.totalorder %s15, 1
      %s1942 = scalar_select %p1941, %s15, 1
      %s1943 = smul.addr %s1942, 2
      %s1944 = smul.addr %s1943, 8
      %s1945 = scalar_lea.vmem %s4, %s1944
      // Predicated region
      $region37: #{net_forward.3} parent=35 // pred_check
        %p1946 = pneg %p127
      $region38: #{net_forward.3} parent=35 // pred_check_branch
        %1948 = sbr.rel (%p1946) target = $region40
      $region39: #{net_forward.3} parent=35 // pred_region
        _
      $region40: #{net_forward.3} parent=35 // pred_fallthru
        _
    $region36: #{net_forward.3} parent=5 // pred_fallthru
      _
    %p1949 = scmp.le.s32.totalorder 2, %s10
    // Predicated region
    $region41: #{net_forward.3} parent=5 // pred_check
      %p1950 = pneg %p1949
    $region42: #{net_forward.3} parent=5 // pred_check_branch
      %1952 = sbr.rel (%p1950) target = $region44
    $region43: #{net_forward.3} parent=5 // pred_region
      %s1953 = ssub.s32 %s10, 2
      // Predicated region
      $region45: #{net_forward.3} parent=43 // pred_check
        %p1954 = pneg %p133
      $region46: #{net_forward.3} parent=43 // pred_check_branch
        %1956 = sbr.rel (%p1954) target = $region48
      $region47: #{net_forward.3} parent=43 // pred_region
        %p1957 = scmp.lt.s32.totalorder %s16, 1
        %s1958 = scalar_select %p1957, %s16, 1
        %s1959 = smul.addr %s1958, 2
        %s1960 = smul.addr %s1959, 8
        %s1961 = scalar_lea.vmem %s4, %s1960
      $region48: #{net_forward.3} parent=43 // pred_fallthru
        _
    $region44: #{net_forward.3} parent=5 // pred_fallthru
      _
  $region6: #{net_forward.3} parent=0 // loop_footer
    %s14 = sadd.s32 1, %s10
  $region7: #{net_forward.3} parent=0 // loop_footer_branch
    %9 = sbr.rel target = $region3
  $region8: #{net_forward.3} parent=0 // loop_exit
    _

// kernel: net_forward.4
$region0: #{net_forward.4}
  #allocation0 [shape = 'u32[]', space=smem, size = 0x4, offset = 0x4, fixed_abs, tag = 'smem constant byte address 0x4 - core index']
  #allocation1 [shape = 'u32[144,128]{1,0:T(1,128)}', space=vmem, size = 0x12000, scoped, tag = 'internal scratch']
  %s0 = inlined_call_operand.vmem [shape: f32[2,7,84], index: 0, kind: input, shape index: {}]
  %s1 = inlined_call_operand.vmem [shape: f32[2,7,84], index: 1, kind: input, shape index: {}]
  %s2 = inlined_call_operand.vmem [shape: f32[5,2,84,80], index: 2, kind: input, shape index: {}]
  %s3 = inlined_call_operand.vmem [shape: f32[1,80], index: 3, kind: input, shape index: {}]
  %s4 = inlined_call_operand.vmem [shape: f32[2,5,80], index: 4, kind: output, shape index: {}]
  %s5 = sld [smem:[#allocation0]]
  $region49: #{net_forward.4} parent=0
    _
  %s7 = ssub.s32 1, %s5
  %s8 = scalar_select 0, %s7, %s5
  loop: start=0, step=1, limit=4
  $region2: #{net_forward.4} parent=0 // loop_pre_header
    _
  $region3: #{net_forward.4} parent=0 // loop_header
    %s10 = sphi 0, %s14
    %p11 = scmp.ge.s32.totalorder %s10, 4
    %s20 = sphi 0, %s22
    %s23 = sphi 0, %s20
    %s24 = sphi 0, %s23
    %s40 = sphi 0, %s24
    %s46 = sphi 0, %s48
    %s49 = sphi 0, %s46
    %s50 = sphi 0, %s49
    %s66 = sphi 0, %s50
    %s70 = sphi 0, %s70
    %s72 = sphi 0, %s70
    %s73 = sphi 0, %s72
    %s87 = sphi 0, %s73
    %s91 = sphi 0, %s91
    %s93 = sphi 0, %s91
    %s94 = sphi 0, %s93
    %s108 = sphi 0, %s94
    %s114 = sphi 0, %s116
    %s117 = sphi 0, %s114
    %s118 = sphi 0, %s117
    %s134 = sphi 0, %s118
  $region4: #{net_forward.4} parent=0 // loop_header_branch
    %13 = sbr.rel (%p11) target = $region8
  $region5: #{net_forward.4} parent=0 // loop_body
    %s15 = ssub.s32 %s10, 1
    %s16 = ssub.s32 %s10, 2
    %s17 = sadd.s32 %s10, 1
    %s18 = ssub.s32 %s10, %s17
    %p19 = scmp.eq.s32.totalorder %s18, 0
    %s21 = sadd.s32 %s20, 1
    %s22 = scalar_select %p19, %s20, %s21
    %p25 = pneg %p19
    %p26 = scmp.eq.s32.totalorder %s10, 1
    %p27 = por %p25, %p26
    %p28 = scmp.ne.s32.totalorder %s20, %s23
    %p29 = scmp.eq.s32.totalorder %s10, 0
    %p30 = por %p28, %p29
    %p31 = scmp.ne.s32.totalorder %s20, %s23
    %p32 = scmp.eq.s32.totalorder %s15, 1
    %p33 = por %p31, %p32
    %p34 = scmp.ne.s32.totalorder %s23, %s24
    %p35 = scmp.eq.s32.totalorder %s15, 0
    %p36 = por %p34, %p35
    %p37 = scmp.ne.s32.totalorder %s23, %s24
    %p38 = scmp.eq.s32.totalorder %s16, 1
    %p39 = por %p37, %p38
    %p41 = scmp.ne.s32.totalorder %s24, %s40
    %p42 = scmp.eq.s32.totalorder %s16, 0
    %p43 = por %p41, %p42
    %s44 = ssub.s32 %s10, %s17
    %p45 = scmp.eq.s32.totalorder %s44, 0
    %s47 = sadd.s32 %s46, 1
    %s48 = scalar_select %p45, %s46, %s47
    %p51 = pneg %p45
    %p52 = scmp.eq.s32.totalorder %s10, 1
    %p53 = por %p51, %p52
    %p54 = scmp.ne.s32.totalorder %s46, %s49
    %p55 = scmp.eq.s32.totalorder %s10, 0
    %p56 = por %p54, %p55
    %p57 = scmp.ne.s32.totalorder %s46, %s49
    %p58 = scmp.eq.s32.totalorder %s15, 1
    %p59 = por %p57, %p58
    %p60 = scmp.ne.s32.totalorder %s49, %s50
    %p61 = scmp.eq.s32.totalorder %s15, 0
    %p62 = por %p60, %p61
    %p63 = scmp.ne.s32.totalorder %s49, %s50
    %p64 = scmp.eq.s32.totalorder %s16, 1
    %p65 = por %p63, %p64
    %p67 = scmp.ne.s32.totalorder %s50, %s66
    %p68 = scmp.eq.s32.totalorder %s16, 0
    %p69 = por %p67, %p68
    %s71 = sadd.s32 %s70, 1
    %p74 = scmp.eq.s32.totalorder %s10, 1
    %p75 = scmp.ne.s32.totalorder %s70, %s72
    %p76 = scmp.eq.s32.totalorder %s10, 0
    %p77 = por %p75, %p76
    %p78 = scmp.ne.s32.totalorder %s70, %s72
    %p79 = scmp.eq.s32.totalorder %s15, 1
    %p80 = por %p78, %p79
    %p81 = scmp.ne.s32.totalorder %s72, %s73
    %p82 = scmp.eq.s32.totalorder %s15, 0
    %p83 = por %p81, %p82
    %p84 = scmp.ne.s32.totalorder %s72, %s73
    %p85 = scmp.eq.s32.totalorder %s16, 1
    %p86 = por %p84, %p85
    %p88 = scmp.ne.s32.totalorder %s73, %s87
    %p89 = scmp.eq.s32.totalorder %s16, 0
    %p90 = por %p88, %p89
    %s92 = sadd.s32 %s91, 1
    %p95 = scmp.eq.s32.totalorder %s10, 1
    %p96 = scmp.ne.s32.totalorder %s91, %s93
    %p97 = scmp.eq.s32.totalorder %s10, 0
    %p98 = por %p96, %p97
    %p99 = scmp.ne.s32.totalorder %s91, %s93
    %p100 = scmp.eq.s32.totalorder %s15, 1
    %p101 = por %p99, %p100
    %p102 = scmp.ne.s32.totalorder %s93, %s94
    %p103 = scmp.eq.s32.totalorder %s15, 0
    %p104 = por %p102, %p103
    %p105 = scmp.ne.s32.totalorder %s93, %s94
    %p106 = scmp.eq.s32.totalorder %s16, 1
    %p107 = por %p105, %p106
    %p109 = scmp.ne.s32.totalorder %s94, %s108
    %p110 = scmp.eq.s32.totalorder %s16, 0
    %p111 = por %p109, %p110
    %s112 = ssub.s32 %s10, %s17
    %p113 = scmp.eq.s32.totalorder %s112, 0
    %s115 = sadd.s32 %s114, 1
    %s116 = scalar_select %p113, %s114, %s115
    %p119 = pneg %p113
    %p120 = scmp.eq.s32.totalorder %s10, 1
    %p121 = por %p119, %p120
    %p122 = scmp.ne.s32.totalorder %s114, %s117
    %p123 = scmp.eq.s32.totalorder %s10, 0
    %p124 = por %p122, %p123
    %p125 = scmp.ne.s32.totalorder %s114, %s117
    %p126 = scmp.eq.s32.totalorder %s15, 1
    %p127 = por %p125, %p126
    %p128 = scmp.ne.s32.totalorder %s117, %s118
    %p129 = scmp.eq.s32.totalorder %s15, 0
    %p130 = por %p128, %p129
    %p131 = scmp.ne.s32.totalorder %s117, %s118
    %p132 = scmp.eq.s32.totalorder %s16, 1
    %p133 = por %p131, %p132
    %p135 = scmp.ne.s32.totalorder %s118, %s134
    %p136 = scmp.eq.s32.totalorder %s16, 0
    %p137 = por %p135, %p136
    %p138 = scmp.le.s32.totalorder 1, %s10
    %p139 = scmp.lt.s32.totalorder %s10, 3
    %p140 = pnand %p138, %p139
    %p141 = pneg %p140
    // Predicated region
    $region9: #{net_forward.4} parent=5 // pred_check
      _
    $region10: #{net_forward.4} parent=5 // pred_check_branch
      %143 = sbr.rel (%p140) target = $region12
    $region11: #{net_forward.4} parent=5 // pred_region
      %s144 = ssub.s32 %s10, 1
      // Predicated region
      $region13: #{net_forward.4} parent=11 // pred_check
        %p145 = pneg %p83
      $region14: #{net_forward.4} parent=11 // pred_check_branch
        %147 = sbr.rel (%p145) target = $region16
      $region15: #{net_forward.4} parent=11 // pred_region
        _
      $region16: #{net_forward.4} parent=11 // pred_fallthru
        _
      // Predicated region
      $region17: #{net_forward.4} parent=11 // pred_check
        %p148 = pneg %p104
      $region18: #{net_forward.4} parent=11 // pred_check_branch
        %150 = sbr.rel (%p148) target = $region20
      $region19: #{net_forward.4} parent=11 // pred_region
        _
      $region20: #{net_forward.4} parent=11 // pred_fallthru
        _
    $region12: #{net_forward.4} parent=5 // pred_fallthru
      _
    %p151 = scmp.lt.s32.totalorder %s10, 2
    // Predicated region
    $region21: #{net_forward.4} parent=5 // pred_check
      %p152 = pneg %p151
    $region22: #{net_forward.4} parent=5 // pred_check_branch
      %154 = sbr.rel (%p152) target = $region24
    $region23: #{net_forward.4} parent=5 // pred_region
      // Predicated region
      $region25: #{net_forward.4} parent=23 // pred_check
        %p155 = pneg %p30
      $region26: #{net_forward.4} parent=23 // pred_check_branch
        %157 = sbr.rel (%p155) target = $region28
      $region27: #{net_forward.4} parent=23 // pred_region
        %p158 = scmp.lt.s32.totalorder %s10, 1
        %s159 = scalar_select %p158, %s10, 1
        %s160 = smul.addr %s159, 8
        %s161 = scalar_lea.vmem %s0, %s160
      $region28: #{net_forward.4} parent=23 // pred_fallthru
        _
      // Predicated region
      $region29: #{net_forward.4} parent=23 // pred_check
        %p162 = pneg %p56
      $region30: #{net_forward.4} parent=23 // pred_check_branch
        %164 = sbr.rel (%p162) target = $region32
      $region31: #{net_forward.4} parent=23 // pred_region
        %p165 = scmp.lt.s32.totalorder %s10, 1
        %s166 = scalar_select %p165, %s10, 1
        %s167 = smul.addr %s166, 8
        %s168 = scalar_lea.vmem %s1, %s167
      $region32: #{net_forward.4} parent=23 // pred_fallthru
        _
    $region24: #{net_forward.4} parent=5 // pred_fallthru
      _
    %p169 = scmp.le.s32.totalorder 1, %s10
    %p170 = scmp.lt.s32.totalorder %s10, 3
    %p171 = pnand %p169, %p170
    %p172 = pneg %p171
    // Predicated region
    $region33: #{net_forward.4} parent=5 // pred_check
      _
    $region34: #{net_forward.4} parent=5 // pred_check_branch
      %174 = sbr.rel (%p171) target = $region36
    $region35: #{net_forward.4} parent=5 // pred_region
      %s175 = ssub.s32 %s10, 1
      %p176 = scmp.lt.s32.totalorder %s15, 1
      %s177 = scalar_select %p176, %s15, 1
      %s178 = smul.addr %s177, 8
      %s179 = scalar_lea.vmem %s0, %s178
      %p180 = pneg %p36
      %p181 = pneg %p33
      %p182 = scmp.lt.s32.totalorder %s15, 1
      %s183 = scalar_select %p182, %s15, 1
      %s184 = smul.addr %s183, 8
      %s185 = scalar_lea.vmem %s1, %s184
      %p186 = pneg %p62
      %p187 = pneg %p59
      %p188 = pneg %p83
      %p189 = pneg %p80
      %p190 = pneg %p104
      %p191 = pneg %p101
      %p192 = pneg %p130
      %p193 = pneg %p127
      %p194 = scmp.lt.s32.totalorder %s15, 1
      %s195 = scalar_select %p194, %s15, 1
      %s196 = smul.addr %s195, 8
      %s197 = scalar_lea.vmem %s4, %s196
      %p198 = scmp.lt.s32.totalorder %s15, 1
      %s199 = scalar_select %p198, %s15, 1
      %s200 = smul.addr %s199, 8
      %s201 = scalar_lea.vmem %s0, %s200
      %p202 = scmp.lt.s32.totalorder %s15, 1
      %s203 = scalar_select %p202, %s15, 1
      %s204 = smul.addr %s203, 8
      %s205 = scalar_lea.vmem %s1, %s204
      %p206 = scmp.lt.s32.totalorder %s15, 1
      %s207 = scalar_select %p206, %s15, 1
      %s208 = smul.addr %s207, 8
      %s209 = scalar_lea.vmem %s4, %s208
      %v210 = vld [vmem:[%s201] sm:$0x1f]
      %v211 = vld [vmem:[%s205] sm:$0x1f]
      %v212 = vld [vmem:[%s201 + $0x1] sm:$0x1f]
      %v213 = vld [vmem:[%s205 + $0x1] sm:$0x1f]
      %v214 = vld [vmem:[%s201 + $0x2] sm:$0x1f]
      %v215 = vld [vmem:[%s205 + $0x2] sm:$0x1f]
      %v216 = vld [vmem:[%s2] sm:$0xff]
      %v217 = vld [vmem:[%s2 + $0x8] sm:$0xff]
      %v218 = vld [vmem:[%s2 + $0x10] sm:$0xff]
      %v219 = vld [vmem:[%s2 + $0x18] sm:$0xff]
      %v220 = vld [vmem:[%s2 + $0x20] sm:$0xff]
      %v221 = vld [vmem:[%s2 + $0x28] sm:$0xff]
      %v222 = vld [vmem:[%s2 + $0x30] sm:$0xff]
      %v223 = vld [vmem:[%s2 + $0x38] sm:$0xff]
      %v224 = vld [vmem:[%s2 + $0x40] sm:$0xff]
      %v225 = vld [vmem:[%s2 + $0x48] sm:$0xff]
      %v226 = vld [vmem:[%s2 + $0x50] sm:$0xf]
      %s227 = scalar_lea.vmem %s2, 176
      %v228 = vld [vmem:[%s227] sm:$0xff]
      %v229 = vld [vmem:[%s227 + $0x8] sm:$0xff]
      %v230 = vld [vmem:[%s227 + $0x10] sm:$0xff]
      %v231 = vld [vmem:[%s227 + $0x18] sm:$0xff]
      %v232 = vld [vmem:[%s227 + $0x20] sm:$0xff]
      %v233 = vld [vmem:[%s227 + $0x28] sm:$0xff]
      %v234 = vld [vmem:[%s227 + $0x30] sm:$0xff]
      %v235 = vld [vmem:[%s227 + $0x38] sm:$0xff]
      %v236 = vld [vmem:[%s227 + $0x40] sm:$0xff]
      %v237 = vld [vmem:[%s227 + $0x48] sm:$0xff]
      %v238 = vld [vmem:[%s227 + $0x50] sm:$0xf]
      %vm239 = vcmask 687104
      %v241 = vsel %vm239, %v211, 0
      %vm243 = vcmask 1043456
      %v245 = vsel %vm243, %v238, 0
      %247 = vmatprep.subr.mxu0 0.0
      %248 = vmatpush1.msra.mxu0 0.0
      %249 = vmatprep.subr.mxu0 0.0
      %250 = vmatpush1.msra.mxu0 0.0
      %251 = vmatprep.subr.mxu0 0.0
      %252 = vmatpush1.msra.mxu0 0.0
      %253 = vmatprep.subr.mxu0 0.0
      %254 = vmatpush1.msra.mxu0 0.0
      %255 = vmatprep.subr.mxu0 0.0
      %256 = vmatpush1.msra.mxu0 0.0
      %257 = vmatprep.subr.mxu0 0.0
      %258 = vmatpush1.msra.mxu0 %v245
      %259 = vmatprep.subr.mxu0 0.0
      %260 = vmatpush1.msra.mxu0 %v237
      %261 = vmatprep.subr.mxu0 0.0
      %262 = vmatpush1.msra.mxu0 %v236
      %263 = vmatprep.subr.mxu0 0.0
      %264 = vmatpush1.msra.mxu0 %v235
      %265 = vmatprep.subr.mxu0 0.0
      %266 = vmatpush1.msra.mxu0 %v234
      %267 = vmatprep.subr.mxu0 0.0
      %268 = vmatpush1.msra.mxu0 %v233
      %269 = vmatprep.subr.mxu0 0.0
      %270 = vmatpush1.msra.mxu0 %v232
      %271 = vmatprep.subr.mxu0 0.0
      %272 = vmatpush1.msra.mxu0 %v231
      %273 = vmatprep.subr.mxu0 0.0
      %274 = vmatpush1.msra.mxu0 %v230
      %275 = vmatprep.subr.mxu0 0.0
      %276 = vmatpush1.msra.mxu0 %v229
      %277 = vmatprep.subr.mxu0 0.0
      %278 = vmatpush1.msra.mxu0 %v228
      %279 = vmatprep.subr.mxu0 0.0
      %280 = vmatpush2.msra.mxu0 0.0
      %281 = vmatprep.subr.mxu0 0.0
      %282 = vmatpush2.msra.mxu0 0.0
      %283 = vmatprep.subr.mxu0 0.0
      %284 = vmatpush2.msra.mxu0 0.0
      %285 = vmatprep.subr.mxu0 0.0
      %286 = vmatpush2.msra.mxu0 0.0
      %287 = vmatprep.subr.mxu0 0.0
      %288 = vmatpush2.msra.mxu0 0.0
      %289 = vmatprep.subr.mxu0 0.0
      %290 = vmatpush2.msra.mxu0 0.0
      %291 = vmatprep.subr.mxu0 0.0
      %292 = vmatpush2.msra.mxu0 0.0
      %293 = vmatprep.subr.mxu0 0.0
      %294 = vmatpush2.msra.mxu0 0.0
      %295 = vmatprep.subr.mxu0 0.0
      %296 = vmatpush2.msra.mxu0 0.0
      %297 = vmatprep.subr.mxu0 0.0
      %298 = vmatpush2.msra.mxu0 0.0
      %299 = vmatprep.subr.mxu0 0.0
      %300 = vmatpush2.msra.mxu0 0.0
      %301 = vmatprep.subr.mxu0 0.0
      %302 = vmatpush2.msra.mxu0 0.0
      %303 = vmatprep.subr.mxu0 0.0
      %304 = vmatpush2.msra.mxu0 0.0
      %305 = vmatprep.subr.mxu0 0.0
      %306 = vmatpush2.msra.mxu0 0.0
      %307 = vmatprep.subr.mxu0 0.0
      %308 = vmatpush2.msra.mxu0 0.0
      %309 = vmatprep.subr.mxu0 0.0
      %310 = vmatpush2.msra.mxu0 0.0
      %311 = vmatprep.mubr.f32.mxu0 0.0
      %312 = vmatmul.mubr.f32.gmra.mxu0 %v241
      %v313 = vpop.f32.mrf.mxu0
      %v314 = vadd.f32 0.0, %v313
      %v315 = vpop.f32.mrf.mxu0
      %316 = vdwg.mxu0
      %v318 = vsel %vm239, %v210, 0
      %v321 = vsel %vm243, %v226, 0
      %323 = vmatprep.subr.mxu0 0.0
      %324 = vmatpush1.msra.mxu0 0.0
      %325 = vmatprep.subr.mxu0 0.0
      %326 = vmatpush1.msra.mxu0 0.0
      %327 = vmatprep.subr.mxu0 0.0
      %328 = vmatpush1.msra.mxu0 0.0
      %329 = vmatprep.subr.mxu0 0.0
      %330 = vmatpush1.msra.mxu0 0.0
      %331 = vmatprep.subr.mxu0 0.0
      %332 = vmatpush1.msra.mxu0 0.0
      %333 = vmatprep.subr.mxu0 0.0
      %334 = vmatpush1.msra.mxu0 %v321
      %335 = vmatprep.subr.mxu0 0.0
      %336 = vmatpush1.msra.mxu0 %v225
      %337 = vmatprep.subr.mxu0 0.0
      %338 = vmatpush1.msra.mxu0 %v224
      %339 = vmatprep.subr.mxu0 0.0
      %340 = vmatpush1.msra.mxu0 %v223
      %341 = vmatprep.subr.mxu0 0.0
      %342 = vmatpush1.msra.mxu0 %v222
      %343 = vmatprep.subr.mxu0 0.0
      %344 = vmatpush1.msra.mxu0 %v221
      %345 = vmatprep.subr.mxu0 0.0
      %346 = vmatpush1.msra.mxu0 %v220
      %347 = vmatprep.subr.mxu0 0.0
      %348 = vmatpush1.msra.mxu0 %v219
      %349 = vmatprep.subr.mxu0 0.0
      %350 = vmatpush1.msra.mxu0 %v218
      %351 = vmatprep.subr.mxu0 0.0
      %352 = vmatpush1.msra.mxu0 %v217
      %353 = vmatprep.subr.mxu0 0.0
      %354 = vmatpush1.msra.mxu0 %v216
      %355 = vmatprep.subr.mxu0 0.0
      %356 = vmatpush2.msra.mxu0 0.0
      %357 = vmatprep.subr.mxu0 0.0
      %358 = vmatpush2.msra.mxu0 0.0
      %359 = vmatprep.subr.mxu0 0.0
      %360 = vmatpush2.msra.mxu0 0.0
      %361 = vmatprep.subr.mxu0 0.0
      %362 = vmatpush2.msra.mxu0 0.0
      %363 = vmatprep.subr.mxu0 0.0
      %364 = vmatpush2.msra.mxu0 0.0
      %365 = vmatprep.subr.mxu0 0.0
      %366 = vmatpush2.msra.mxu0 0.0
      %367 = vmatprep.subr.mxu0 0.0
      %368 = vmatpush2.msra.mxu0 0.0
      %369 = vmatprep.subr.mxu0 0.0
      %370 = vmatpush2.msra.mxu0 0.0
      %371 = vmatprep.subr.mxu0 0.0
      %372 = vmatpush2.msra.mxu0 0.0
      %373 = vmatprep.subr.mxu0 0.0
      %374 = vmatpush2.msra.mxu0 0.0
      %375 = vmatprep.subr.mxu0 0.0
      %376 = vmatpush2.msra.mxu0 0.0
      %377 = vmatprep.subr.mxu0 0.0
      %378 = vmatpush2.msra.mxu0 0.0
      %379 = vmatprep.subr.mxu0 0.0
      %380 = vmatpush2.msra.mxu0 0.0
      %381 = vmatprep.subr.mxu0 0.0
      %382 = vmatpush2.msra.mxu0 0.0
      %383 = vmatprep.subr.mxu0 0.0
      %384 = vmatpush2.msra.mxu0 0.0
      %385 = vmatprep.subr.mxu0 0.0
      %386 = vmatpush2.msra.mxu0 0.0
      %387 = vmatprep.mubr.f32.mxu0 0.0
      %388 = vmatmul.mubr.f32.gmra.mxu0 %v318
      %v389 = vpop.f32.mrf.mxu0
      %v390 = vadd.f32 %v314, %v389
      %v391 = vpop.f32.mrf.mxu0
      %392 = vdwg.mxu0
      %s393 = scalar_lea.vmem %s2, 352
      %v394 = vld [vmem:[%s393] sm:$0xff]
      %v395 = vld [vmem:[%s393 + $0x8] sm:$0xff]
      %v396 = vld [vmem:[%s393 + $0x10] sm:$0xff]
      %v397 = vld [vmem:[%s393 + $0x18] sm:$0xff]
      %v398 = vld [vmem:[%s393 + $0x20] sm:$0xff]
      %v399 = vld [vmem:[%s393 + $0x28] sm:$0xff]
      %v400 = vld [vmem:[%s393 + $0x30] sm:$0xff]
      %v401 = vld [vmem:[%s393 + $0x38] sm:$0xff]
      %v402 = vld [vmem:[%s393 + $0x40] sm:$0xff]
      %v403 = vld [vmem:[%s393 + $0x48] sm:$0xff]
      %v404 = vld [vmem:[%s393 + $0x50] sm:$0xf]
      %v406 = vsel %vm239, %v212, 0
      %v409 = vsel %vm243, %v404, 0
      %411 = vmatprep.subr.mxu0 0.0
      %412 = vmatpush1.msra.mxu0 0.0
      %413 = vmatprep.subr.mxu0 0.0
      %414 = vmatpush1.msra.mxu0 0.0
      %415 = vmatprep.subr.mxu0 0.0
      %416 = vmatpush1.msra.mxu0 0.0
      %417 = vmatprep.subr.mxu0 0.0
      %418 = vmatpush1.msra.mxu0 0.0
      %419 = vmatprep.subr.mxu0 0.0
      %420 = vmatpush1.msra.mxu0 0.0
      %421 = vmatprep.subr.mxu0 0.0
      %422 = vmatpush1.msra.mxu0 %v409
      %423 = vmatprep.subr.mxu0 0.0
      %424 = vmatpush1.msra.mxu0 %v403
      %425 = vmatprep.subr.mxu0 0.0
      %426 = vmatpush1.msra.mxu0 %v402
      %427 = vmatprep.subr.mxu0 0.0
      %428 = vmatpush1.msra.mxu0 %v401
      %429 = vmatprep.subr.mxu0 0.0
      %430 = vmatpush1.msra.mxu0 %v400
      %431 = vmatprep.subr.mxu0 0.0
      %432 = vmatpush1.msra.mxu0 %v399
      %433 = vmatprep.subr.mxu0 0.0
      %434 = vmatpush1.msra.mxu0 %v398
      %435 = vmatprep.subr.mxu0 0.0
      %436 = vmatpush1.msra.mxu0 %v397
      %437 = vmatprep.subr.mxu0 0.0
      %438 = vmatpush1.msra.mxu0 %v396
      %439 = vmatprep.subr.mxu0 0.0
      %440 = vmatpush1.msra.mxu0 %v395
      %441 = vmatprep.subr.mxu0 0.0
      %442 = vmatpush1.msra.mxu0 %v394
      %443 = vmatprep.subr.mxu0 0.0
      %444 = vmatpush2.msra.mxu0 0.0
      %445 = vmatprep.subr.mxu0 0.0
      %446 = vmatpush2.msra.mxu0 0.0
      %447 = vmatprep.subr.mxu0 0.0
      %448 = vmatpush2.msra.mxu0 0.0
      %449 = vmatprep.subr.mxu0 0.0
      %450 = vmatpush2.msra.mxu0 0.0
      %451 = vmatprep.subr.mxu0 0.0
      %452 = vmatpush2.msra.mxu0 0.0
      %453 = vmatprep.subr.mxu0 0.0
      %454 = vmatpush2.msra.mxu0 0.0
      %455 = vmatprep.subr.mxu0 0.0
      %456 = vmatpush2.msra.mxu0 0.0
      %457 = vmatprep.subr.mxu0 0.0
      %458 = vmatpush2.msra.mxu0 0.0
      %459 = vmatprep.subr.mxu0 0.0
      %460 = vmatpush2.msra.mxu0 0.0
      %461 = vmatprep.subr.mxu0 0.0
      %462 = vmatpush2.msra.mxu0 0.0
      %463 = vmatprep.subr.mxu0 0.0
      %464 = vmatpush2.msra.mxu0 0.0
      %465 = vmatprep.subr.mxu0 0.0
      %466 = vmatpush2.msra.mxu0 0.0
      %467 = vmatprep.subr.mxu0 0.0
      %468 = vmatpush2.msra.mxu0 0.0
      %469 = vmatprep.subr.mxu0 0.0
      %470 = vmatpush2.msra.mxu0 0.0
      %471 = vmatprep.subr.mxu0 0.0
      %472 = vmatpush2.msra.mxu0 0.0
      %473 = vmatprep.subr.mxu0 0.0
      %474 = vmatpush2.msra.mxu0 0.0
      %475 = vmatprep.mubr.f32.mxu0 0.0
      %476 = vmatmul.mubr.f32.gmra.mxu0 %v406
      %v477 = vpop.f32.mrf.mxu0
      %v478 = vadd.f32 0.0, %v477
      %v479 = vpop.f32.mrf.mxu0
      %480 = vdwg.mxu0
      %v481 = vadd.f32 %v390, %v478
      %s482 = scalar_lea.vmem %s2, 528
      %v483 = vld [vmem:[%s482] sm:$0xff]
      %v484 = vld [vmem:[%s482 + $0x8] sm:$0xff]
      %v485 = vld [vmem:[%s482 + $0x10] sm:$0xff]
      %v486 = vld [vmem:[%s482 + $0x18] sm:$0xff]
      %v487 = vld [vmem:[%s482 + $0x20] sm:$0xff]
      %v488 = vld [vmem:[%s482 + $0x28] sm:$0xff]
      %v489 = vld [vmem:[%s482 + $0x30] sm:$0xff]
      %v490 = vld [vmem:[%s482 + $0x38] sm:$0xff]
      %v491 = vld [vmem:[%s482 + $0x40] sm:$0xff]
      %v492 = vld [vmem:[%s482 + $0x48] sm:$0xff]
      %v493 = vld [vmem:[%s482 + $0x50] sm:$0xf]
      %v495 = vsel %vm239, %v213, 0
      %v498 = vsel %vm243, %v493, 0
      %500 = vmatprep.subr.mxu0 0.0
      %501 = vmatpush1.msra.mxu0 0.0
      %502 = vmatprep.subr.mxu0 0.0
      %503 = vmatpush1.msra.mxu0 0.0
      %504 = vmatprep.subr.mxu0 0.0
      %505 = vmatpush1.msra.mxu0 0.0
      %506 = vmatprep.subr.mxu0 0.0
      %507 = vmatpush1.msra.mxu0 0.0
      %508 = vmatprep.subr.mxu0 0.0
      %509 = vmatpush1.msra.mxu0 0.0
      %510 = vmatprep.subr.mxu0 0.0
      %511 = vmatpush1.msra.mxu0 %v498
      %512 = vmatprep.subr.mxu0 0.0
      %513 = vmatpush1.msra.mxu0 %v492
      %514 = vmatprep.subr.mxu0 0.0
      %515 = vmatpush1.msra.mxu0 %v491
      %516 = vmatprep.subr.mxu0 0.0
      %517 = vmatpush1.msra.mxu0 %v490
      %518 = vmatprep.subr.mxu0 0.0
      %519 = vmatpush1.msra.mxu0 %v489
      %520 = vmatprep.subr.mxu0 0.0
      %521 = vmatpush1.msra.mxu0 %v488
      %522 = vmatprep.subr.mxu0 0.0
      %523 = vmatpush1.msra.mxu0 %v487
      %524 = vmatprep.subr.mxu0 0.0
      %525 = vmatpush1.msra.mxu0 %v486
      %526 = vmatprep.subr.mxu0 0.0
      %527 = vmatpush1.msra.mxu0 %v485
      %528 = vmatprep.subr.mxu0 0.0
      %529 = vmatpush1.msra.mxu0 %v484
      %530 = vmatprep.subr.mxu0 0.0
      %531 = vmatpush1.msra.mxu0 %v483
      %532 = vmatprep.subr.mxu0 0.0
      %533 = vmatpush2.msra.mxu0 0.0
      %534 = vmatprep.subr.mxu0 0.0
      %535 = vmatpush2.msra.mxu0 0.0
      %536 = vmatprep.subr.mxu0 0.0
      %537 = vmatpush2.msra.mxu0 0.0
      %538 = vmatprep.subr.mxu0 0.0
      %539 = vmatpush2.msra.mxu0 0.0
      %540 = vmatprep.subr.mxu0 0.0
      %541 = vmatpush2.msra.mxu0 0.0
      %542 = vmatprep.subr.mxu0 0.0
      %543 = vmatpush2.msra.mxu0 0.0
      %544 = vmatprep.subr.mxu0 0.0
      %545 = vmatpush2.msra.mxu0 0.0
      %546 = vmatprep.subr.mxu0 0.0
      %547 = vmatpush2.msra.mxu0 0.0
      %548 = vmatprep.subr.mxu0 0.0
      %549 = vmatpush2.msra.mxu0 0.0
      %550 = vmatprep.subr.mxu0 0.0
      %551 = vmatpush2.msra.mxu0 0.0
      %552 = vmatprep.subr.mxu0 0.0
      %553 = vmatpush2.msra.mxu0 0.0
      %554 = vmatprep.subr.mxu0 0.0
      %555 = vmatpush2.msra.mxu0 0.0
      %556 = vmatprep.subr.mxu0 0.0
      %557 = vmatpush2.msra.mxu0 0.0
      %558 = vmatprep.subr.mxu0 0.0
      %559 = vmatpush2.msra.mxu0 0.0
      %560 = vmatprep.subr.mxu0 0.0
      %561 = vmatpush2.msra.mxu0 0.0
      %562 = vmatprep.subr.mxu0 0.0
      %563 = vmatpush2.msra.mxu0 0.0
      %564 = vmatprep.mubr.f32.mxu0 0.0
      %565 = vmatmul.mubr.f32.gmra.mxu0 %v495
      %v566 = vpop.f32.mrf.mxu0
      %v567 = vadd.f32 0.0, %v566
      %v568 = vpop.f32.mrf.mxu0
      %569 = vdwg.mxu0
      %v570 = vadd.f32 %v481, %v567
      %s571 = scalar_lea.vmem %s2, 704
      %v572 = vld [vmem:[%s571] sm:$0xff]
      %v573 = vld [vmem:[%s571 + $0x8] sm:$0xff]
      %v574 = vld [vmem:[%s571 + $0x10] sm:$0xff]
      %v575 = vld [vmem:[%s571 + $0x18] sm:$0xff]
      %v576 = vld [vmem:[%s571 + $0x20] sm:$0xff]
      %v577 = vld [vmem:[%s571 + $0x28] sm:$0xff]
      %v578 = vld [vmem:[%s571 + $0x30] sm:$0xff]
      %v579 = vld [vmem:[%s571 + $0x38] sm:$0xff]
      %v580 = vld [vmem:[%s571 + $0x40] sm:$0xff]
      %v581 = vld [vmem:[%s571 + $0x48] sm:$0xff]
      %v582 = vld [vmem:[%s571 + $0x50] sm:$0xf]
      %v584 = vsel %vm239, %v214, 0
      %v587 = vsel %vm243, %v582, 0
      %589 = vmatprep.subr.mxu0 0.0
      %590 = vmatpush1.msra.mxu0 0.0
      %591 = vmatprep.subr.mxu0 0.0
      %592 = vmatpush1.msra.mxu0 0.0
      %593 = vmatprep.subr.mxu0 0.0
      %594 = vmatpush1.msra.mxu0 0.0
      %595 = vmatprep.subr.mxu0 0.0
      %596 = vmatpush1.msra.mxu0 0.0
      %597 = vmatprep.subr.mxu0 0.0
      %598 = vmatpush1.msra.mxu0 0.0
      %599 = vmatprep.subr.mxu0 0.0
      %600 = vmatpush1.msra.mxu0 %v587
      %601 = vmatprep.subr.mxu0 0.0
      %602 = vmatpush1.msra.mxu0 %v581
      %603 = vmatprep.subr.mxu0 0.0
      %604 = vmatpush1.msra.mxu0 %v580
      %605 = vmatprep.subr.mxu0 0.0
      %606 = vmatpush1.msra.mxu0 %v579
      %607 = vmatprep.subr.mxu0 0.0
      %608 = vmatpush1.msra.mxu0 %v578
      %609 = vmatprep.subr.mxu0 0.0
      %610 = vmatpush1.msra.mxu0 %v577
      %611 = vmatprep.subr.mxu0 0.0
      %612 = vmatpush1.msra.mxu0 %v576
      %613 = vmatprep.subr.mxu0 0.0
      %614 = vmatpush1.msra.mxu0 %v575
      %615 = vmatprep.subr.mxu0 0.0
      %616 = vmatpush1.msra.mxu0 %v574
      %617 = vmatprep.subr.mxu0 0.0
      %618 = vmatpush1.msra.mxu0 %v573
      %619 = vmatprep.subr.mxu0 0.0
      %620 = vmatpush1.msra.mxu0 %v572
      %621 = vmatprep.subr.mxu0 0.0
      %622 = vmatpush2.msra.mxu0 0.0
      %623 = vmatprep.subr.mxu0 0.0
      %624 = vmatpush2.msra.mxu0 0.0
      %625 = vmatprep.subr.mxu0 0.0
      %626 = vmatpush2.msra.mxu0 0.0
      %627 = vmatprep.subr.mxu0 0.0
      %628 = vmatpush2.msra.mxu0 0.0
      %629 = vmatprep.subr.mxu0 0.0
      %630 = vmatpush2.msra.mxu0 0.0
      %631 = vmatprep.subr.mxu0 0.0
      %632 = vmatpush2.msra.mxu0 0.0
      %633 = vmatprep.subr.mxu0 0.0
      %634 = vmatpush2.msra.mxu0 0.0
      %635 = vmatprep.subr.mxu0 0.0
      %636 = vmatpush2.msra.mxu0 0.0
      %637 = vmatprep.subr.mxu0 0.0
      %638 = vmatpush2.msra.mxu0 0.0
      %639 = vmatprep.subr.mxu0 0.0
      %640 = vmatpush2.msra.mxu0 0.0
      %641 = vmatprep.subr.mxu0 0.0
      %642 = vmatpush2.msra.mxu0 0.0
      %643 = vmatprep.subr.mxu0 0.0
      %644 = vmatpush2.msra.mxu0 0.0
      %645 = vmatprep.subr.mxu0 0.0
      %646 = vmatpush2.msra.mxu0 0.0
      %647 = vmatprep.subr.mxu0 0.0
      %648 = vmatpush2.msra.mxu0 0.0
      %649 = vmatprep.subr.mxu0 0.0
      %650 = vmatpush2.msra.mxu0 0.0
      %651 = vmatprep.subr.mxu0 0.0
      %652 = vmatpush2.msra.mxu0 0.0
      %653 = vmatprep.mubr.f32.mxu0 0.0
      %654 = vmatmul.mubr.f32.gmra.mxu0 %v584
      %v655 = vpop.f32.mrf.mxu0
      %v656 = vadd.f32 0.0, %v655
      %v657 = vpop.f32.mrf.mxu0
      %658 = vdwg.mxu0
      %v659 = vadd.f32 %v570, %v656
      %s660 = scalar_lea.vmem %s2, 88
      %v661 = vld [vmem:[%s660] sm:$0xff]
      %v662 = vld [vmem:[%s660 + $0x8] sm:$0xff]
      %v663 = vld [vmem:[%s660 + $0x10] sm:$0xff]
      %v664 = vld [vmem:[%s660 + $0x18] sm:$0xff]
      %v665 = vld [vmem:[%s660 + $0x20] sm:$0xff]
      %v666 = vld [vmem:[%s660 + $0x28] sm:$0xff]
      %v667 = vld [vmem:[%s660 + $0x30] sm:$0xff]
      %v668 = vld [vmem:[%s660 + $0x38] sm:$0xff]
      %v669 = vld [vmem:[%s660 + $0x40] sm:$0xff]
      %v670 = vld [vmem:[%s660 + $0x48] sm:$0xff]
      %v671 = vld [vmem:[%s660 + $0x50] sm:$0xf]
      %s672 = scalar_lea.vmem %s2, 264
      %v673 = vld [vmem:[%s672] sm:$0xff]
      %v674 = vld [vmem:[%s672 + $0x8] sm:$0xff]
      %v675 = vld [vmem:[%s672 + $0x10] sm:$0xff]
      %v676 = vld [vmem:[%s672 + $0x18] sm:$0xff]
      %v677 = vld [vmem:[%s672 + $0x20] sm:$0xff]
      %v678 = vld [vmem:[%s672 + $0x28] sm:$0xff]
      %v679 = vld [vmem:[%s672 + $0x30] sm:$0xff]
      %v680 = vld [vmem:[%s672 + $0x38] sm:$0xff]
      %v681 = vld [vmem:[%s672 + $0x40] sm:$0xff]
      %v682 = vld [vmem:[%s672 + $0x48] sm:$0xff]
      %v683 = vld [vmem:[%s672 + $0x50] sm:$0xf]
      %v685 = vsel %vm243, %v683, 0
      %687 = vmatprep.subr.mxu0 0.0
      %688 = vmatpush1.msra.mxu0 0.0
      %689 = vmatprep.subr.mxu0 0.0
      %690 = vmatpush1.msra.mxu0 0.0
      %691 = vmatprep.subr.mxu0 0.0
      %692 = vmatpush1.msra.mxu0 0.0
      %693 = vmatprep.subr.mxu0 0.0
      %694 = vmatpush1.msra.mxu0 0.0
      %695 = vmatprep.subr.mxu0 0.0
      %696 = vmatpush1.msra.mxu0 0.0
      %697 = vmatprep.subr.mxu0 0.0
      %698 = vmatpush1.msra.mxu0 %v685
      %699 = vmatprep.subr.mxu0 0.0
      %700 = vmatpush1.msra.mxu0 %v682
      %701 = vmatprep.subr.mxu0 0.0
      %702 = vmatpush1.msra.mxu0 %v681
      %703 = vmatprep.subr.mxu0 0.0
      %704 = vmatpush1.msra.mxu0 %v680
      %705 = vmatprep.subr.mxu0 0.0
      %706 = vmatpush1.msra.mxu0 %v679
      %707 = vmatprep.subr.mxu0 0.0
      %708 = vmatpush1.msra.mxu0 %v678
      %709 = vmatprep.subr.mxu0 0.0
      %710 = vmatpush1.msra.mxu0 %v677
      %711 = vmatprep.subr.mxu0 0.0
      %712 = vmatpush1.msra.mxu0 %v676
      %713 = vmatprep.subr.mxu0 0.0
      %714 = vmatpush1.msra.mxu0 %v675
      %715 = vmatprep.subr.mxu0 0.0
      %716 = vmatpush1.msra.mxu0 %v674
      %717 = vmatprep.subr.mxu0 0.0
      %718 = vmatpush1.msra.mxu0 %v673
      %719 = vmatprep.subr.mxu0 0.0
      %720 = vmatpush2.msra.mxu0 0.0
      %721 = vmatprep.subr.mxu0 0.0
      %722 = vmatpush2.msra.mxu0 0.0
      %723 = vmatprep.subr.mxu0 0.0
      %724 = vmatpush2.msra.mxu0 0.0
      %725 = vmatprep.subr.mxu0 0.0
      %726 = vmatpush2.msra.mxu0 0.0
      %727 = vmatprep.subr.mxu0 0.0
      %728 = vmatpush2.msra.mxu0 0.0
      %729 = vmatprep.subr.mxu0 0.0
      %730 = vmatpush2.msra.mxu0 0.0
      %731 = vmatprep.subr.mxu0 0.0
      %732 = vmatpush2.msra.mxu0 0.0
      %733 = vmatprep.subr.mxu0 0.0
      %734 = vmatpush2.msra.mxu0 0.0
      %735 = vmatprep.subr.mxu0 0.0
      %736 = vmatpush2.msra.mxu0 0.0
      %737 = vmatprep.subr.mxu0 0.0
      %738 = vmatpush2.msra.mxu0 0.0
      %739 = vmatprep.subr.mxu0 0.0
      %740 = vmatpush2.msra.mxu0 0.0
      %741 = vmatprep.subr.mxu0 0.0
      %742 = vmatpush2.msra.mxu0 0.0
      %743 = vmatprep.subr.mxu0 0.0
      %744 = vmatpush2.msra.mxu0 0.0
      %745 = vmatprep.subr.mxu0 0.0
      %746 = vmatpush2.msra.mxu0 0.0
      %747 = vmatprep.subr.mxu0 0.0
      %748 = vmatpush2.msra.mxu0 0.0
      %749 = vmatprep.subr.mxu0 0.0
      %750 = vmatpush2.msra.mxu0 0.0
      %751 = vmatprep.mubr.f32.mxu0 0.0
      %752 = vmatmul.mubr.f32.gmra.mxu0 %v241
      %v753 = vpop.f32.mrf.mxu0
      %v754 = vadd.f32 0.0, %v753
      %v755 = vpop.f32.mrf.mxu0
      %756 = vdwg.mxu0
      %v758 = vsel %vm243, %v671, 0
      %760 = vmatprep.subr.mxu0 0.0
      %761 = vmatpush1.msra.mxu0 0.0
      %762 = vmatprep.subr.mxu0 0.0
      %763 = vmatpush1.msra.mxu0 0.0
      %764 = vmatprep.subr.mxu0 0.0
      %765 = vmatpush1.msra.mxu0 0.0
      %766 = vmatprep.subr.mxu0 0.0
      %767 = vmatpush1.msra.mxu0 0.0
      %768 = vmatprep.subr.mxu0 0.0
      %769 = vmatpush1.msra.mxu0 0.0
      %770 = vmatprep.subr.mxu0 0.0
      %771 = vmatpush1.msra.mxu0 %v758
      %772 = vmatprep.subr.mxu0 0.0
      %773 = vmatpush1.msra.mxu0 %v670
      %774 = vmatprep.subr.mxu0 0.0
      %775 = vmatpush1.msra.mxu0 %v669
      %776 = vmatprep.subr.mxu0 0.0
      %777 = vmatpush1.msra.mxu0 %v668
      %778 = vmatprep.subr.mxu0 0.0
      %779 = vmatpush1.msra.mxu0 %v667
      %780 = vmatprep.subr.mxu0 0.0
      %781 = vmatpush1.msra.mxu0 %v666
      %782 = vmatprep.subr.mxu0 0.0
      %783 = vmatpush1.msra.mxu0 %v665
      %784 = vmatprep.subr.mxu0 0.0
      %785 = vmatpush1.msra.mxu0 %v664
      %786 = vmatprep.subr.mxu0 0.0
      %787 = vmatpush1.msra.mxu0 %v663
      %788 = vmatprep.subr.mxu0 0.0
      %789 = vmatpush1.msra.mxu0 %v662
      %790 = vmatprep.subr.mxu0 0.0
      %791 = vmatpush1.msra.mxu0 %v661
      %792 = vmatprep.subr.mxu0 0.0
      %793 = vmatpush2.msra.mxu0 0.0
      %794 = vmatprep.subr.mxu0 0.0
      %795 = vmatpush2.msra.mxu0 0.0
      %796 = vmatprep.subr.mxu0 0.0
      %797 = vmatpush2.msra.mxu0 0.0
      %798 = vmatprep.subr.mxu0 0.0
      %799 = vmatpush2.msra.mxu0 0.0
      %800 = vmatprep.subr.mxu0 0.0
      %801 = vmatpush2.msra.mxu0 0.0
      %802 = vmatprep.subr.mxu0 0.0
      %803 = vmatpush2.msra.mxu0 0.0
      %804 = vmatprep.subr.mxu0 0.0
      %805 = vmatpush2.msra.mxu0 0.0
      %806 = vmatprep.subr.mxu0 0.0
      %807 = vmatpush2.msra.mxu0 0.0
      %808 = vmatprep.subr.mxu0 0.0
      %809 = vmatpush2.msra.mxu0 0.0
      %810 = vmatprep.subr.mxu0 0.0
      %811 = vmatpush2.msra.mxu0 0.0
      %812 = vmatprep.subr.mxu0 0.0
      %813 = vmatpush2.msra.mxu0 0.0
      %814 = vmatprep.subr.mxu0 0.0
      %815 = vmatpush2.msra.mxu0 0.0
      %816 = vmatprep.subr.mxu0 0.0
      %817 = vmatpush2.msra.mxu0 0.0
      %818 = vmatprep.subr.mxu0 0.0
      %819 = vmatpush2.msra.mxu0 0.0
      %820 = vmatprep.subr.mxu0 0.0
      %821 = vmatpush2.msra.mxu0 0.0
      %822 = vmatprep.subr.mxu0 0.0
      %823 = vmatpush2.msra.mxu0 0.0
      %824 = vmatprep.mubr.f32.mxu0 0.0
      %825 = vmatmul.mubr.f32.gmra.mxu0 %v318
      %v826 = vpop.f32.mrf.mxu0
      %v827 = vadd.f32 %v754, %v826
      %v828 = vpop.f32.mrf.mxu0
      %829 = vdwg.mxu0
      %s830 = scalar_lea.vmem %s2, 440
      %v831 = vld [vmem:[%s830] sm:$0xff]
      %v832 = vld [vmem:[%s830 + $0x8] sm:$0xff]
      %v833 = vld [vmem:[%s830 + $0x10] sm:$0xff]
      %v834 = vld [vmem:[%s830 + $0x18] sm:$0xff]
      %v835 = vld [vmem:[%s830 + $0x20] sm:$0xff]
      %v836 = vld [vmem:[%s830 + $0x28] sm:$0xff]
      %v837 = vld [vmem:[%s830 + $0x30] sm:$0xff]
      %v838 = vld [vmem:[%s830 + $0x38] sm:$0xff]
      %v839 = vld [vmem:[%s830 + $0x40] sm:$0xff]
      %v840 = vld [vmem:[%s830 + $0x48] sm:$0xff]
      %v841 = vld [vmem:[%s830 + $0x50] sm:$0xf]
      %v843 = vsel %vm243, %v841, 0
      %845 = vmatprep.subr.mxu0 0.0
      %846 = vmatpush1.msra.mxu0 0.0
      %847 = vmatprep.subr.mxu0 0.0
      %848 = vmatpush1.msra.mxu0 0.0
      %849 = vmatprep.subr.mxu0 0.0
      %850 = vmatpush1.msra.mxu0 0.0
      %851 = vmatprep.subr.mxu0 0.0
      %852 = vmatpush1.msra.mxu0 0.0
      %853 = vmatprep.subr.mxu0 0.0
      %854 = vmatpush1.msra.mxu0 0.0
      %855 = vmatprep.subr.mxu0 0.0
      %856 = vmatpush1.msra.mxu0 %v843
      %857 = vmatprep.subr.mxu0 0.0
      %858 = vmatpush1.msra.mxu0 %v840
      %859 = vmatprep.subr.mxu0 0.0
      %860 = vmatpush1.msra.mxu0 %v839
      %861 = vmatprep.subr.mxu0 0.0
      %862 = vmatpush1.msra.mxu0 %v838
      %863 = vmatprep.subr.mxu0 0.0
      %864 = vmatpush1.msra.mxu0 %v837
      %865 = vmatprep.subr.mxu0 0.0
      %866 = vmatpush1.msra.mxu0 %v836
      %867 = vmatprep.subr.mxu0 0.0
      %868 = vmatpush1.msra.mxu0 %v835
      %869 = vmatprep.subr.mxu0 0.0
      %870 = vmatpush1.msra.mxu0 %v834
      %871 = vmatprep.subr.mxu0 0.0
      %872 = vmatpush1.msra.mxu0 %v833
      %873 = vmatprep.subr.mxu0 0.0
      %874 = vmatpush1.msra.mxu0 %v832
      %875 = vmatprep.subr.mxu0 0.0
      %876 = vmatpush1.msra.mxu0 %v831
      %877 = vmatprep.subr.mxu0 0.0
      %878 = vmatpush2.msra.mxu0 0.0
      %879 = vmatprep.subr.mxu0 0.0
      %880 = vmatpush2.msra.mxu0 0.0
      %881 = vmatprep.subr.mxu0 0.0
      %882 = vmatpush2.msra.mxu0 0.0
      %883 = vmatprep.subr.mxu0 0.0
      %884 = vmatpush2.msra.mxu0 0.0
      %885 = vmatprep.subr.mxu0 0.0
      %886 = vmatpush2.msra.mxu0 0.0
      %887 = vmatprep.subr.mxu0 0.0
      %888 = vmatpush2.msra.mxu0 0.0
      %889 = vmatprep.subr.mxu0 0.0
      %890 = vmatpush2.msra.mxu0 0.0
      %891 = vmatprep.subr.mxu0 0.0
      %892 = vmatpush2.msra.mxu0 0.0
      %893 = vmatprep.subr.mxu0 0.0
      %894 = vmatpush2.msra.mxu0 0.0
      %895 = vmatprep.subr.mxu0 0.0
      %896 = vmatpush2.msra.mxu0 0.0
      %897 = vmatprep.subr.mxu0 0.0
      %898 = vmatpush2.msra.mxu0 0.0
      %899 = vmatprep.subr.mxu0 0.0
      %900 = vmatpush2.msra.mxu0 0.0
      %901 = vmatprep.subr.mxu0 0.0
      %902 = vmatpush2.msra.mxu0 0.0
      %903 = vmatprep.subr.mxu0 0.0
      %904 = vmatpush2.msra.mxu0 0.0
      %905 = vmatprep.subr.mxu0 0.0
      %906 = vmatpush2.msra.mxu0 0.0
      %907 = vmatprep.subr.mxu0 0.0
      %908 = vmatpush2.msra.mxu0 0.0
      %909 = vmatprep.mubr.f32.mxu0 0.0
      %910 = vmatmul.mubr.f32.gmra.mxu0 %v406
      %v911 = vpop.f32.mrf.mxu0
      %v912 = vadd.f32 0.0, %v911
      %v913 = vpop.f32.mrf.mxu0
      %914 = vdwg.mxu0
      %v915 = vadd.f32 %v827, %v912
      %s916 = scalar_lea.vmem %s2, 616
      %v917 = vld [vmem:[%s916] sm:$0xff]
      %v918 = vld [vmem:[%s916 + $0x8] sm:$0xff]
      %v919 = vld [vmem:[%s916 + $0x10] sm:$0xff]
      %v920 = vld [vmem:[%s916 + $0x18] sm:$0xff]
      %v921 = vld [vmem:[%s916 + $0x20] sm:$0xff]
      %v922 = vld [vmem:[%s916 + $0x28] sm:$0xff]
      %v923 = vld [vmem:[%s916 + $0x30] sm:$0xff]
      %v924 = vld [vmem:[%s916 + $0x38] sm:$0xff]
      %v925 = vld [vmem:[%s916 + $0x40] sm:$0xff]
      %v926 = vld [vmem:[%s916 + $0x48] sm:$0xff]
      %v927 = vld [vmem:[%s916 + $0x50] sm:$0xf]
      %v929 = vsel %vm243, %v927, 0
      %931 = vmatprep.subr.mxu0 0.0
      %932 = vmatpush1.msra.mxu0 0.0
      %933 = vmatprep.subr.mxu0 0.0
      %934 = vmatpush1.msra.mxu0 0.0
      %935 = vmatprep.subr.mxu0 0.0
      %936 = vmatpush1.msra.mxu0 0.0
      %937 = vmatprep.subr.mxu0 0.0
      %938 = vmatpush1.msra.mxu0 0.0
      %939 = vmatprep.subr.mxu0 0.0
      %940 = vmatpush1.msra.mxu0 0.0
      %941 = vmatprep.subr.mxu0 0.0
      %942 = vmatpush1.msra.mxu0 %v929
      %943 = vmatprep.subr.mxu0 0.0
      %944 = vmatpush1.msra.mxu0 %v926
      %945 = vmatprep.subr.mxu0 0.0
      %946 = vmatpush1.msra.mxu0 %v925
      %947 = vmatprep.subr.mxu0 0.0
      %948 = vmatpush1.msra.mxu0 %v924
      %949 = vmatprep.subr.mxu0 0.0
      %950 = vmatpush1.msra.mxu0 %v923
      %951 = vmatprep.subr.mxu0 0.0
      %952 = vmatpush1.msra.mxu0 %v922
      %953 = vmatprep.subr.mxu0 0.0
      %954 = vmatpush1.msra.mxu0 %v921
      %955 = vmatprep.subr.mxu0 0.0
      %956 = vmatpush1.msra.mxu0 %v920
      %957 = vmatprep.subr.mxu0 0.0
      %958 = vmatpush1.msra.mxu0 %v919
      %959 = vmatprep.subr.mxu0 0.0
      %960 = vmatpush1.msra.mxu0 %v918
      %961 = vmatprep.subr.mxu0 0.0
      %962 = vmatpush1.msra.mxu0 %v917
      %963 = vmatprep.subr.mxu0 0.0
      %964 = vmatpush2.msra.mxu0 0.0
      %965 = vmatprep.subr.mxu0 0.0
      %966 = vmatpush2.msra.mxu0 0.0
      %967 = vmatprep.subr.mxu0 0.0
      %968 = vmatpush2.msra.mxu0 0.0
      %969 = vmatprep.subr.mxu0 0.0
      %970 = vmatpush2.msra.mxu0 0.0
      %971 = vmatprep.subr.mxu0 0.0
      %972 = vmatpush2.msra.mxu0 0.0
      %973 = vmatprep.subr.mxu0 0.0
      %974 = vmatpush2.msra.mxu0 0.0
      %975 = vmatprep.subr.mxu0 0.0
      %976 = vmatpush2.msra.mxu0 0.0
      %977 = vmatprep.subr.mxu0 0.0
      %978 = vmatpush2.msra.mxu0 0.0
      %979 = vmatprep.subr.mxu0 0.0
      %980 = vmatpush2.msra.mxu0 0.0
      %981 = vmatprep.subr.mxu0 0.0
      %982 = vmatpush2.msra.mxu0 0.0
      %983 = vmatprep.subr.mxu0 0.0
      %984 = vmatpush2.msra.mxu0 0.0
      %985 = vmatprep.subr.mxu0 0.0
      %986 = vmatpush2.msra.mxu0 0.0
      %987 = vmatprep.subr.mxu0 0.0
      %988 = vmatpush2.msra.mxu0 0.0
      %989 = vmatprep.subr.mxu0 0.0
      %990 = vmatpush2.msra.mxu0 0.0
      %991 = vmatprep.subr.mxu0 0.0
      %992 = vmatpush2.msra.mxu0 0.0
      %993 = vmatprep.subr.mxu0 0.0
      %994 = vmatpush2.msra.mxu0 0.0
      %995 = vmatprep.mubr.f32.mxu0 0.0
      %996 = vmatmul.mubr.f32.gmra.mxu0 %v495
      %v997 = vpop.f32.mrf.mxu0
      %v998 = vadd.f32 0.0, %v997
      %v999 = vpop.f32.mrf.mxu0
      %1000 = vdwg.mxu0
      %v1001 = vadd.f32 %v915, %v998
      %s1002 = scalar_lea.vmem %s2, 792
      %v1003 = vld [vmem:[%s1002] sm:$0xff]
      %v1004 = vld [vmem:[%s1002 + $0x8] sm:$0xff]
      %v1005 = vld [vmem:[%s1002 + $0x10] sm:$0xff]
      %v1006 = vld [vmem:[%s1002 + $0x18] sm:$0xff]
      %v1007 = vld [vmem:[%s1002 + $0x20] sm:$0xff]
      %v1008 = vld [vmem:[%s1002 + $0x28] sm:$0xff]
      %v1009 = vld [vmem:[%s1002 + $0x30] sm:$0xff]
      %v1010 = vld [vmem:[%s1002 + $0x38] sm:$0xff]
      %v1011 = vld [vmem:[%s1002 + $0x40] sm:$0xff]
      %v1012 = vld [vmem:[%s1002 + $0x48] sm:$0xff]
      %v1013 = vld [vmem:[%s1002 + $0x50] sm:$0xf]
      %v1015 = vsel %vm243, %v1013, 0
      %1017 = vmatprep.subr.mxu0 0.0
      %1018 = vmatpush1.msra.mxu0 0.0
      %1019 = vmatprep.subr.mxu0 0.0
      %1020 = vmatpush1.msra.mxu0 0.0
      %1021 = vmatprep.subr.mxu0 0.0
      %1022 = vmatpush1.msra.mxu0 0.0
      %1023 = vmatprep.subr.mxu0 0.0
      %1024 = vmatpush1.msra.mxu0 0.0
      %1025 = vmatprep.subr.mxu0 0.0
      %1026 = vmatpush1.msra.mxu0 0.0
      %1027 = vmatprep.subr.mxu0 0.0
      %1028 = vmatpush1.msra.mxu0 %v1015
      %1029 = vmatprep.subr.mxu0 0.0
      %1030 = vmatpush1.msra.mxu0 %v1012
      %1031 = vmatprep.subr.mxu0 0.0
      %1032 = vmatpush1.msra.mxu0 %v1011
      %1033 = vmatprep.subr.mxu0 0.0
      %1034 = vmatpush1.msra.mxu0 %v1010
      %1035 = vmatprep.subr.mxu0 0.0
      %1036 = vmatpush1.msra.mxu0 %v1009
      %1037 = vmatprep.subr.mxu0 0.0
      %1038 = vmatpush1.msra.mxu0 %v1008
      %1039 = vmatprep.subr.mxu0 0.0
      %1040 = vmatpush1.msra.mxu0 %v1007
      %1041 = vmatprep.subr.mxu0 0.0
      %1042 = vmatpush1.msra.mxu0 %v1006
      %1043 = vmatprep.subr.mxu0 0.0
      %1044 = vmatpush1.msra.mxu0 %v1005
      %1045 = vmatprep.subr.mxu0 0.0
      %1046 = vmatpush1.msra.mxu0 %v1004
      %1047 = vmatprep.subr.mxu0 0.0
      %1048 = vmatpush1.msra.mxu0 %v1003
      %1049 = vmatprep.subr.mxu0 0.0
      %1050 = vmatpush2.msra.mxu0 0.0
      %1051 = vmatprep.subr.mxu0 0.0
      %1052 = vmatpush2.msra.mxu0 0.0
      %1053 = vmatprep.subr.mxu0 0.0
      %1054 = vmatpush2.msra.mxu0 0.0
      %1055 = vmatprep.subr.mxu0 0.0
      %1056 = vmatpush2.msra.mxu0 0.0
      %1057 = vmatprep.subr.mxu0 0.0
      %1058 = vmatpush2.msra.mxu0 0.0
      %1059 = vmatprep.subr.mxu0 0.0
      %1060 = vmatpush2.msra.mxu0 0.0
      %1061 = vmatprep.subr.mxu0 0.0
      %1062 = vmatpush2.msra.mxu0 0.0
      %1063 = vmatprep.subr.mxu0 0.0
      %1064 = vmatpush2.msra.mxu0 0.0
      %1065 = vmatprep.subr.mxu0 0.0
      %1066 = vmatpush2.msra.mxu0 0.0
      %1067 = vmatprep.subr.mxu0 0.0
      %1068 = vmatpush2.msra.mxu0 0.0
      %1069 = vmatprep.subr.mxu0 0.0
      %1070 = vmatpush2.msra.mxu0 0.0
      %1071 = vmatprep.subr.mxu0 0.0
      %1072 = vmatpush2.msra.mxu0 0.0
      %1073 = vmatprep.subr.mxu0 0.0
      %1074 = vmatpush2.msra.mxu0 0.0
      %1075 = vmatprep.subr.mxu0 0.0
      %1076 = vmatpush2.msra.mxu0 0.0
      %1077 = vmatprep.subr.mxu0 0.0
      %1078 = vmatpush2.msra.mxu0 0.0
      %1079 = vmatprep.subr.mxu0 0.0
      %1080 = vmatpush2.msra.mxu0 0.0
      %1081 = vmatprep.mubr.f32.mxu0 0.0
      %1082 = vmatmul.mubr.f32.gmra.mxu0 %v584
      %v1083 = vpop.f32.mrf.mxu0
      %v1084 = vadd.f32 0.0, %v1083
      %v1085 = vpop.f32.mrf.mxu0
      %1086 = vdwg.mxu0
      %v1087 = vadd.f32 %v1001, %v1084
      %v1088 = vmax.f32 %v659, %v1087
      %1089 = vmatprep.subr.mxu0 0.0
      %1090 = vmatpush1.msra.mxu0 0.0
      %1091 = vmatprep.subr.mxu0 0.0
      %1092 = vmatpush1.msra.mxu0 0.0
      %1093 = vmatprep.subr.mxu0 0.0
      %1094 = vmatpush1.msra.mxu0 0.0
      %1095 = vmatprep.subr.mxu0 0.0
      %1096 = vmatpush1.msra.mxu0 0.0
      %1097 = vmatprep.subr.mxu0 0.0
      %1098 = vmatpush1.msra.mxu0 0.0
      %1099 = vmatprep.subr.mxu0 0.0
      %1100 = vmatpush1.msra.mxu0 %v245
      %1101 = vmatprep.subr.mxu0 0.0
      %1102 = vmatpush1.msra.mxu0 %v237
      %1103 = vmatprep.subr.mxu0 0.0
      %1104 = vmatpush1.msra.mxu0 %v236
      %1105 = vmatprep.subr.mxu0 0.0
      %1106 = vmatpush1.msra.mxu0 %v235
      %1107 = vmatprep.subr.mxu0 0.0
      %1108 = vmatpush1.msra.mxu0 %v234
      %1109 = vmatprep.subr.mxu0 0.0
      %1110 = vmatpush1.msra.mxu0 %v233
      %1111 = vmatprep.subr.mxu0 0.0
      %1112 = vmatpush1.msra.mxu0 %v232
      %1113 = vmatprep.subr.mxu0 0.0
      %1114 = vmatpush1.msra.mxu0 %v231
      %1115 = vmatprep.subr.mxu0 0.0
      %1116 = vmatpush1.msra.mxu0 %v230
      %1117 = vmatprep.subr.mxu0 0.0
      %1118 = vmatpush1.msra.mxu0 %v229
      %1119 = vmatprep.subr.mxu0 0.0
      %1120 = vmatpush1.msra.mxu0 %v228
      %1121 = vmatprep.subr.mxu0 0.0
      %1122 = vmatpush2.msra.mxu0 0.0
      %1123 = vmatprep.subr.mxu0 0.0
      %1124 = vmatpush2.msra.mxu0 0.0
      %1125 = vmatprep.subr.mxu0 0.0
      %1126 = vmatpush2.msra.mxu0 0.0
      %1127 = vmatprep.subr.mxu0 0.0
      %1128 = vmatpush2.msra.mxu0 0.0
      %1129 = vmatprep.subr.mxu0 0.0
      %1130 = vmatpush2.msra.mxu0 0.0
      %1131 = vmatprep.subr.mxu0 0.0
      %1132 = vmatpush2.msra.mxu0 0.0
      %1133 = vmatprep.subr.mxu0 0.0
      %1134 = vmatpush2.msra.mxu0 0.0
      %1135 = vmatprep.subr.mxu0 0.0
      %1136 = vmatpush2.msra.mxu0 0.0
      %1137 = vmatprep.subr.mxu0 0.0
      %1138 = vmatpush2.msra.mxu0 0.0
      %1139 = vmatprep.subr.mxu0 0.0
      %1140 = vmatpush2.msra.mxu0 0.0
      %1141 = vmatprep.subr.mxu0 0.0
      %1142 = vmatpush2.msra.mxu0 0.0
      %1143 = vmatprep.subr.mxu0 0.0
      %1144 = vmatpush2.msra.mxu0 0.0
      %1145 = vmatprep.subr.mxu0 0.0
      %1146 = vmatpush2.msra.mxu0 0.0
      %1147 = vmatprep.subr.mxu0 0.0
      %1148 = vmatpush2.msra.mxu0 0.0
      %1149 = vmatprep.subr.mxu0 0.0
      %1150 = vmatpush2.msra.mxu0 0.0
      %1151 = vmatprep.subr.mxu0 0.0
      %1152 = vmatpush2.msra.mxu0 0.0
      %1153 = vmatprep.mubr.f32.mxu0 0.0
      %1154 = vmatmul.mubr.f32.gmra.mxu0 %v406
      %v1155 = vpop.f32.mrf.mxu0
      %v1156 = vadd.f32 0.0, %v1155
      %v1157 = vpop.f32.mrf.mxu0
      %1158 = vdwg.mxu0
      %1159 = vmatprep.subr.mxu0 0.0
      %1160 = vmatpush1.msra.mxu0 0.0
      %1161 = vmatprep.subr.mxu0 0.0
      %1162 = vmatpush1.msra.mxu0 0.0
      %1163 = vmatprep.subr.mxu0 0.0
      %1164 = vmatpush1.msra.mxu0 0.0
      %1165 = vmatprep.subr.mxu0 0.0
      %1166 = vmatpush1.msra.mxu0 0.0
      %1167 = vmatprep.subr.mxu0 0.0
      %1168 = vmatpush1.msra.mxu0 0.0
      %1169 = vmatprep.subr.mxu0 0.0
      %1170 = vmatpush1.msra.mxu0 %v321
      %1171 = vmatprep.subr.mxu0 0.0
      %1172 = vmatpush1.msra.mxu0 %v225
      %1173 = vmatprep.subr.mxu0 0.0
      %1174 = vmatpush1.msra.mxu0 %v224
      %1175 = vmatprep.subr.mxu0 0.0
      %1176 = vmatpush1.msra.mxu0 %v223
      %1177 = vmatprep.subr.mxu0 0.0
      %1178 = vmatpush1.msra.mxu0 %v222
      %1179 = vmatprep.subr.mxu0 0.0
      %1180 = vmatpush1.msra.mxu0 %v221
      %1181 = vmatprep.subr.mxu0 0.0
      %1182 = vmatpush1.msra.mxu0 %v220
      %1183 = vmatprep.subr.mxu0 0.0
      %1184 = vmatpush1.msra.mxu0 %v219
      %1185 = vmatprep.subr.mxu0 0.0
      %1186 = vmatpush1.msra.mxu0 %v218
      %1187 = vmatprep.subr.mxu0 0.0
      %1188 = vmatpush1.msra.mxu0 %v217
      %1189 = vmatprep.subr.mxu0 0.0
      %1190 = vmatpush1.msra.mxu0 %v216
      %1191 = vmatprep.subr.mxu0 0.0
      %1192 = vmatpush2.msra.mxu0 0.0
      %1193 = vmatprep.subr.mxu0 0.0
      %1194 = vmatpush2.msra.mxu0 0.0
      %1195 = vmatprep.subr.mxu0 0.0
      %1196 = vmatpush2.msra.mxu0 0.0
      %1197 = vmatprep.subr.mxu0 0.0
      %1198 = vmatpush2.msra.mxu0 0.0
      %1199 = vmatprep.subr.mxu0 0.0
      %1200 = vmatpush2.msra.mxu0 0.0
      %1201 = vmatprep.subr.mxu0 0.0
      %1202 = vmatpush2.msra.mxu0 0.0
      %1203 = vmatprep.subr.mxu0 0.0
      %1204 = vmatpush2.msra.mxu0 0.0
      %1205 = vmatprep.subr.mxu0 0.0
      %1206 = vmatpush2.msra.mxu0 0.0
      %1207 = vmatprep.subr.mxu0 0.0
      %1208 = vmatpush2.msra.mxu0 0.0
      %1209 = vmatprep.subr.mxu0 0.0
      %1210 = vmatpush2.msra.mxu0 0.0
      %1211 = vmatprep.subr.mxu0 0.0
      %1212 = vmatpush2.msra.mxu0 0.0
      %1213 = vmatprep.subr.mxu0 0.0
      %1214 = vmatpush2.msra.mxu0 0.0
      %1215 = vmatprep.subr.mxu0 0.0
      %1216 = vmatpush2.msra.mxu0 0.0
      %1217 = vmatprep.subr.mxu0 0.0
      %1218 = vmatpush2.msra.mxu0 0.0
      %1219 = vmatprep.subr.mxu0 0.0
      %1220 = vmatpush2.msra.mxu0 0.0
      %1221 = vmatprep.subr.mxu0 0.0
      %1222 = vmatpush2.msra.mxu0 0.0
      %1223 = vmatprep.mubr.f32.mxu0 0.0
      %1224 = vmatmul.mubr.f32.gmra.mxu0 %v241
      %v1225 = vpop.f32.mrf.mxu0
      %v1226 = vadd.f32 %v1156, %v1225
      %v1227 = vpop.f32.mrf.mxu0
      %1228 = vdwg.mxu0
      %1229 = vmatprep.subr.mxu0 0.0
      %1230 = vmatpush1.msra.mxu0 0.0
      %1231 = vmatprep.subr.mxu0 0.0
      %1232 = vmatpush1.msra.mxu0 0.0
      %1233 = vmatprep.subr.mxu0 0.0
      %1234 = vmatpush1.msra.mxu0 0.0
      %1235 = vmatprep.subr.mxu0 0.0
      %1236 = vmatpush1.msra.mxu0 0.0
      %1237 = vmatprep.subr.mxu0 0.0
      %1238 = vmatpush1.msra.mxu0 0.0
      %1239 = vmatprep.subr.mxu0 0.0
      %1240 = vmatpush1.msra.mxu0 %v409
      %1241 = vmatprep.subr.mxu0 0.0
      %1242 = vmatpush1.msra.mxu0 %v403
      %1243 = vmatprep.subr.mxu0 0.0
      %1244 = vmatpush1.msra.mxu0 %v402
      %1245 = vmatprep.subr.mxu0 0.0
      %1246 = vmatpush1.msra.mxu0 %v401
      %1247 = vmatprep.subr.mxu0 0.0
      %1248 = vmatpush1.msra.mxu0 %v400
      %1249 = vmatprep.subr.mxu0 0.0
      %1250 = vmatpush1.msra.mxu0 %v399
      %1251 = vmatprep.subr.mxu0 0.0
      %1252 = vmatpush1.msra.mxu0 %v398
      %1253 = vmatprep.subr.mxu0 0.0
      %1254 = vmatpush1.msra.mxu0 %v397
      %1255 = vmatprep.subr.mxu0 0.0
      %1256 = vmatpush1.msra.mxu0 %v396
      %1257 = vmatprep.subr.mxu0 0.0
      %1258 = vmatpush1.msra.mxu0 %v395
      %1259 = vmatprep.subr.mxu0 0.0
      %1260 = vmatpush1.msra.mxu0 %v394
      %1261 = vmatprep.subr.mxu0 0.0
      %1262 = vmatpush2.msra.mxu0 0.0
      %1263 = vmatprep.subr.mxu0 0.0
      %1264 = vmatpush2.msra.mxu0 0.0
      %1265 = vmatprep.subr.mxu0 0.0
      %1266 = vmatpush2.msra.mxu0 0.0
      %1267 = vmatprep.subr.mxu0 0.0
      %1268 = vmatpush2.msra.mxu0 0.0
      %1269 = vmatprep.subr.mxu0 0.0
      %1270 = vmatpush2.msra.mxu0 0.0
      %1271 = vmatprep.subr.mxu0 0.0
      %1272 = vmatpush2.msra.mxu0 0.0
      %1273 = vmatprep.subr.mxu0 0.0
      %1274 = vmatpush2.msra.mxu0 0.0
      %1275 = vmatprep.subr.mxu0 0.0
      %1276 = vmatpush2.msra.mxu0 0.0
      %1277 = vmatprep.subr.mxu0 0.0
      %1278 = vmatpush2.msra.mxu0 0.0
      %1279 = vmatprep.subr.mxu0 0.0
      %1280 = vmatpush2.msra.mxu0 0.0
      %1281 = vmatprep.subr.mxu0 0.0
      %1282 = vmatpush2.msra.mxu0 0.0
      %1283 = vmatprep.subr.mxu0 0.0
      %1284 = vmatpush2.msra.mxu0 0.0
      %1285 = vmatprep.subr.mxu0 0.0
      %1286 = vmatpush2.msra.mxu0 0.0
      %1287 = vmatprep.subr.mxu0 0.0
      %1288 = vmatpush2.msra.mxu0 0.0
      %1289 = vmatprep.subr.mxu0 0.0
      %1290 = vmatpush2.msra.mxu0 0.0
      %1291 = vmatprep.subr.mxu0 0.0
      %1292 = vmatpush2.msra.mxu0 0.0
      %1293 = vmatprep.mubr.f32.mxu0 0.0
      %1294 = vmatmul.mubr.f32.gmra.mxu0 %v495
      %v1295 = vpop.f32.mrf.mxu0
      %v1296 = vadd.f32 0.0, %v1295
      %v1297 = vpop.f32.mrf.mxu0
      %1298 = vdwg.mxu0
      %v1299 = vadd.f32 %v1226, %v1296
      %1300 = vmatprep.subr.mxu0 0.0
      %1301 = vmatpush1.msra.mxu0 0.0
      %1302 = vmatprep.subr.mxu0 0.0
      %1303 = vmatpush1.msra.mxu0 0.0
      %1304 = vmatprep.subr.mxu0 0.0
      %1305 = vmatpush1.msra.mxu0 0.0
      %1306 = vmatprep.subr.mxu0 0.0
      %1307 = vmatpush1.msra.mxu0 0.0
      %1308 = vmatprep.subr.mxu0 0.0
      %1309 = vmatpush1.msra.mxu0 0.0
      %1310 = vmatprep.subr.mxu0 0.0
      %1311 = vmatpush1.msra.mxu0 %v498
      %1312 = vmatprep.subr.mxu0 0.0
      %1313 = vmatpush1.msra.mxu0 %v492
      %1314 = vmatprep.subr.mxu0 0.0
      %1315 = vmatpush1.msra.mxu0 %v491
      %1316 = vmatprep.subr.mxu0 0.0
      %1317 = vmatpush1.msra.mxu0 %v490
      %1318 = vmatprep.subr.mxu0 0.0
      %1319 = vmatpush1.msra.mxu0 %v489
      %1320 = vmatprep.subr.mxu0 0.0
      %1321 = vmatpush1.msra.mxu0 %v488
      %1322 = vmatprep.subr.mxu0 0.0
      %1323 = vmatpush1.msra.mxu0 %v487
      %1324 = vmatprep.subr.mxu0 0.0
      %1325 = vmatpush1.msra.mxu0 %v486
      %1326 = vmatprep.subr.mxu0 0.0
      %1327 = vmatpush1.msra.mxu0 %v485
      %1328 = vmatprep.subr.mxu0 0.0
      %1329 = vmatpush1.msra.mxu0 %v484
      %1330 = vmatprep.subr.mxu0 0.0
      %1331 = vmatpush1.msra.mxu0 %v483
      %1332 = vmatprep.subr.mxu0 0.0
      %1333 = vmatpush2.msra.mxu0 0.0
      %1334 = vmatprep.subr.mxu0 0.0
      %1335 = vmatpush2.msra.mxu0 0.0
      %1336 = vmatprep.subr.mxu0 0.0
      %1337 = vmatpush2.msra.mxu0 0.0
      %1338 = vmatprep.subr.mxu0 0.0
      %1339 = vmatpush2.msra.mxu0 0.0
      %1340 = vmatprep.subr.mxu0 0.0
      %1341 = vmatpush2.msra.mxu0 0.0
      %1342 = vmatprep.subr.mxu0 0.0
      %1343 = vmatpush2.msra.mxu0 0.0
      %1344 = vmatprep.subr.mxu0 0.0
      %1345 = vmatpush2.msra.mxu0 0.0
      %1346 = vmatprep.subr.mxu0 0.0
      %1347 = vmatpush2.msra.mxu0 0.0
      %1348 = vmatprep.subr.mxu0 0.0
      %1349 = vmatpush2.msra.mxu0 0.0
      %1350 = vmatprep.subr.mxu0 0.0
      %1351 = vmatpush2.msra.mxu0 0.0
      %1352 = vmatprep.subr.mxu0 0.0
      %1353 = vmatpush2.msra.mxu0 0.0
      %1354 = vmatprep.subr.mxu0 0.0
      %1355 = vmatpush2.msra.mxu0 0.0
      %1356 = vmatprep.subr.mxu0 0.0
      %1357 = vmatpush2.msra.mxu0 0.0
      %1358 = vmatprep.subr.mxu0 0.0
      %1359 = vmatpush2.msra.mxu0 0.0
      %1360 = vmatprep.subr.mxu0 0.0
      %1361 = vmatpush2.msra.mxu0 0.0
      %1362 = vmatprep.subr.mxu0 0.0
      %1363 = vmatpush2.msra.mxu0 0.0
      %1364 = vmatprep.mubr.f32.mxu0 0.0
      %1365 = vmatmul.mubr.f32.gmra.mxu0 %v584
      %v1366 = vpop.f32.mrf.mxu0
      %v1367 = vadd.f32 0.0, %v1366
      %v1368 = vpop.f32.mrf.mxu0
      %1369 = vdwg.mxu0
      %v1370 = vadd.f32 %v1299, %v1367
      %v1372 = vsel %vm239, %v215, 0
      %1374 = vmatprep.subr.mxu0 0.0
      %1375 = vmatpush1.msra.mxu0 0.0
      %1376 = vmatprep.subr.mxu0 0.0
      %1377 = vmatpush1.msra.mxu0 0.0
      %1378 = vmatprep.subr.mxu0 0.0
      %1379 = vmatpush1.msra.mxu0 0.0
      %1380 = vmatprep.subr.mxu0 0.0
      %1381 = vmatpush1.msra.mxu0 0.0
      %1382 = vmatprep.subr.mxu0 0.0
      %1383 = vmatpush1.msra.mxu0 0.0
      %1384 = vmatprep.subr.mxu0 0.0
      %1385 = vmatpush1.msra.mxu0 %v587
      %1386 = vmatprep.subr.mxu0 0.0
      %1387 = vmatpush1.msra.mxu0 %v581
      %1388 = vmatprep.subr.mxu0 0.0
      %1389 = vmatpush1.msra.mxu0 %v580
      %1390 = vmatprep.subr.mxu0 0.0
      %1391 = vmatpush1.msra.mxu0 %v579
      %1392 = vmatprep.subr.mxu0 0.0
      %1393 = vmatpush1.msra.mxu0 %v578
      %1394 = vmatprep.subr.mxu0 0.0
      %1395 = vmatpush1.msra.mxu0 %v577
      %1396 = vmatprep.subr.mxu0 0.0
      %1397 = vmatpush1.msra.mxu0 %v576
      %1398 = vmatprep.subr.mxu0 0.0
      %1399 = vmatpush1.msra.mxu0 %v575
      %1400 = vmatprep.subr.mxu0 0.0
      %1401 = vmatpush1.msra.mxu0 %v574
      %1402 = vmatprep.subr.mxu0 0.0
      %1403 = vmatpush1.msra.mxu0 %v573
      %1404 = vmatprep.subr.mxu0 0.0
      %1405 = vmatpush1.msra.mxu0 %v572
      %1406 = vmatprep.subr.mxu0 0.0
      %1407 = vmatpush2.msra.mxu0 0.0
      %1408 = vmatprep.subr.mxu0 0.0
      %1409 = vmatpush2.msra.mxu0 0.0
      %1410 = vmatprep.subr.mxu0 0.0
      %1411 = vmatpush2.msra.mxu0 0.0
      %1412 = vmatprep.subr.mxu0 0.0
      %1413 = vmatpush2.msra.mxu0 0.0
      %1414 = vmatprep.subr.mxu0 0.0
      %1415 = vmatpush2.msra.mxu0 0.0
      %1416 = vmatprep.subr.mxu0 0.0
      %1417 = vmatpush2.msra.mxu0 0.0
      %1418 = vmatprep.subr.mxu0 0.0
      %1419 = vmatpush2.msra.mxu0 0.0
      %1420 = vmatprep.subr.mxu0 0.0
      %1421 = vmatpush2.msra.mxu0 0.0
      %1422 = vmatprep.subr.mxu0 0.0
      %1423 = vmatpush2.msra.mxu0 0.0
      %1424 = vmatprep.subr.mxu0 0.0
      %1425 = vmatpush2.msra.mxu0 0.0
      %1426 = vmatprep.subr.mxu0 0.0
      %1427 = vmatpush2.msra.mxu0 0.0
      %1428 = vmatprep.subr.mxu0 0.0
      %1429 = vmatpush2.msra.mxu0 0.0
      %1430 = vmatprep.subr.mxu0 0.0
      %1431 = vmatpush2.msra.mxu0 0.0
      %1432 = vmatprep.subr.mxu0 0.0
      %1433 = vmatpush2.msra.mxu0 0.0
      %1434 = vmatprep.subr.mxu0 0.0
      %1435 = vmatpush2.msra.mxu0 0.0
      %1436 = vmatprep.subr.mxu0 0.0
      %1437 = vmatpush2.msra.mxu0 0.0
      %1438 = vmatprep.mubr.f32.mxu0 0.0
      %1439 = vmatmul.mubr.f32.gmra.mxu0 %v1372
      %v1440 = vpop.f32.mrf.mxu0
      %v1441 = vadd.f32 0.0, %v1440
      %v1442 = vpop.f32.mrf.mxu0
      %1443 = vdwg.mxu0
      %v1444 = vadd.f32 %v1370, %v1441
      %v1445 = vmax.f32 %v1088, %v1444
      %1446 = vmatprep.subr.mxu0 0.0
      %1447 = vmatpush1.msra.mxu0 0.0
      %1448 = vmatprep.subr.mxu0 0.0
      %1449 = vmatpush1.msra.mxu0 0.0
      %1450 = vmatprep.subr.mxu0 0.0
      %1451 = vmatpush1.msra.mxu0 0.0
      %1452 = vmatprep.subr.mxu0 0.0
      %1453 = vmatpush1.msra.mxu0 0.0
      %1454 = vmatprep.subr.mxu0 0.0
      %1455 = vmatpush1.msra.mxu0 0.0
      %1456 = vmatprep.subr.mxu0 0.0
      %1457 = vmatpush1.msra.mxu0 %v685
      %1458 = vmatprep.subr.mxu0 0.0
      %1459 = vmatpush1.msra.mxu0 %v682
      %1460 = vmatprep.subr.mxu0 0.0
      %1461 = vmatpush1.msra.mxu0 %v681
      %1462 = vmatprep.subr.mxu0 0.0
      %1463 = vmatpush1.msra.mxu0 %v680
      %1464 = vmatprep.subr.mxu0 0.0
      %1465 = vmatpush1.msra.mxu0 %v679
      %1466 = vmatprep.subr.mxu0 0.0
      %1467 = vmatpush1.msra.mxu0 %v678
      %1468 = vmatprep.subr.mxu0 0.0
      %1469 = vmatpush1.msra.mxu0 %v677
      %1470 = vmatprep.subr.mxu0 0.0
      %1471 = vmatpush1.msra.mxu0 %v676
      %1472 = vmatprep.subr.mxu0 0.0
      %1473 = vmatpush1.msra.mxu0 %v675
      %1474 = vmatprep.subr.mxu0 0.0
      %1475 = vmatpush1.msra.mxu0 %v674
      %1476 = vmatprep.subr.mxu0 0.0
      %1477 = vmatpush1.msra.mxu0 %v673
      %1478 = vmatprep.subr.mxu0 0.0
      %1479 = vmatpush2.msra.mxu0 0.0
      %1480 = vmatprep.subr.mxu0 0.0
      %1481 = vmatpush2.msra.mxu0 0.0
      %1482 = vmatprep.subr.mxu0 0.0
      %1483 = vmatpush2.msra.mxu0 0.0
      %1484 = vmatprep.subr.mxu0 0.0
      %1485 = vmatpush2.msra.mxu0 0.0
      %1486 = vmatprep.subr.mxu0 0.0
      %1487 = vmatpush2.msra.mxu0 0.0
      %1488 = vmatprep.subr.mxu0 0.0
      %1489 = vmatpush2.msra.mxu0 0.0
      %1490 = vmatprep.subr.mxu0 0.0
      %1491 = vmatpush2.msra.mxu0 0.0
      %1492 = vmatprep.subr.mxu0 0.0
      %1493 = vmatpush2.msra.mxu0 0.0
      %1494 = vmatprep.subr.mxu0 0.0
      %1495 = vmatpush2.msra.mxu0 0.0
      %1496 = vmatprep.subr.mxu0 0.0
      %1497 = vmatpush2.msra.mxu0 0.0
      %1498 = vmatprep.subr.mxu0 0.0
      %1499 = vmatpush2.msra.mxu0 0.0
      %1500 = vmatprep.subr.mxu0 0.0
      %1501 = vmatpush2.msra.mxu0 0.0
      %1502 = vmatprep.subr.mxu0 0.0
      %1503 = vmatpush2.msra.mxu0 0.0
      %1504 = vmatprep.subr.mxu0 0.0
      %1505 = vmatpush2.msra.mxu0 0.0
      %1506 = vmatprep.subr.mxu0 0.0
      %1507 = vmatpush2.msra.mxu0 0.0
      %1508 = vmatprep.subr.mxu0 0.0
      %1509 = vmatpush2.msra.mxu0 0.0
      %1510 = vmatprep.mubr.f32.mxu0 0.0
      %1511 = vmatmul.mubr.f32.gmra.mxu0 %v406
      %v1512 = vpop.f32.mrf.mxu0
      %v1513 = vadd.f32 0.0, %v1512
      %v1514 = vpop.f32.mrf.mxu0
      %1515 = vdwg.mxu0
      %1516 = vmatprep.subr.mxu0 0.0
      %1517 = vmatpush1.msra.mxu0 0.0
      %1518 = vmatprep.subr.mxu0 0.0
      %1519 = vmatpush1.msra.mxu0 0.0
      %1520 = vmatprep.subr.mxu0 0.0
      %1521 = vmatpush1.msra.mxu0 0.0
      %1522 = vmatprep.subr.mxu0 0.0
      %1523 = vmatpush1.msra.mxu0 0.0
      %1524 = vmatprep.subr.mxu0 0.0
      %1525 = vmatpush1.msra.mxu0 0.0
      %1526 = vmatprep.subr.mxu0 0.0
      %1527 = vmatpush1.msra.mxu0 %v758
      %1528 = vmatprep.subr.mxu0 0.0
      %1529 = vmatpush1.msra.mxu0 %v670
      %1530 = vmatprep.subr.mxu0 0.0
      %1531 = vmatpush1.msra.mxu0 %v669
      %1532 = vmatprep.subr.mxu0 0.0
      %1533 = vmatpush1.msra.mxu0 %v668
      %1534 = vmatprep.subr.mxu0 0.0
      %1535 = vmatpush1.msra.mxu0 %v667
      %1536 = vmatprep.subr.mxu0 0.0
      %1537 = vmatpush1.msra.mxu0 %v666
      %1538 = vmatprep.subr.mxu0 0.0
      %1539 = vmatpush1.msra.mxu0 %v665
      %1540 = vmatprep.subr.mxu0 0.0
      %1541 = vmatpush1.msra.mxu0 %v664
      %1542 = vmatprep.subr.mxu0 0.0
      %1543 = vmatpush1.msra.mxu0 %v663
      %1544 = vmatprep.subr.mxu0 0.0
      %1545 = vmatpush1.msra.mxu0 %v662
      %1546 = vmatprep.subr.mxu0 0.0
      %1547 = vmatpush1.msra.mxu0 %v661
      %1548 = vmatprep.subr.mxu0 0.0
      %1549 = vmatpush2.msra.mxu0 0.0
      %1550 = vmatprep.subr.mxu0 0.0
      %1551 = vmatpush2.msra.mxu0 0.0
      %1552 = vmatprep.subr.mxu0 0.0
      %1553 = vmatpush2.msra.mxu0 0.0
      %1554 = vmatprep.subr.mxu0 0.0
      %1555 = vmatpush2.msra.mxu0 0.0
      %1556 = vmatprep.subr.mxu0 0.0
      %1557 = vmatpush2.msra.mxu0 0.0
      %1558 = vmatprep.subr.mxu0 0.0
      %1559 = vmatpush2.msra.mxu0 0.0
      %1560 = vmatprep.subr.mxu0 0.0
      %1561 = vmatpush2.msra.mxu0 0.0
      %1562 = vmatprep.subr.mxu0 0.0
      %1563 = vmatpush2.msra.mxu0 0.0
      %1564 = vmatprep.subr.mxu0 0.0
      %1565 = vmatpush2.msra.mxu0 0.0
      %1566 = vmatprep.subr.mxu0 0.0
      %1567 = vmatpush2.msra.mxu0 0.0
      %1568 = vmatprep.subr.mxu0 0.0
      %1569 = vmatpush2.msra.mxu0 0.0
      %1570 = vmatprep.subr.mxu0 0.0
      %1571 = vmatpush2.msra.mxu0 0.0
      %1572 = vmatprep.subr.mxu0 0.0
      %1573 = vmatpush2.msra.mxu0 0.0
      %1574 = vmatprep.subr.mxu0 0.0
      %1575 = vmatpush2.msra.mxu0 0.0
      %1576 = vmatprep.subr.mxu0 0.0
      %1577 = vmatpush2.msra.mxu0 0.0
      %1578 = vmatprep.subr.mxu0 0.0
      %1579 = vmatpush2.msra.mxu0 0.0
      %1580 = vmatprep.mubr.f32.mxu0 0.0
      %1581 = vmatmul.mubr.f32.gmra.mxu0 %v241
      %v1582 = vpop.f32.mrf.mxu0
      %v1583 = vadd.f32 %v1513, %v1582
      %v1584 = vpop.f32.mrf.mxu0
      %1585 = vdwg.mxu0
      %1586 = vmatprep.subr.mxu0 0.0
      %1587 = vmatpush1.msra.mxu0 0.0
      %1588 = vmatprep.subr.mxu0 0.0
      %1589 = vmatpush1.msra.mxu0 0.0
      %1590 = vmatprep.subr.mxu0 0.0
      %1591 = vmatpush1.msra.mxu0 0.0
      %1592 = vmatprep.subr.mxu0 0.0
      %1593 = vmatpush1.msra.mxu0 0.0
      %1594 = vmatprep.subr.mxu0 0.0
      %1595 = vmatpush1.msra.mxu0 0.0
      %1596 = vmatprep.subr.mxu0 0.0
      %1597 = vmatpush1.msra.mxu0 %v843
      %1598 = vmatprep.subr.mxu0 0.0
      %1599 = vmatpush1.msra.mxu0 %v840
      %1600 = vmatprep.subr.mxu0 0.0
      %1601 = vmatpush1.msra.mxu0 %v839
      %1602 = vmatprep.subr.mxu0 0.0
      %1603 = vmatpush1.msra.mxu0 %v838
      %1604 = vmatprep.subr.mxu0 0.0
      %1605 = vmatpush1.msra.mxu0 %v837
      %1606 = vmatprep.subr.mxu0 0.0
      %1607 = vmatpush1.msra.mxu0 %v836
      %1608 = vmatprep.subr.mxu0 0.0
      %1609 = vmatpush1.msra.mxu0 %v835
      %1610 = vmatprep.subr.mxu0 0.0
      %1611 = vmatpush1.msra.mxu0 %v834
      %1612 = vmatprep.subr.mxu0 0.0
      %1613 = vmatpush1.msra.mxu0 %v833
      %1614 = vmatprep.subr.mxu0 0.0
      %1615 = vmatpush1.msra.mxu0 %v832
      %1616 = vmatprep.subr.mxu0 0.0
      %1617 = vmatpush1.msra.mxu0 %v831
      %1618 = vmatprep.subr.mxu0 0.0
      %1619 = vmatpush2.msra.mxu0 0.0
      %1620 = vmatprep.subr.mxu0 0.0
      %1621 = vmatpush2.msra.mxu0 0.0
      %1622 = vmatprep.subr.mxu0 0.0
      %1623 = vmatpush2.msra.mxu0 0.0
      %1624 = vmatprep.subr.mxu0 0.0
      %1625 = vmatpush2.msra.mxu0 0.0
      %1626 = vmatprep.subr.mxu0 0.0
      %1627 = vmatpush2.msra.mxu0 0.0
      %1628 = vmatprep.subr.mxu0 0.0
      %1629 = vmatpush2.msra.mxu0 0.0
      %1630 = vmatprep.subr.mxu0 0.0
      %1631 = vmatpush2.msra.mxu0 0.0
      %1632 = vmatprep.subr.mxu0 0.0
      %1633 = vmatpush2.msra.mxu0 0.0
      %1634 = vmatprep.subr.mxu0 0.0
      %1635 = vmatpush2.msra.mxu0 0.0
      %1636 = vmatprep.subr.mxu0 0.0
      %1637 = vmatpush2.msra.mxu0 0.0
      %1638 = vmatprep.subr.mxu0 0.0
      %1639 = vmatpush2.msra.mxu0 0.0
      %1640 = vmatprep.subr.mxu0 0.0
      %1641 = vmatpush2.msra.mxu0 0.0
      %1642 = vmatprep.subr.mxu0 0.0
      %1643 = vmatpush2.msra.mxu0 0.0
      %1644 = vmatprep.subr.mxu0 0.0
      %1645 = vmatpush2.msra.mxu0 0.0
      %1646 = vmatprep.subr.mxu0 0.0
      %1647 = vmatpush2.msra.mxu0 0.0
      %1648 = vmatprep.subr.mxu0 0.0
      %1649 = vmatpush2.msra.mxu0 0.0
      %1650 = vmatprep.mubr.f32.mxu0 0.0
      %1651 = vmatmul.mubr.f32.gmra.mxu0 %v495
      %v1652 = vpop.f32.mrf.mxu0
      %v1653 = vadd.f32 0.0, %v1652
      %v1654 = vpop.f32.mrf.mxu0
      %1655 = vdwg.mxu0
      %v1656 = vadd.f32 %v1583, %v1653
      %1657 = vmatprep.subr.mxu0 0.0
      %1658 = vmatpush1.msra.mxu0 0.0
      %1659 = vmatprep.subr.mxu0 0.0
      %1660 = vmatpush1.msra.mxu0 0.0
      %1661 = vmatprep.subr.mxu0 0.0
      %1662 = vmatpush1.msra.mxu0 0.0
      %1663 = vmatprep.subr.mxu0 0.0
      %1664 = vmatpush1.msra.mxu0 0.0
      %1665 = vmatprep.subr.mxu0 0.0
      %1666 = vmatpush1.msra.mxu0 0.0
      %1667 = vmatprep.subr.mxu0 0.0
      %1668 = vmatpush1.msra.mxu0 %v929
      %1669 = vmatprep.subr.mxu0 0.0
      %1670 = vmatpush1.msra.mxu0 %v926
      %1671 = vmatprep.subr.mxu0 0.0
      %1672 = vmatpush1.msra.mxu0 %v925
      %1673 = vmatprep.subr.mxu0 0.0
      %1674 = vmatpush1.msra.mxu0 %v924
      %1675 = vmatprep.subr.mxu0 0.0
      %1676 = vmatpush1.msra.mxu0 %v923
      %1677 = vmatprep.subr.mxu0 0.0
      %1678 = vmatpush1.msra.mxu0 %v922
      %1679 = vmatprep.subr.mxu0 0.0
      %1680 = vmatpush1.msra.mxu0 %v921
      %1681 = vmatprep.subr.mxu0 0.0
      %1682 = vmatpush1.msra.mxu0 %v920
      %1683 = vmatprep.subr.mxu0 0.0
      %1684 = vmatpush1.msra.mxu0 %v919
      %1685 = vmatprep.subr.mxu0 0.0
      %1686 = vmatpush1.msra.mxu0 %v918
      %1687 = vmatprep.subr.mxu0 0.0
      %1688 = vmatpush1.msra.mxu0 %v917
      %1689 = vmatprep.subr.mxu0 0.0
      %1690 = vmatpush2.msra.mxu0 0.0
      %1691 = vmatprep.subr.mxu0 0.0
      %1692 = vmatpush2.msra.mxu0 0.0
      %1693 = vmatprep.subr.mxu0 0.0
      %1694 = vmatpush2.msra.mxu0 0.0
      %1695 = vmatprep.subr.mxu0 0.0
      %1696 = vmatpush2.msra.mxu0 0.0
      %1697 = vmatprep.subr.mxu0 0.0
      %1698 = vmatpush2.msra.mxu0 0.0
      %1699 = vmatprep.subr.mxu0 0.0
      %1700 = vmatpush2.msra.mxu0 0.0
      %1701 = vmatprep.subr.mxu0 0.0
      %1702 = vmatpush2.msra.mxu0 0.0
      %1703 = vmatprep.subr.mxu0 0.0
      %1704 = vmatpush2.msra.mxu0 0.0
      %1705 = vmatprep.subr.mxu0 0.0
      %1706 = vmatpush2.msra.mxu0 0.0
      %1707 = vmatprep.subr.mxu0 0.0
      %1708 = vmatpush2.msra.mxu0 0.0
      %1709 = vmatprep.subr.mxu0 0.0
      %1710 = vmatpush2.msra.mxu0 0.0
      %1711 = vmatprep.subr.mxu0 0.0
      %1712 = vmatpush2.msra.mxu0 0.0
      %1713 = vmatprep.subr.mxu0 0.0
      %1714 = vmatpush2.msra.mxu0 0.0
      %1715 = vmatprep.subr.mxu0 0.0
      %1716 = vmatpush2.msra.mxu0 0.0
      %1717 = vmatprep.subr.mxu0 0.0
      %1718 = vmatpush2.msra.mxu0 0.0
      %1719 = vmatprep.subr.mxu0 0.0
      %1720 = vmatpush2.msra.mxu0 0.0
      %1721 = vmatprep.mubr.f32.mxu0 0.0
      %1722 = vmatmul.mubr.f32.gmra.mxu0 %v584
      %v1723 = vpop.f32.mrf.mxu0
      %v1724 = vadd.f32 0.0, %v1723
      %v1725 = vpop.f32.mrf.mxu0
      %1726 = vdwg.mxu0
      %v1727 = vadd.f32 %v1656, %v1724
      %1728 = vmatprep.subr.mxu0 0.0
      %1729 = vmatpush1.msra.mxu0 0.0
      %1730 = vmatprep.subr.mxu0 0.0
      %1731 = vmatpush1.msra.mxu0 0.0
      %1732 = vmatprep.subr.mxu0 0.0
      %1733 = vmatpush1.msra.mxu0 0.0
      %1734 = vmatprep.subr.mxu0 0.0
      %1735 = vmatpush1.msra.mxu0 0.0
      %1736 = vmatprep.subr.mxu0 0.0
      %1737 = vmatpush1.msra.mxu0 0.0
      %1738 = vmatprep.subr.mxu0 0.0
      %1739 = vmatpush1.msra.mxu0 %v1015
      %1740 = vmatprep.subr.mxu0 0.0
      %1741 = vmatpush1.msra.mxu0 %v1012
      %1742 = vmatprep.subr.mxu0 0.0
      %1743 = vmatpush1.msra.mxu0 %v1011
      %1744 = vmatprep.subr.mxu0 0.0
      %1745 = vmatpush1.msra.mxu0 %v1010
      %1746 = vmatprep.subr.mxu0 0.0
      %1747 = vmatpush1.msra.mxu0 %v1009
      %1748 = vmatprep.subr.mxu0 0.0
      %1749 = vmatpush1.msra.mxu0 %v1008
      %1750 = vmatprep.subr.mxu0 0.0
      %1751 = vmatpush1.msra.mxu0 %v1007
      %1752 = vmatprep.subr.mxu0 0.0
      %1753 = vmatpush1.msra.mxu0 %v1006
      %1754 = vmatprep.subr.mxu0 0.0
      %1755 = vmatpush1.msra.mxu0 %v1005
      %1756 = vmatprep.subr.mxu0 0.0
      %1757 = vmatpush1.msra.mxu0 %v1004
      %1758 = vmatprep.subr.mxu0 0.0
      %1759 = vmatpush1.msra.mxu0 %v1003
      %1760 = vmatprep.subr.mxu0 0.0
      %1761 = vmatpush2.msra.mxu0 0.0
      %1762 = vmatprep.subr.mxu0 0.0
      %1763 = vmatpush2.msra.mxu0 0.0
      %1764 = vmatprep.subr.mxu0 0.0
      %1765 = vmatpush2.msra.mxu0 0.0
      %1766 = vmatprep.subr.mxu0 0.0
      %1767 = vmatpush2.msra.mxu0 0.0
      %1768 = vmatprep.subr.mxu0 0.0
      %1769 = vmatpush2.msra.mxu0 0.0
      %1770 = vmatprep.subr.mxu0 0.0
      %1771 = vmatpush2.msra.mxu0 0.0
      %1772 = vmatprep.subr.mxu0 0.0
      %1773 = vmatpush2.msra.mxu0 0.0
      %1774 = vmatprep.subr.mxu0 0.0
      %1775 = vmatpush2.msra.mxu0 0.0
      %1776 = vmatprep.subr.mxu0 0.0
      %1777 = vmatpush2.msra.mxu0 0.0
      %1778 = vmatprep.subr.mxu0 0.0
      %1779 = vmatpush2.msra.mxu0 0.0
      %1780 = vmatprep.subr.mxu0 0.0
      %1781 = vmatpush2.msra.mxu0 0.0
      %1782 = vmatprep.subr.mxu0 0.0
      %1783 = vmatpush2.msra.mxu0 0.0
      %1784 = vmatprep.subr.mxu0 0.0
      %1785 = vmatpush2.msra.mxu0 0.0
      %1786 = vmatprep.subr.mxu0 0.0
      %1787 = vmatpush2.msra.mxu0 0.0
      %1788 = vmatprep.subr.mxu0 0.0
      %1789 = vmatpush2.msra.mxu0 0.0
      %1790 = vmatprep.subr.mxu0 0.0
      %1791 = vmatpush2.msra.mxu0 0.0
      %1792 = vmatprep.mubr.f32.mxu0 0.0
      %1793 = vmatmul.mubr.f32.gmra.mxu0 %v1372
      %v1794 = vpop.f32.mrf.mxu0
      %v1795 = vadd.f32 0.0, %v1794
      %v1796 = vpop.f32.mrf.mxu0
      %1797 = vdwg.mxu0
      %v1798 = vadd.f32 %v1727, %v1795
      %v1799 = vmax.f32 %v1445, %v1798
      %v1800 = vld [vmem:[%s3] sm:$0x1]
      %v1802 = vlaneseq
      %v1803 = vshrl.u32 %v1802, 7
      %v1804 = vsub.s32 0, %v1803
      %v1805 = vrot.slane %v1800, %v1804
      %v1807 = vadd.f32 %v1799, %v1805
      %v1808 = vmax.f32 %v1807, 0.0
      %vm1809 = vcmask 651264
      %1810 = vst.msk [vmem:[%s209] sm:$0x1f] %vm1809, %v1808
      %p1811 = scmp.lt.s32.totalorder %s15, 1
      %s1812 = scalar_select %p1811, %s15, 1
      %s1813 = smul.addr %s1812, 8
      %s1814 = scalar_lea.vmem %s4, %s1813
      // Predicated region
      $region37: #{net_forward.4} parent=35 // pred_check
        %p1815 = pneg %p127
      $region38: #{net_forward.4} parent=35 // pred_check_branch
        %1817 = sbr.rel (%p1815) target = $region40
      $region39: #{net_forward.4} parent=35 // pred_region
        _
      $region40: #{net_forward.4} parent=35 // pred_fallthru
        _
    $region36: #{net_forward.4} parent=5 // pred_fallthru
      _
    %p1818 = scmp.le.s32.totalorder 2, %s10
    // Predicated region
    $region41: #{net_forward.4} parent=5 // pred_check
      %p1819 = pneg %p1818
    $region42: #{net_forward.4} parent=5 // pred_check_branch
      %1821 = sbr.rel (%p1819) target = $region44
    $region43: #{net_forward.4} parent=5 // pred_region
      %s1822 = ssub.s32 %s10, 2
      // Predicated region
      $region45: #{net_forward.4} parent=43 // pred_check
        %p1823 = pneg %p133
      $region46: #{net_forward.4} parent=43 // pred_check_branch
        %1825 = sbr.rel (%p1823) target = $region48
      $region47: #{net_forward.4} parent=43 // pred_region
        %p1826 = scmp.lt.s32.totalorder %s16, 1
        %s1827 = scalar_select %p1826, %s16, 1
        %s1828 = smul.addr %s1827, 8
        %s1829 = scalar_lea.vmem %s4, %s1828
      $region48: #{net_forward.4} parent=43 // pred_fallthru
        _
    $region44: #{net_forward.4} parent=5 // pred_fallthru
      _
  $region6: #{net_forward.4} parent=0 // loop_footer
    %s14 = sadd.s32 1, %s10
  $region7: #{net_forward.4} parent=0 // loop_footer_branch
    %9 = sbr.rel target = $region3
  $region8: #{net_forward.4} parent=0 // loop_exit
    _

// kernel: net_forward.5
$region0: #{net_forward.5}
  #allocation0 [shape = 'u32[]', space=smem, size = 0x4, offset = 0x4, fixed_abs, tag = 'smem constant byte address 0x4 - core index']
  #allocation1 [shape = 'u32[144,128]{1,0:T(1,128)}', space=vmem, size = 0x12000, scoped, tag = 'internal scratch']
  %s0 = inlined_call_operand.vmem [shape: f32[8,400], index: 0, kind: input, shape index: {}]
  %s1 = inlined_call_operand.vmem [shape: f32[400,120], index: 1, kind: input, shape index: {}]
  %s2 = inlined_call_operand.vmem [shape: f32[1,120], index: 2, kind: input, shape index: {}]
  %s3 = inlined_call_operand.vmem [shape: f32[120,84], index: 3, kind: input, shape index: {}]
  %s4 = inlined_call_operand.vmem [shape: f32[1,84], index: 4, kind: input, shape index: {}]
  %s5 = inlined_call_operand.vmem [shape: f32[84,10], index: 5, kind: input, shape index: {}]
  %s6 = inlined_call_operand.vmem [shape: f32[1,10], index: 6, kind: input, shape index: {}]
  %s7 = inlined_call_operand.vmem [shape: f32[8,10], index: 7, kind: output, shape index: {}]
  %s8 = sld [smem:[#allocation0]]
  $region38: #{net_forward.5} parent=0
    _
  %s10 = ssub.s32 1, %s8
  %s11 = scalar_select 0, %s10, %s8
  // Predicated region
  $region2: #{net_forward.5} parent=0 // pred_check
    _
  $region3: #{net_forward.5} parent=0 // pred_check_branch
    %13 = sbr.rel (0) target = $region5
  $region4: #{net_forward.5} parent=0 // pred_region
    _
  $region5: #{net_forward.5} parent=0 // pred_fallthru
    _
  // Predicated region
  $region6: #{net_forward.5} parent=0 // pred_check
    _
  $region7: #{net_forward.5} parent=0 // pred_check_branch
    %15 = sbr.rel (0) target = $region9
  $region8: #{net_forward.5} parent=0 // pred_region
    _
  $region9: #{net_forward.5} parent=0 // pred_fallthru
    _
  // Predicated region
  $region10: #{net_forward.5} parent=0 // pred_check
    _
  $region11: #{net_forward.5} parent=0 // pred_check_branch
    %17 = sbr.rel (0) target = $region13
  $region12: #{net_forward.5} parent=0 // pred_region
    _
  $region13: #{net_forward.5} parent=0 // pred_fallthru
    _
  // Predicated region
  $region14: #{net_forward.5} parent=0 // pred_check
    _
  $region15: #{net_forward.5} parent=0 // pred_check_branch
    %19 = sbr.rel (0) target = $region17
  $region16: #{net_forward.5} parent=0 // pred_region
    _
  $region17: #{net_forward.5} parent=0 // pred_fallthru
    _
  // Predicated region
  $region18: #{net_forward.5} parent=0 // pred_check
    _
  $region19: #{net_forward.5} parent=0 // pred_check_branch
    %21 = sbr.rel (0) target = $region21
  $region20: #{net_forward.5} parent=0 // pred_region
    _
  $region21: #{net_forward.5} parent=0 // pred_fallthru
    _
  // Predicated region
  $region22: #{net_forward.5} parent=0 // pred_check
    _
  $region23: #{net_forward.5} parent=0 // pred_check_branch
    %23 = sbr.rel (0) target = $region25
  $region24: #{net_forward.5} parent=0 // pred_region
    _
  $region25: #{net_forward.5} parent=0 // pred_fallthru
    _
  // Predicated region
  $region26: #{net_forward.5} parent=0 // pred_check
    _
  $region27: #{net_forward.5} parent=0 // pred_check_branch
    %25 = sbr.rel (0) target = $region29
  $region28: #{net_forward.5} parent=0 // pred_region
    _
  $region29: #{net_forward.5} parent=0 // pred_fallthru
    _
  %v26 = vld [vmem:[%s0] sm:$0xff]
  %v27 = vld [vmem:[%s0 + $0x8] sm:$0xff]
  %v28 = vld [vmem:[%s0 + $0x10] sm:$0xff]
  %v29 = vld [vmem:[%s0 + $0x18] sm:$0xff]
  %v30 = vld [vmem:[%s1] sm:$0xff]
  %v31 = vld [vmem:[%s1 + $0x8] sm:$0xff]
  %v32 = vld [vmem:[%s1 + $0x10] sm:$0xff]
  %v33 = vld [vmem:[%s1 + $0x18] sm:$0xff]
  %v34 = vld [vmem:[%s1 + $0x20] sm:$0xff]
  %v35 = vld [vmem:[%s1 + $0x28] sm:$0xff]
  %v36 = vld [vmem:[%s1 + $0x30] sm:$0xff]
  %v37 = vld [vmem:[%s1 + $0x38] sm:$0xff]
  %v38 = vld [vmem:[%s1 + $0x40] sm:$0xff]
  %v39 = vld [vmem:[%s1 + $0x48] sm:$0xff]
  %v40 = vld [vmem:[%s1 + $0x50] sm:$0xff]
  %v41 = vld [vmem:[%s1 + $0x58] sm:$0xff]
  %v42 = vld [vmem:[%s1 + $0x60] sm:$0xff]
  %v43 = vld [vmem:[%s1 + $0x68] sm:$0xff]
  %v44 = vld [vmem:[%s1 + $0x70] sm:$0xff]
  %v45 = vld [vmem:[%s1 + $0x78] sm:$0xff]
  %v46 = vld [vmem:[%s1 + $0x80] sm:$0xff]
  %v47 = vld [vmem:[%s1 + $0x88] sm:$0xff]
  %v48 = vld [vmem:[%s1 + $0x90] sm:$0xff]
  %v49 = vld [vmem:[%s1 + $0x98] sm:$0xff]
  %v50 = vld [vmem:[%s1 + $0xa0] sm:$0xff]
  %v51 = vld [vmem:[%s1 + $0xa8] sm:$0xff]
  %v52 = vld [vmem:[%s1 + $0xb0] sm:$0xff]
  %v53 = vld [vmem:[%s1 + $0xb8] sm:$0xff]
  %v54 = vld [vmem:[%s1 + $0xc0] sm:$0xff]
  %v55 = vld [vmem:[%s1 + $0xc8] sm:$0xff]
  %v56 = vld [vmem:[%s1 + $0xd0] sm:$0xff]
  %v57 = vld [vmem:[%s1 + $0xd8] sm:$0xff]
  %v58 = vld [vmem:[%s1 + $0xe0] sm:$0xff]
  %v59 = vld [vmem:[%s1 + $0xe8] sm:$0xff]
  %v60 = vld [vmem:[%s1 + $0xf0] sm:$0xff]
  %v61 = vld [vmem:[%s1 + $0xf8] sm:$0xff]
  %v62 = vld [vmem:[%s1 + $0x100] sm:$0xff]
  %v63 = vld [vmem:[%s1 + $0x108] sm:$0xff]
  %v64 = vld [vmem:[%s1 + $0x110] sm:$0xff]
  %v65 = vld [vmem:[%s1 + $0x118] sm:$0xff]
  %v66 = vld [vmem:[%s1 + $0x120] sm:$0xff]
  %v67 = vld [vmem:[%s1 + $0x128] sm:$0xff]
  %v68 = vld [vmem:[%s1 + $0x130] sm:$0xff]
  %v69 = vld [vmem:[%s1 + $0x138] sm:$0xff]
  %v70 = vld [vmem:[%s1 + $0x140] sm:$0xff]
  %v71 = vld [vmem:[%s1 + $0x148] sm:$0xff]
  %v72 = vld [vmem:[%s1 + $0x150] sm:$0xff]
  %v73 = vld [vmem:[%s1 + $0x158] sm:$0xff]
  %v74 = vld [vmem:[%s1 + $0x160] sm:$0xff]
  %v75 = vld [vmem:[%s1 + $0x168] sm:$0xff]
  %v76 = vld [vmem:[%s1 + $0x170] sm:$0xff]
  %v77 = vld [vmem:[%s1 + $0x178] sm:$0xff]
  %v78 = vld [vmem:[%s1 + $0x180] sm:$0xff]
  %v79 = vld [vmem:[%s1 + $0x188] sm:$0xff]
  %v80 = vld [vmem:[%s2] sm:$0x1]
  %v82 = vlaneseq
  %v83 = vshrl.u32 %v82, 7
  %v84 = vsub.s32 0, %v83
  %v85 = vrot.slane %v80, %v84
  %vm87 = vcmask 130048
  %v89 = vsel %vm87, %v29, 0
  %91 = vmatprep.subr.mxu0 0.0
  %92 = vmatpush1.msra.mxu0 %v45
  %93 = vmatprep.subr.mxu0 0.0
  %94 = vmatpush1.msra.mxu0 %v44
  %95 = vmatprep.subr.mxu0 0.0
  %96 = vmatpush1.msra.mxu0 %v43
  %97 = vmatprep.subr.mxu0 0.0
  %98 = vmatpush1.msra.mxu0 %v42
  %99 = vmatprep.subr.mxu0 0.0
  %100 = vmatpush1.msra.mxu0 %v41
  %101 = vmatprep.subr.mxu0 0.0
  %102 = vmatpush1.msra.mxu0 %v40
  %103 = vmatprep.subr.mxu0 0.0
  %104 = vmatpush1.msra.mxu0 %v39
  %105 = vmatprep.subr.mxu0 0.0
  %106 = vmatpush1.msra.mxu0 %v38
  %107 = vmatprep.subr.mxu0 0.0
  %108 = vmatpush1.msra.mxu0 %v37
  %109 = vmatprep.subr.mxu0 0.0
  %110 = vmatpush1.msra.mxu0 %v36
  %111 = vmatprep.subr.mxu0 0.0
  %112 = vmatpush1.msra.mxu0 %v35
  %113 = vmatprep.subr.mxu0 0.0
  %114 = vmatpush1.msra.mxu0 %v34
  %115 = vmatprep.subr.mxu0 0.0
  %116 = vmatpush1.msra.mxu0 %v33
  %117 = vmatprep.subr.mxu0 0.0
  %118 = vmatpush1.msra.mxu0 %v32
  %119 = vmatprep.subr.mxu0 0.0
  %120 = vmatpush1.msra.mxu0 %v31
  %121 = vmatprep.subr.mxu0 0.0
  %122 = vmatpush1.msra.mxu0 %v30
  %123 = vmatprep.subr.mxu0 0.0
  %124 = vmatpush2.msra.mxu0 %v61
  %125 = vmatprep.subr.mxu0 0.0
  %126 = vmatpush2.msra.mxu0 %v60
  %127 = vmatprep.subr.mxu0 0.0
  %128 = vmatpush2.msra.mxu0 %v59
  %129 = vmatprep.subr.mxu0 0.0
  %130 = vmatpush2.msra.mxu0 %v58
  %131 = vmatprep.subr.mxu0 0.0
  %132 = vmatpush2.msra.mxu0 %v57
  %133 = vmatprep.subr.mxu0 0.0
  %134 = vmatpush2.msra.mxu0 %v56
  %135 = vmatprep.subr.mxu0 0.0
  %136 = vmatpush2.msra.mxu0 %v55
  %137 = vmatprep.subr.mxu0 0.0
  %138 = vmatpush2.msra.mxu0 %v54
  %139 = vmatprep.subr.mxu0 0.0
  %140 = vmatpush2.msra.mxu0 %v53
  %141 = vmatprep.subr.mxu0 0.0
  %142 = vmatpush2.msra.mxu0 %v52
  %143 = vmatprep.subr.mxu0 0.0
  %144 = vmatpush2.msra.mxu0 %v51
  %145 = vmatprep.subr.mxu0 0.0
  %146 = vmatpush2.msra.mxu0 %v50
  %147 = vmatprep.subr.mxu0 0.0
  %148 = vmatpush2.msra.mxu0 %v49
  %149 = vmatprep.subr.mxu0 0.0
  %150 = vmatpush2.msra.mxu0 %v48
  %151 = vmatprep.subr.mxu0 0.0
  %152 = vmatpush2.msra.mxu0 %v47
  %153 = vmatprep.subr.mxu0 0.0
  %154 = vmatpush2.msra.mxu0 %v46
  %155 = vmatprep.mubr.f32.mxu0 %v27
  %156 = vmatmul.mubr.f32.gmra.mxu0 %v26
  %v157 = vpop.f32.mrf.mxu0
  %v158 = vadd.f32 %v85, %v157
  %v159 = vpop.f32.mrf.mxu0
  %160 = vdwg.mxu0
  %161 = vmatprep.subr.mxu0 0.0
  %162 = vmatpush1.msra.mxu0 %v77
  %163 = vmatprep.subr.mxu0 0.0
  %164 = vmatpush1.msra.mxu0 %v76
  %165 = vmatprep.subr.mxu0 0.0
  %166 = vmatpush1.msra.mxu0 %v75
  %167 = vmatprep.subr.mxu0 0.0
  %168 = vmatpush1.msra.mxu0 %v74
  %169 = vmatprep.subr.mxu0 0.0
  %170 = vmatpush1.msra.mxu0 %v73
  %171 = vmatprep.subr.mxu0 0.0
  %172 = vmatpush1.msra.mxu0 %v72
  %173 = vmatprep.subr.mxu0 0.0
  %174 = vmatpush1.msra.mxu0 %v71
  %175 = vmatprep.subr.mxu0 0.0
  %176 = vmatpush1.msra.mxu0 %v70
  %177 = vmatprep.subr.mxu0 0.0
  %178 = vmatpush1.msra.mxu0 %v69
  %179 = vmatprep.subr.mxu0 0.0
  %180 = vmatpush1.msra.mxu0 %v68
  %181 = vmatprep.subr.mxu0 0.0
  %182 = vmatpush1.msra.mxu0 %v67
  %183 = vmatprep.subr.mxu0 0.0
  %184 = vmatpush1.msra.mxu0 %v66
  %185 = vmatprep.subr.mxu0 0.0
  %186 = vmatpush1.msra.mxu0 %v65
  %187 = vmatprep.subr.mxu0 0.0
  %188 = vmatpush1.msra.mxu0 %v64
  %189 = vmatprep.subr.mxu0 0.0
  %190 = vmatpush1.msra.mxu0 %v63
  %191 = vmatprep.subr.mxu0 0.0
  %192 = vmatpush1.msra.mxu0 %v62
  %193 = vmatprep.subr.mxu0 0.0
  %194 = vmatpush2.msra.mxu0 0.0
  %195 = vmatprep.subr.mxu0 0.0
  %196 = vmatpush2.msra.mxu0 0.0
  %197 = vmatprep.subr.mxu0 0.0
  %198 = vmatpush2.msra.mxu0 0.0
  %199 = vmatprep.subr.mxu0 0.0
  %200 = vmatpush2.msra.mxu0 0.0
  %201 = vmatprep.subr.mxu0 0.0
  %202 = vmatpush2.msra.mxu0 0.0
  %203 = vmatprep.subr.mxu0 0.0
  %204 = vmatpush2.msra.mxu0 0.0
  %205 = vmatprep.subr.mxu0 0.0
  %206 = vmatpush2.msra.mxu0 0.0
  %207 = vmatprep.subr.mxu0 0.0
  %208 = vmatpush2.msra.mxu0 0.0
  %209 = vmatprep.subr.mxu0 0.0
  %210 = vmatpush2.msra.mxu0 0.0
  %211 = vmatprep.subr.mxu0 0.0
  %212 = vmatpush2.msra.mxu0 0.0
  %213 = vmatprep.subr.mxu0 0.0
  %214 = vmatpush2.msra.mxu0 0.0
  %215 = vmatprep.subr.mxu0 0.0
  %216 = vmatpush2.msra.mxu0 0.0
  %217 = vmatprep.subr.mxu0 0.0
  %218 = vmatpush2.msra.mxu0 0.0
  %219 = vmatprep.subr.mxu0 0.0
  %220 = vmatpush2.msra.mxu0 0.0
  %221 = vmatprep.subr.mxu0 0.0
  %222 = vmatpush2.msra.mxu0 %v79
  %223 = vmatprep.subr.mxu0 0.0
  %224 = vmatpush2.msra.mxu0 %v78
  %225 = vmatprep.mubr.f32.mxu0 %v89
  %226 = vmatmul.mubr.f32.gmra.mxu0 %v28
  %v227 = vpop.f32.mrf.mxu0
  %v228 = vadd.f32 %v158, %v227
  %v229 = vpop.f32.mrf.mxu0
  %230 = vdwg.mxu0
  %v231 = vmax.f32 %v228, 0.0
  %v232 = vld [vmem:[%s3] sm:$0xff]
  %v233 = vld [vmem:[%s3 + $0x8] sm:$0xff]
  %v234 = vld [vmem:[%s3 + $0x10] sm:$0xff]
  %v235 = vld [vmem:[%s3 + $0x18] sm:$0xff]
  %v236 = vld [vmem:[%s3 + $0x20] sm:$0xff]
  %v237 = vld [vmem:[%s3 + $0x28] sm:$0xff]
  %v238 = vld [vmem:[%s3 + $0x30] sm:$0xff]
  %v239 = vld [vmem:[%s3 + $0x38] sm:$0xff]
  %v240 = vld [vmem:[%s3 + $0x40] sm:$0xff]
  %v241 = vld [vmem:[%s3 + $0x48] sm:$0xff]
  %v242 = vld [vmem:[%s3 + $0x50] sm:$0xff]
  %v243 = vld [vmem:[%s3 + $0x58] sm:$0xff]
  %v244 = vld [vmem:[%s3 + $0x60] sm:$0xff]
  %v245 = vld [vmem:[%s3 + $0x68] sm:$0xff]
  %v246 = vld [vmem:[%s3 + $0x70] sm:$0xff]
  %v247 = vld [vmem:[%s4] sm:$0x1]
  %v249 = vlaneseq
  %v250 = vshrl.u32 %v249, 7
  %v251 = vsub.s32 0, %v250
  %v252 = vrot.slane %v247, %v251
  %vm254 = vcmask 982016
  %v256 = vsel %vm254, %v231, 0
  %258 = vmatprep.subr.mxu0 0.0
  %259 = vmatpush1.msra.mxu0 0.0
  %260 = vmatprep.subr.mxu0 0.0
  %261 = vmatpush1.msra.mxu0 %v246
  %262 = vmatprep.subr.mxu0 0.0
  %263 = vmatpush1.msra.mxu0 %v245
  %264 = vmatprep.subr.mxu0 0.0
  %265 = vmatpush1.msra.mxu0 %v244
  %266 = vmatprep.subr.mxu0 0.0
  %267 = vmatpush1.msra.mxu0 %v243
  %268 = vmatprep.subr.mxu0 0.0
  %269 = vmatpush1.msra.mxu0 %v242
  %270 = vmatprep.subr.mxu0 0.0
  %271 = vmatpush1.msra.mxu0 %v241
  %272 = vmatprep.subr.mxu0 0.0
  %273 = vmatpush1.msra.mxu0 %v240
  %274 = vmatprep.subr.mxu0 0.0
  %275 = vmatpush1.msra.mxu0 %v239
  %276 = vmatprep.subr.mxu0 0.0
  %277 = vmatpush1.msra.mxu0 %v238
  %278 = vmatprep.subr.mxu0 0.0
  %279 = vmatpush1.msra.mxu0 %v237
  %280 = vmatprep.subr.mxu0 0.0
  %281 = vmatpush1.msra.mxu0 %v236
  %282 = vmatprep.subr.mxu0 0.0
  %283 = vmatpush1.msra.mxu0 %v235
  %284 = vmatprep.subr.mxu0 0.0
  %285 = vmatpush1.msra.mxu0 %v234
  %286 = vmatprep.subr.mxu0 0.0
  %287 = vmatpush1.msra.mxu0 %v233
  %288 = vmatprep.subr.mxu0 0.0
  %289 = vmatpush1.msra.mxu0 %v232
  %290 = vmatprep.subr.mxu0 0.0
  %291 = vmatpush2.msra.mxu0 0.0
  %292 = vmatprep.subr.mxu0 0.0
  %293 = vmatpush2.msra.mxu0 0.0
  %294 = vmatprep.subr.mxu0 0.0
  %295 = vmatpush2.msra.mxu0 0.0
  %296 = vmatprep.subr.mxu0 0.0
  %297 = vmatpush2.msra.mxu0 0.0
  %298 = vmatprep.subr.mxu0 0.0
  %299 = vmatpush2.msra.mxu0 0.0
  %300 = vmatprep.subr.mxu0 0.0
  %301 = vmatpush2.msra.mxu0 0.0
  %302 = vmatprep.subr.mxu0 0.0
  %303 = vmatpush2.msra.mxu0 0.0
  %304 = vmatprep.subr.mxu0 0.0
  %305 = vmatpush2.msra.mxu0 0.0
  %306 = vmatprep.subr.mxu0 0.0
  %307 = vmatpush2.msra.mxu0 0.0
  %308 = vmatprep.subr.mxu0 0.0
  %309 = vmatpush2.msra.mxu0 0.0
  %310 = vmatprep.subr.mxu0 0.0
  %311 = vmatpush2.msra.mxu0 0.0
  %312 = vmatprep.subr.mxu0 0.0
  %313 = vmatpush2.msra.mxu0 0.0
  %314 = vmatprep.subr.mxu0 0.0
  %315 = vmatpush2.msra.mxu0 0.0
  %316 = vmatprep.subr.mxu0 0.0
  %317 = vmatpush2.msra.mxu0 0.0
  %318 = vmatprep.subr.mxu0 0.0
  %319 = vmatpush2.msra.mxu0 0.0
  %320 = vmatprep.subr.mxu0 0.0
  %321 = vmatpush2.msra.mxu0 0.0
  %322 = vmatprep.mubr.f32.mxu0 0.0
  %323 = vmatmul.mubr.f32.gmra.mxu0 %v256
  %v324 = vpop.f32.mrf.mxu0
  %v325 = vadd.f32 %v252, %v324
  %v326 = vpop.f32.mrf.mxu0
  %327 = vdwg.mxu0
  %v328 = vmax.f32 %v325, 0.0
  %v329 = vld [vmem:[%s5] sm:$0xff]
  %v330 = vld [vmem:[%s5 + $0x8] sm:$0xff]
  %v331 = vld [vmem:[%s5 + $0x10] sm:$0xff]
  %v332 = vld [vmem:[%s5 + $0x18] sm:$0xff]
  %v333 = vld [vmem:[%s5 + $0x20] sm:$0xff]
  %v334 = vld [vmem:[%s5 + $0x28] sm:$0xff]
  %v335 = vld [vmem:[%s5 + $0x30] sm:$0xff]
  %v336 = vld [vmem:[%s5 + $0x38] sm:$0xff]
  %v337 = vld [vmem:[%s5 + $0x40] sm:$0xff]
  %v338 = vld [vmem:[%s5 + $0x48] sm:$0xff]
  %v339 = vld [vmem:[%s5 + $0x50] sm:$0xf]
  %v340 = vld [vmem:[%s6] sm:$0x1]
  %v342 = vlaneseq
  %v343 = vshrl.u32 %v342, 7
  %v344 = vsub.s32 0, %v343
  %v345 = vrot.slane %v340, %v344
  %vm347 = vcmask 687104
  %v349 = vsel %vm347, %v328, 0
  %vm351 = vcmask 1043456
  %v353 = vsel %vm351, %v339, 0
  %355 = vmatprep.subr.mxu0 0.0
  %356 = vmatpush1.msra.mxu0 0.0
  %357 = vmatprep.subr.mxu0 0.0
  %358 = vmatpush1.msra.mxu0 0.0
  %359 = vmatprep.subr.mxu0 0.0
  %360 = vmatpush1.msra.mxu0 0.0
  %361 = vmatprep.subr.mxu0 0.0
  %362 = vmatpush1.msra.mxu0 0.0
  %363 = vmatprep.subr.mxu0 0.0
  %364 = vmatpush1.msra.mxu0 0.0
  %365 = vmatprep.subr.mxu0 0.0
  %366 = vmatpush1.msra.mxu0 %v353
  %367 = vmatprep.subr.mxu0 0.0
  %368 = vmatpush1.msra.mxu0 %v338
  %369 = vmatprep.subr.mxu0 0.0
  %370 = vmatpush1.msra.mxu0 %v337
  %371 = vmatprep.subr.mxu0 0.0
  %372 = vmatpush1.msra.mxu0 %v336
  %373 = vmatprep.subr.mxu0 0.0
  %374 = vmatpush1.msra.mxu0 %v335
  %375 = vmatprep.subr.mxu0 0.0
  %376 = vmatpush1.msra.mxu0 %v334
  %377 = vmatprep.subr.mxu0 0.0
  %378 = vmatpush1.msra.mxu0 %v333
  %379 = vmatprep.subr.mxu0 0.0
  %380 = vmatpush1.msra.mxu0 %v332
  %381 = vmatprep.subr.mxu0 0.0
  %382 = vmatpush1.msra.mxu0 %v331
  %383 = vmatprep.subr.mxu0 0.0
  %384 = vmatpush1.msra.mxu0 %v330
  %385 = vmatprep.subr.mxu0 0.0
  %386 = vmatpush1.msra.mxu0 %v329
  %387 = vmatprep.subr.mxu0 0.0
  %388 = vmatpush2.msra.mxu0 0.0
  %389 = vmatprep.subr.mxu0 0.0
  %390 = vmatpush2.msra.mxu0 0.0
  %391 = vmatprep.subr.mxu0 0.0
  %392 = vmatpush2.msra.mxu0 0.0
  %393 = vmatprep.subr.mxu0 0.0
  %394 = vmatpush2.msra.mxu0 0.0
  %395 = vmatprep.subr.mxu0 0.0
  %396 = vmatpush2.msra.mxu0 0.0
  %397 = vmatprep.subr.mxu0 0.0
  %398 = vmatpush2.msra.mxu0 0.0
  %399 = vmatprep.subr.mxu0 0.0
  %400 = vmatpush2.msra.mxu0 0.0
  %401 = vmatprep.subr.mxu0 0.0
  %402 = vmatpush2.msra.mxu0 0.0
  %403 = vmatprep.subr.mxu0 0.0
  %404 = vmatpush2.msra.mxu0 0.0
  %405 = vmatprep.subr.mxu0 0.0
  %406 = vmatpush2.msra.mxu0 0.0
  %407 = vmatprep.subr.mxu0 0.0
  %408 = vmatpush2.msra.mxu0 0.0
  %409 = vmatprep.subr.mxu0 0.0
  %410 = vmatpush2.msra.mxu0 0.0
  %411 = vmatprep.subr.mxu0 0.0
  %412 = vmatpush2.msra.mxu0 0.0
  %413 = vmatprep.subr.mxu0 0.0
  %414 = vmatpush2.msra.mxu0 0.0
  %415 = vmatprep.subr.mxu0 0.0
  %416 = vmatpush2.msra.mxu0 0.0
  %417 = vmatprep.subr.mxu0 0.0
  %418 = vmatpush2.msra.mxu0 0.0
  %419 = vmatprep.mubr.f32.mxu0 0.0
  %420 = vmatmul.mubr.f32.gmra.mxu0 %v349
  %v421 = vpop.f32.mrf.mxu0
  %v422 = vadd.f32 %v345, %v421
  %v423 = vpop.f32.mrf.mxu0
  %424 = vdwg.mxu0
  %vm425 = vcmask 80896
  %426 = vst.msk [vmem:[%s7] sm:$0xff] %vm425, %v422
  // Predicated region
  $region30: #{net_forward.5} parent=0 // pred_check
    _
  $region31: #{net_forward.5} parent=0 // pred_check_branch
    %428 = sbr.rel (0) target = $region33
  $region32: #{net_forward.5} parent=0 // pred_region
    _
  $region33: #{net_forward.5} parent=0 // pred_fallthru
    _
  // Predicated region
  $region34: #{net_forward.5} parent=0 // pred_check
    _
  $region35: #{net_forward.5} parent=0 // pred_check_branch
    %430 = sbr.rel (0) target = $region37
  $region36: #{net_forward.5} parent=0 // pred_region
    _
  $region37: #{net_forward.5} parent=0 // pred_fallthru
    _

</llo_original>
